<compile_context>
chip_gen: v6e
topology: v6e:2x2x1
jax: 0.10.0
libtpu: 0.0.40
codegen_flags: <defaults>
</compile_context>

<pallas_src>
import functools

import jax
import jax.numpy as jnp
import numpy as np
from jax.experimental import pallas as pl
from jax.experimental.pallas import tpu as pltpu


# ----------------------------------------------------------------------------
# Fused encoder kernel
# ----------------------------------------------------------------------------
def _encoder_kernel(emb_ref, pos_ref, vis_ref,
                    w_ih_ref, w_hh_ref, b_ih_ref, b_hh_ref,
                    vis_w_ref, vis_b_ref, fc_w_ref, fc_b_ref,
                    states_ref, hidden_ref):
    S, B, H = states_ref.shape
    E = emb_ref.shape[1]

    emb = emb_ref[...]          # (S*B, E)  word embeddings, time-major flat
    pos = pos_ref[...]          # (S*B, E)  POS embeddings (or duplicated emb)

    # ---- Hoisted input projection: all timesteps, all gates, one pass. ----
    # gi_g = [emb | pos] @ W_ih_g + bias   (dual matmul instead of a concat)
    def in_proj(g, bias):
        w = w_ih_ref[g]                       # (2E, H), free leading-axis index
        return (jnp.dot(emb, w[:E, :], preferred_element_type=jnp.float32)
                + jnp.dot(pos, w[E:, :], preferred_element_type=jnp.float32)
                + bias)                       # (S*B, H)

    # b_ih and b_hh are purely additive for the r/z gates -> fold both here.
    gi_r = in_proj(0, b_ih_ref[0] + b_hh_ref[0])
    gi_z = in_proj(1, b_ih_ref[1] + b_hh_ref[1])
    gi_n = in_proj(2, b_ih_ref[2])            # b_hh_n must stay inside r*(...)

    # Recurrent weights / bias: loaded & broadcast once, outside the time loop.
    w_hh_r = w_hh_ref[0]                      # (H, H)
    w_hh_z = w_hh_ref[1]
    w_hh_n = w_hh_ref[2]
    b_hh_n = jnp.broadcast_to(b_hh_ref[2], (B, H))

    # ---- Recurrence: fully unrolled in-kernel time loop (S is static). ----
    h = jnp.zeros((B, H), jnp.float32)        # PyTorch default h0 = 0
    for t in range(S):                        # static unroll == fori_loop(unroll=True)
        lo = t * B
        i_r = gi_r[lo:lo + B]
        i_z = gi_z[lo:lo + B]
        i_n = gi_n[lo:lo + B]
        r = jax.nn.sigmoid(
            i_r + jnp.dot(h, w_hh_r, preferred_element_type=jnp.float32))
        z = jax.nn.sigmoid(
            i_z + jnp.dot(h, w_hh_z, preferred_element_type=jnp.float32))
        n = jnp.tanh(
            i_n + r * (jnp.dot(h, w_hh_n, preferred_element_type=jnp.float32)
                       + b_hh_n))
        h = (1.0 - z) * n + z * h
        states_ref[t] = h                     # static-index store, leading axis

    # ---- Fused epilogue: vis_fc + tanh, then fc over [h_last, vis] + tanh. ----
    vis = jnp.tanh(
        jnp.dot(vis_ref[...], vis_w_ref[...], preferred_element_type=jnp.float32)
        + vis_b_ref[...])                     # (B, H)
    fc_w = fc_w_ref[...]                      # (2H, H); split instead of concat
    hidden_ref[...] = jnp.tanh(
        jnp.dot(h, fc_w[:H, :], preferred_element_type=jnp.float32)
        + jnp.dot(vis, fc_w[H:, :], preferred_element_type=jnp.float32)
        + fc_b_ref[...])


def _encoder_pallas(emb_flat, pos_flat, visual_features, params, S, B, H, E, NF):
    return pl.pallas_call(
        _encoder_kernel,
        out_shape=(jax.ShapeDtypeStruct((S, B, H), jnp.float32),
                   jax.ShapeDtypeStruct((B, H), jnp.float32)),
        grid=(1,),
        in_specs=[
            pl.BlockSpec((S * B, E), lambda i: (0, 0)),        # emb
            pl.BlockSpec((S * B, E), lambda i: (0, 0)),        # pos
            pl.BlockSpec((B, NF), lambda i: (0, 0)),           # visual features
            pl.BlockSpec((3, 2 * E, H), lambda i: (0, 0, 0)),  # W_ih (per gate)
            pl.BlockSpec((3, H, H), lambda i: (0, 0, 0)),      # W_hh (per gate)
            pl.BlockSpec((3, 1, H), lambda i: (0, 0, 0)),      # b_ih (per gate)
            pl.BlockSpec((3, 1, H), lambda i: (0, 0, 0)),      # b_hh (per gate)
            pl.BlockSpec((NF, H), lambda i: (0, 0)),           # vis_fc weight
            pl.BlockSpec((1, H), lambda i: (0, 0)),            # vis_fc bias
            pl.BlockSpec((2 * H, H), lambda i: (0, 0)),        # fc weight
            pl.BlockSpec((1, H), lambda i: (0, 0)),            # fc bias
        ],
        out_specs=(
            pl.BlockSpec((S, B, H), lambda i: (0, 0, 0)),      # encoder_states
            pl.BlockSpec((B, H), lambda i: (0, 0)),            # hidden
        ),
        compiler_params=pltpu.CompilerParams(
            dimension_semantics=("arbitrary",)),
    )(emb_flat, pos_flat, visual_features,
      params["gru_w_ih"], params["gru_w_hh"],
      params["gru_b_ih"], params["gru_b_hh"],
      params["vis_fc_w_t"], params["vis_fc_b"],
      params["fc_w_t"], params["fc_b"])


# ----------------------------------------------------------------------------
# Encoder forward (embedding lookups in JAX, everything else in one kernel)
# ----------------------------------------------------------------------------
def encoder_forward(params, src, visual_features, pos_tag_seq):
    H = params["hid_dim"]

    # embedded = dropout(embedding(src))  (dropout = identity, eval)  (S, B, E)
    emb = jnp.take(params["embedding"], src, axis=0)
    # pos_embeds = dropout(pos_embedding(pos_tag_seq))                (S, B, E)
    pos = jnp.take(params["pos_embedding"], pos_tag_seq, axis=0)
    # PyTorch: cat((emb, pos)) if shapes match, else cat((emb, emb)).
    second = pos if pos.shape == emb.shape else emb

    S, B, E = emb.shape
    NF = visual_features.shape[1]
    emb_flat = emb.reshape(S * B, E)
    sec_flat = second.reshape(S * B, E)

    encoder_states, hidden = _encoder_pallas(
        emb_flat, sec_flat, visual_features, params, S, B, H, E, NF)

    # Match PyTorch return shapes: hidden carries a leading (num_layers=1) dim.
    return encoder_states, hidden[None, :, :]


# ----------------------------------------------------------------------------
# Pure-JAX reference (for correctness check)
# ----------------------------------------------------------------------------
def encoder_forward_ref(params, src, visual_features, pos_tag_seq):
    H = params["hid_dim"]
    vis = jnp.tanh(visual_features @ params["vis_fc_w_t"] + params["vis_fc_b"])
    emb = jnp.take(params["embedding"], src, axis=0)
    pos = jnp.take(params["pos_embedding"], pos_tag_seq, axis=0)
    second = pos if pos.shape == emb.shape else emb
    x = jnp.concatenate((emb, second), axis=-1)                       # (S, B, 2E)

    # Rebuild standard (2E, 3H)/(H, 3H) GRU weights from the per-gate layout.
    w_ih = jnp.concatenate([params["gru_w_ih"][g] for g in range(3)], axis=1)
    w_hh = jnp.concatenate([params["gru_w_hh"][g] for g in range(3)], axis=1)
    b_ih = jnp.concatenate([params["gru_b_ih"][g] for g in range(3)], axis=1)
    b_hh = jnp.concatenate([params["gru_b_hh"][g] for g in range(3)], axis=1)

    def step(h, x_t):
        gi = x_t @ w_ih + b_ih
        gh = h @ w_hh + b_hh
        i_r, i_z, i_n = gi[:, :H], gi[:, H:2 * H], gi[:, 2 * H:]
        h_r, h_z, h_n = gh[:, :H], gh[:, H:2 * H], gh[:, 2 * H:]
        r = jax.nn.sigmoid(i_r + h_r)
        z = jax.nn.sigmoid(i_z + h_z)
        n = jnp.tanh(i_n + r * h_n)
        h_new = (1.0 - z) * n + z * h
        return h_new, h_new

    h0 = jnp.zeros((x.shape[1], H), jnp.float32)
    h_last, states = jax.lax.scan(step, h0, x)
    cat = jnp.concatenate((h_last, vis), axis=-1)
    hidden = jnp.tanh(cat @ params["fc_w_t"] + params["fc_b"])
    return states, hidden[None, :, :]


# ----------------------------------------------------------------------------
# Main
# ----------------------------------------------------------------------------
if __name__ == "__main__":
    # Small, forward-consistent sizes.
    input_dim = 40        # vocab size
    emb_dim = 16
    pos_embed_dim = 16    # == emb_dim so the "fine" concat branch is taken
    tag_len = 50
    hid_dim = 32
    NF = 24               # visual feature dim
    seq_len = 8
    batch = 2

    key = jax.random.PRNGKey(0)
    ks = jax.random.split(key, 12)

    def init(k, shape, scale=0.1):
        return (scale * jax.random.normal(k, shape)).astype(jnp.float32)

    pos_embedding = init(ks[1], (tag_len, pos_embed_dim))
    pos_embedding = pos_embedding.at[0].set(0.0)  # padding_idx=0

    params = {
        "hid_dim": hid_dim,
        "embedding": init(ks[0], (input_dim, emb_dim)),
        "pos_embedding": pos_embedding,
        # nn.GRU(2*emb_dim, hid_dim): per-gate packed layout (gate order r,z,n),
        # each gate stored transposed for x @ W^T.
        "gru_w_ih": init(ks[2], (3, 2 * emb_dim, hid_dim)),
        "gru_w_hh": init(ks[3], (3, hid_dim, hid_dim)),
        "gru_b_ih": init(ks[4], (3, 1, hid_dim)),
        "gru_b_hh": init(ks[5], (3, 1, hid_dim)),
        # nn.Linear(hid_dim*2, hid_dim)
        "fc_w_t": init(ks[6], (2 * hid_dim, hid_dim)),
        "fc_b": init(ks[7], (1, hid_dim)),
        # nn.Linear(NF, hid_dim)
        "vis_fc_w_t": init(ks[8], (NF, hid_dim)),
        "vis_fc_b": init(ks[9], (1, hid_dim)),
    }

    src = jax.random.randint(ks[10], (seq_len, batch), 0, input_dim, dtype=jnp.int32)
    pos_tag_seq = jax.random.randint(ks[11], (seq_len, batch), 0, tag_len, dtype=jnp.int32)
    visual_features = init(jax.random.PRNGKey(123), (batch, NF), scale=1.0)

    enc_states, hidden = encoder_forward(params, src, visual_features, pos_tag_seq)
    enc_states = jax.block_until_ready(enc_states)
    hidden = jax.block_until_ready(hidden)

    # Correctness check vs pure-JAX reference.
    ref_states, ref_hidden = encoder_forward_ref(params, src, visual_features, pos_tag_seq)
    np.testing.assert_allclose(np.asarray(enc_states), np.asarray(ref_states),
                               rtol=1e-5, atol=1e-5)
    np.testing.assert_allclose(np.asarray(hidden), np.asarray(ref_hidden),
                               rtol=1e-5, atol=1e-5)
    assert enc_states.shape == (seq_len, batch, hid_dim)
    assert hidden.shape == (1, batch, hid_dim)

    print("KERNEL_OK")
</pallas_src>

<mosaic_0001>
module attributes {stable_mosaic.version = 11 : i64} {
  func.func @_encoder_kernel(%arg0: i32, %arg1: memref<16x16xf32, #tpu.memory_space<vmem>>, %arg2: memref<16x16xf32, #tpu.memory_space<vmem>>, %arg3: memref<2x24xf32, #tpu.memory_space<vmem>>, %arg4: memref<3x32x32xf32, #tpu.memory_space<vmem>>, %arg5: memref<3x32x32xf32, #tpu.memory_space<vmem>>, %arg6: memref<3x1x32xf32, #tpu.memory_space<vmem>>, %arg7: memref<3x1x32xf32, #tpu.memory_space<vmem>>, %arg8: memref<24x32xf32, #tpu.memory_space<vmem>>, %arg9: memref<1x32xf32, #tpu.memory_space<vmem>>, %arg10: memref<64x32xf32, #tpu.memory_space<vmem>>, %arg11: memref<1x32xf32, #tpu.memory_space<vmem>>, %arg12: memref<8x2x32xf32, #tpu.memory_space<vmem>>, %arg13: memref<2x32xf32, #tpu.memory_space<vmem>>) attributes {dimension_semantics = [#tpu.dimension_semantics<arbitrary>], iteration_bounds = array<i64: 1>, scalar_prefetch = 0 : i64, scratch_operands = 0 : i64, tpu.core_type = #tpu.core_type<tc>, window_params = [{pipeline_mode = #tpu.pipeline_mode<synchronous>, transform_indices = @transform_0, window_bounds = array<i64: 16, 16>}, {pipeline_mode = #tpu.pipeline_mode<synchronous>, transform_indices = @transform_1, window_bounds = array<i64: 16, 16>}, {pipeline_mode = #tpu.pipeline_mode<synchronous>, transform_indices = @transform_2, window_bounds = array<i64: 2, 24>}, {pipeline_mode = #tpu.pipeline_mode<synchronous>, transform_indices = @transform_3, window_bounds = array<i64: 3, 32, 32>}, {pipeline_mode = #tpu.pipeline_mode<synchronous>, transform_indices = @transform_4, window_bounds = array<i64: 3, 32, 32>}, {pipeline_mode = #tpu.pipeline_mode<synchronous>, transform_indices = @transform_5, window_bounds = array<i64: 3, 1, 32>}, {pipeline_mode = #tpu.pipeline_mode<synchronous>, transform_indices = @transform_6, window_bounds = array<i64: 3, 1, 32>}, {pipeline_mode = #tpu.pipeline_mode<synchronous>, transform_indices = @transform_7, window_bounds = array<i64: 24, 32>}, {pipeline_mode = #tpu.pipeline_mode<synchronous>, transform_indices = @transform_8, window_bounds = array<i64: 1, 32>}, {pipeline_mode = #tpu.pipeline_mode<synchronous>, transform_indices = @transform_9, window_bounds = array<i64: 64, 32>}, {pipeline_mode = #tpu.pipeline_mode<synchronous>, transform_indices = @transform_10, window_bounds = array<i64: 1, 32>}, {pipeline_mode = #tpu.pipeline_mode<synchronous>, transform_indices = @transform_11, window_bounds = array<i64: 8, 2, 32>}, {pipeline_mode = #tpu.pipeline_mode<synchronous>, transform_indices = @transform_12, window_bounds = array<i64: 2, 32>}]} {
    %c0 = arith.constant 0 : index
    %c0_0 = arith.constant 0 : index
    %0 = vector.load %arg1[%c0, %c0_0] : memref<16x16xf32, #tpu.memory_space<vmem>>, vector<16x16xf32>
    %c0_1 = arith.constant 0 : index
    %c0_2 = arith.constant 0 : index
    %1 = vector.load %arg2[%c0_1, %c0_2] : memref<16x16xf32, #tpu.memory_space<vmem>>, vector<16x16xf32>
    %c0_3 = arith.constant 0 : index
    %c0_4 = arith.constant 0 : index
    %c0_5 = arith.constant 0 : index
    %2 = vector.load %arg6[%c0_3, %c0_4, %c0_5] : memref<3x1x32xf32, #tpu.memory_space<vmem>>, vector<1x1x32xf32>
    %3 = vector.shape_cast %2 : vector<1x1x32xf32> to vector<1x32xf32>
    %c0_6 = arith.constant 0 : index
    %c0_7 = arith.constant 0 : index
    %c0_8 = arith.constant 0 : index
    %4 = vector.load %arg7[%c0_6, %c0_7, %c0_8] : memref<3x1x32xf32, #tpu.memory_space<vmem>>, vector<1x1x32xf32>
    %5 = vector.shape_cast %4 : vector<1x1x32xf32> to vector<1x32xf32>
    %6 = arith.addf %3, %5 : vector<1x32xf32>
    %c0_9 = arith.constant 0 : index
    %c0_10 = arith.constant 0 : index
    %c0_11 = arith.constant 0 : index
    %7 = vector.load %arg4[%c0_9, %c0_10, %c0_11] : memref<3x32x32xf32, #tpu.memory_space<vmem>>, vector<1x32x32xf32>
    %8 = vector.shape_cast %7 : vector<1x32x32xf32> to vector<32x32xf32>
    %9 = vector.extract_strided_slice %8 {offsets = [0, 0], sizes = [16, 32], strides = [1, 1]} : vector<32x32xf32> to vector<16x32xf32>
    %cst = arith.constant dense<0.000000e+00> : vector<16x32xf32>
    %10 = tpu.matmul %0, %9, %cst {dimension_numbers = #tpu.dot_dimension_numbers<[1], [0], [0], [1], [0, 0, 1, 1], [], []>} : vector<16x16xf32>, vector<16x32xf32>, vector<16x32xf32> -> vector<16x32xf32>
    %11 = vector.extract_strided_slice %8 {offsets = [16, 0], sizes = [16, 32], strides = [1, 1]} : vector<32x32xf32> to vector<16x32xf32>
    %cst_12 = arith.constant dense<0.000000e+00> : vector<16x32xf32>
    %12 = tpu.matmul %1, %11, %cst_12 {dimension_numbers = #tpu.dot_dimension_numbers<[1], [0], [0], [1], [0, 0, 1, 1], [], []>} : vector<16x16xf32>, vector<16x32xf32>, vector<16x32xf32> -> vector<16x32xf32>
    %13 = arith.addf %10, %12 : vector<16x32xf32>
    %14 = vector.broadcast %6 : vector<1x32xf32> to vector<16x32xf32>
    %15 = arith.addf %13, %14 : vector<16x32xf32>
    %c1 = arith.constant 1 : index
    %c0_13 = arith.constant 0 : index
    %c0_14 = arith.constant 0 : index
    %16 = vector.load %arg6[%c1, %c0_13, %c0_14] : memref<3x1x32xf32, #tpu.memory_space<vmem>>, vector<1x1x32xf32>
    %17 = vector.shape_cast %16 : vector<1x1x32xf32> to vector<1x32xf32>
    %c1_15 = arith.constant 1 : index
    %c0_16 = arith.constant 0 : index
    %c0_17 = arith.constant 0 : index
    %18 = vector.load %arg7[%c1_15, %c0_16, %c0_17] : memref<3x1x32xf32, #tpu.memory_space<vmem>>, vector<1x1x32xf32>
    %19 = vector.shape_cast %18 : vector<1x1x32xf32> to vector<1x32xf32>
    %20 = arith.addf %17, %19 : vector<1x32xf32>
    %c1_18 = arith.constant 1 : index
    %c0_19 = arith.constant 0 : index
    %c0_20 = arith.constant 0 : index
    %21 = vector.load %arg4[%c1_18, %c0_19, %c0_20] : memref<3x32x32xf32, #tpu.memory_space<vmem>>, vector<1x32x32xf32>
    %22 = vector.shape_cast %21 : vector<1x32x32xf32> to vector<32x32xf32>
    %23 = vector.extract_strided_slice %22 {offsets = [0, 0], sizes = [16, 32], strides = [1, 1]} : vector<32x32xf32> to vector<16x32xf32>
    %cst_21 = arith.constant dense<0.000000e+00> : vector<16x32xf32>
    %24 = tpu.matmul %0, %23, %cst_21 {dimension_numbers = #tpu.dot_dimension_numbers<[1], [0], [0], [1], [0, 0, 1, 1], [], []>} : vector<16x16xf32>, vector<16x32xf32>, vector<16x32xf32> -> vector<16x32xf32>
    %25 = vector.extract_strided_slice %22 {offsets = [16, 0], sizes = [16, 32], strides = [1, 1]} : vector<32x32xf32> to vector<16x32xf32>
    %cst_22 = arith.constant dense<0.000000e+00> : vector<16x32xf32>
    %26 = tpu.matmul %1, %25, %cst_22 {dimension_numbers = #tpu.dot_dimension_numbers<[1], [0], [0], [1], [0, 0, 1, 1], [], []>} : vector<16x16xf32>, vector<16x32xf32>, vector<16x32xf32> -> vector<16x32xf32>
    %27 = arith.addf %24, %26 : vector<16x32xf32>
    %28 = vector.broadcast %20 : vector<1x32xf32> to vector<16x32xf32>
    %29 = arith.addf %27, %28 : vector<16x32xf32>
    %c2 = arith.constant 2 : index
    %c0_23 = arith.constant 0 : index
    %c0_24 = arith.constant 0 : index
    %30 = vector.load %arg6[%c2, %c0_23, %c0_24] : memref<3x1x32xf32, #tpu.memory_space<vmem>>, vector<1x1x32xf32>
    %31 = vector.shape_cast %30 : vector<1x1x32xf32> to vector<1x32xf32>
    %c2_25 = arith.constant 2 : index
    %c0_26 = arith.constant 0 : index
    %c0_27 = arith.constant 0 : index
    %32 = vector.load %arg4[%c2_25, %c0_26, %c0_27] : memref<3x32x32xf32, #tpu.memory_space<vmem>>, vector<1x32x32xf32>
    %33 = vector.shape_cast %32 : vector<1x32x32xf32> to vector<32x32xf32>
    %34 = vector.extract_strided_slice %33 {offsets = [0, 0], sizes = [16, 32], strides = [1, 1]} : vector<32x32xf32> to vector<16x32xf32>
    %cst_28 = arith.constant dense<0.000000e+00> : vector<16x32xf32>
    %35 = tpu.matmul %0, %34, %cst_28 {dimension_numbers = #tpu.dot_dimension_numbers<[1], [0], [0], [1], [0, 0, 1, 1], [], []>} : vector<16x16xf32>, vector<16x32xf32>, vector<16x32xf32> -> vector<16x32xf32>
    %36 = vector.extract_strided_slice %33 {offsets = [16, 0], sizes = [16, 32], strides = [1, 1]} : vector<32x32xf32> to vector<16x32xf32>
    %cst_29 = arith.constant dense<0.000000e+00> : vector<16x32xf32>
    %37 = tpu.matmul %1, %36, %cst_29 {dimension_numbers = #tpu.dot_dimension_numbers<[1], [0], [0], [1], [0, 0, 1, 1], [], []>} : vector<16x16xf32>, vector<16x32xf32>, vector<16x32xf32> -> vector<16x32xf32>
    %38 = arith.addf %35, %37 : vector<16x32xf32>
    %39 = vector.broadcast %31 : vector<1x32xf32> to vector<16x32xf32>
    %40 = arith.addf %38, %39 : vector<16x32xf32>
    %c0_30 = arith.constant 0 : index
    %c0_31 = arith.constant 0 : index
    %c0_32 = arith.constant 0 : index
    %41 = vector.load %arg5[%c0_30, %c0_31, %c0_32] : memref<3x32x32xf32, #tpu.memory_space<vmem>>, vector<1x32x32xf32>
    %42 = vector.shape_cast %41 : vector<1x32x32xf32> to vector<32x32xf32>
    %c1_33 = arith.constant 1 : index
    %c0_34 = arith.constant 0 : index
    %c0_35 = arith.constant 0 : index
    %43 = vector.load %arg5[%c1_33, %c0_34, %c0_35] : memref<3x32x32xf32, #tpu.memory_space<vmem>>, vector<1x32x32xf32>
    %44 = vector.shape_cast %43 : vector<1x32x32xf32> to vector<32x32xf32>
    %c2_36 = arith.constant 2 : index
    %c0_37 = arith.constant 0 : index
    %c0_38 = arith.constant 0 : index
    %45 = vector.load %arg5[%c2_36, %c0_37, %c0_38] : memref<3x32x32xf32, #tpu.memory_space<vmem>>, vector<1x32x32xf32>
    %46 = vector.shape_cast %45 : vector<1x32x32xf32> to vector<32x32xf32>
    %c2_39 = arith.constant 2 : index
    %c0_40 = arith.constant 0 : index
    %c0_41 = arith.constant 0 : index
    %47 = vector.load %arg7[%c2_39, %c0_40, %c0_41] : memref<3x1x32xf32, #tpu.memory_space<vmem>>, vector<1x1x32xf32>
    %48 = vector.shape_cast %47 : vector<1x1x32xf32> to vector<1x32xf32>
    %49 = vector.shape_cast %48 : vector<1x32xf32> to vector<1x32xf32>
    %50 = vector.broadcast %49 : vector<1x32xf32> to vector<2x32xf32>
    %cst_42 = arith.constant 0.000000e+00 : f32
    %51 = vector.broadcast %cst_42 : f32 to vector<2x32xf32>
    %52 = vector.extract_strided_slice %15 {offsets = [0, 0], sizes = [2, 32], strides = [1, 1]} : vector<16x32xf32> to vector<2x32xf32>
    %53 = vector.extract_strided_slice %29 {offsets = [0, 0], sizes = [2, 32], strides = [1, 1]} : vector<16x32xf32> to vector<2x32xf32>
    %54 = vector.extract_strided_slice %40 {offsets = [0, 0], sizes = [2, 32], strides = [1, 1]} : vector<16x32xf32> to vector<2x32xf32>
    %cst_43 = arith.constant dense<0.000000e+00> : vector<2x32xf32>
    %55 = tpu.matmul %51, %42, %cst_43 {dimension_numbers = #tpu.dot_dimension_numbers<[1], [0], [0], [1], [0, 0, 1, 1], [], []>} : vector<2x32xf32>, vector<32x32xf32>, vector<2x32xf32> -> vector<2x32xf32>
    %56 = arith.addf %52, %55 : vector<2x32xf32>
    %57 = arith.negf %56 : vector<2x32xf32>
    %58 = math.exp %57 : vector<2x32xf32>
    %cst_44 = arith.constant 1.000000e+00 : f32
    %59 = vector.broadcast %cst_44 : f32 to vector<2x32xf32>
    %60 = arith.addf %59, %58 : vector<2x32xf32>
    %61 = arith.divf %59, %60 : vector<2x32xf32>
    %cst_45 = arith.constant dense<0.000000e+00> : vector<2x32xf32>
    %62 = tpu.matmul %51, %44, %cst_45 {dimension_numbers = #tpu.dot_dimension_numbers<[1], [0], [0], [1], [0, 0, 1, 1], [], []>} : vector<2x32xf32>, vector<32x32xf32>, vector<2x32xf32> -> vector<2x32xf32>
    %63 = arith.addf %53, %62 : vector<2x32xf32>
    %64 = arith.negf %63 : vector<2x32xf32>
    %65 = math.exp %64 : vector<2x32xf32>
    %cst_46 = arith.constant 1.000000e+00 : f32
    %66 = vector.broadcast %cst_46 : f32 to vector<2x32xf32>
    %67 = arith.addf %66, %65 : vector<2x32xf32>
    %68 = arith.divf %66, %67 : vector<2x32xf32>
    %cst_47 = arith.constant dense<0.000000e+00> : vector<2x32xf32>
    %69 = tpu.matmul %51, %46, %cst_47 {dimension_numbers = #tpu.dot_dimension_numbers<[1], [0], [0], [1], [0, 0, 1, 1], [], []>} : vector<2x32xf32>, vector<32x32xf32>, vector<2x32xf32> -> vector<2x32xf32>
    %70 = arith.addf %69, %50 : vector<2x32xf32>
    %71 = arith.mulf %61, %70 : vector<2x32xf32>
    %72 = arith.addf %54, %71 : vector<2x32xf32>
    %73 = math.tanh %72 : vector<2x32xf32>
    %cst_48 = arith.constant 1.000000e+00 : f32
    %74 = vector.broadcast %cst_48 : f32 to vector<2x32xf32>
    %75 = arith.subf %74, %68 : vector<2x32xf32>
    %76 = arith.mulf %75, %73 : vector<2x32xf32>
    %77 = arith.mulf %68, %51 : vector<2x32xf32>
    %78 = arith.addf %76, %77 : vector<2x32xf32>
    %c0_49 = arith.constant 0 : index
    %c0_50 = arith.constant 0 : index
    %c0_51 = arith.constant 0 : index
    %79 = vector.load %arg12[%c0_49, %c0_50, %c0_51] : memref<8x2x32xf32, #tpu.memory_space<vmem>>, vector<1x2x32xf32>
    %80 = vector.shape_cast %79 : vector<1x2x32xf32> to vector<2x32xf32>
    %81 = vector.shape_cast %78 : vector<2x32xf32> to vector<1x2x32xf32>
    tpu.vector_store %arg12[%c0_49, %c0_50, %c0_51], %81 {strides = array<i32>} : memref<8x2x32xf32, #tpu.memory_space<vmem>>, vector<1x2x32xf32>,
    %82 = vector.extract_strided_slice %15 {offsets = [2, 0], sizes = [2, 32], strides = [1, 1]} : vector<16x32xf32> to vector<2x32xf32>
    %83 = vector.extract_strided_slice %29 {offsets = [2, 0], sizes = [2, 32], strides = [1, 1]} : vector<16x32xf32> to vector<2x32xf32>
    %84 = vector.extract_strided_slice %40 {offsets = [2, 0], sizes = [2, 32], strides = [1, 1]} : vector<16x32xf32> to vector<2x32xf32>
    %cst_52 = arith.constant dense<0.000000e+00> : vector<2x32xf32>
    %85 = tpu.matmul %78, %42, %cst_52 {dimension_numbers = #tpu.dot_dimension_numbers<[1], [0], [0], [1], [0, 0, 1, 1], [], []>} : vector<2x32xf32>, vector<32x32xf32>, vector<2x32xf32> -> vector<2x32xf32>
    %86 = arith.addf %82, %85 : vector<2x32xf32>
    %87 = arith.negf %86 : vector<2x32xf32>
    %88 = math.exp %87 : vector<2x32xf32>
    %cst_53 = arith.constant 1.000000e+00 : f32
    %89 = vector.broadcast %cst_53 : f32 to vector<2x32xf32>
    %90 = arith.addf %89, %88 : vector<2x32xf32>
    %91 = arith.divf %89, %90 : vector<2x32xf32>
    %cst_54 = arith.constant dense<0.000000e+00> : vector<2x32xf32>
    %92 = tpu.matmul %78, %44, %cst_54 {dimension_numbers = #tpu.dot_dimension_numbers<[1], [0], [0], [1], [0, 0, 1, 1], [], []>} : vector<2x32xf32>, vector<32x32xf32>, vector<2x32xf32> -> vector<2x32xf32>
    %93 = arith.addf %83, %92 : vector<2x32xf32>
    %94 = arith.negf %93 : vector<2x32xf32>
    %95 = math.exp %94 : vector<2x32xf32>
    %cst_55 = arith.constant 1.000000e+00 : f32
    %96 = vector.broadcast %cst_55 : f32 to vector<2x32xf32>
    %97 = arith.addf %96, %95 : vector<2x32xf32>
    %98 = arith.divf %96, %97 : vector<2x32xf32>
    %cst_56 = arith.constant dense<0.000000e+00> : vector<2x32xf32>
    %99 = tpu.matmul %78, %46, %cst_56 {dimension_numbers = #tpu.dot_dimension_numbers<[1], [0], [0], [1], [0, 0, 1, 1], [], []>} : vector<2x32xf32>, vector<32x32xf32>, vector<2x32xf32> -> vector<2x32xf32>
    %100 = arith.addf %99, %50 : vector<2x32xf32>
    %101 = arith.mulf %91, %100 : vector<2x32xf32>
    %102 = arith.addf %84, %101 : vector<2x32xf32>
    %103 = math.tanh %102 : vector<2x32xf32>
    %cst_57 = arith.constant 1.000000e+00 : f32
    %104 = vector.broadcast %cst_57 : f32 to vector<2x32xf32>
    %105 = arith.subf %104, %98 : vector<2x32xf32>
    %106 = arith.mulf %105, %103 : vector<2x32xf32>
    %107 = arith.mulf %98, %78 : vector<2x32xf32>
    %108 = arith.addf %106, %107 : vector<2x32xf32>
    %c1_58 = arith.constant 1 : index
    %c0_59 = arith.constant 0 : index
    %c0_60 = arith.constant 0 : index
    %109 = vector.load %arg12[%c1_58, %c0_59, %c0_60] : memref<8x2x32xf32, #tpu.memory_space<vmem>>, vector<1x2x32xf32>
    %110 = vector.shape_cast %109 : vector<1x2x32xf32> to vector<2x32xf32>
    %111 = vector.shape_cast %108 : vector<2x32xf32> to vector<1x2x32xf32>
    tpu.vector_store %arg12[%c1_58, %c0_59, %c0_60], %111 {strides = array<i32>} : memref<8x2x32xf32, #tpu.memory_space<vmem>>, vector<1x2x32xf32>,
    %112 = vector.extract_strided_slice %15 {offsets = [4, 0], sizes = [2, 32], strides = [1, 1]} : vector<16x32xf32> to vector<2x32xf32>
    %113 = vector.extract_strided_slice %29 {offsets = [4, 0], sizes = [2, 32], strides = [1, 1]} : vector<16x32xf32> to vector<2x32xf32>
    %114 = vector.extract_strided_slice %40 {offsets = [4, 0], sizes = [2, 32], strides = [1, 1]} : vector<16x32xf32> to vector<2x32xf32>
    %cst_61 = arith.constant dense<0.000000e+00> : vector<2x32xf32>
    %115 = tpu.matmul %108, %42, %cst_61 {dimension_numbers = #tpu.dot_dimension_numbers<[1], [0], [0], [1], [0, 0, 1, 1], [], []>} : vector<2x32xf32>, vector<32x32xf32>, vector<2x32xf32> -> vector<2x32xf32>
    %116 = arith.addf %112, %115 : vector<2x32xf32>
    %117 = arith.negf %116 : vector<2x32xf32>
    %118 = math.exp %117 : vector<2x32xf32>
    %cst_62 = arith.constant 1.000000e+00 : f32
    %119 = vector.broadcast %cst_62 : f32 to vector<2x32xf32>
    %120 = arith.addf %119, %118 : vector<2x32xf32>
    %121 = arith.divf %119, %120 : vector<2x32xf32>
    %cst_63 = arith.constant dense<0.000000e+00> : vector<2x32xf32>
    %122 = tpu.matmul %108, %44, %cst_63 {dimension_numbers = #tpu.dot_dimension_numbers<[1], [0], [0], [1], [0, 0, 1, 1], [], []>} : vector<2x32xf32>, vector<32x32xf32>, vector<2x32xf32> -> vector<2x32xf32>
    %123 = arith.addf %113, %122 : vector<2x32xf32>
    %124 = arith.negf %123 : vector<2x32xf32>
    %125 = math.exp %124 : vector<2x32xf32>
    %cst_64 = arith.constant 1.000000e+00 : f32
    %126 = vector.broadcast %cst_64 : f32 to vector<2x32xf32>
    %127 = arith.addf %126, %125 : vector<2x32xf32>
    %128 = arith.divf %126, %127 : vector<2x32xf32>
    %cst_65 = arith.constant dense<0.000000e+00> : vector<2x32xf32>
    %129 = tpu.matmul %108, %46, %cst_65 {dimension_numbers = #tpu.dot_dimension_numbers<[1], [0], [0], [1], [0, 0, 1, 1], [], []>} : vector<2x32xf32>, vector<32x32xf32>, vector<2x32xf32> -> vector<2x32xf32>
    %130 = arith.addf %129, %50 : vector<2x32xf32>
    %131 = arith.mulf %121, %130 : vector<2x32xf32>
    %132 = arith.addf %114, %131 : vector<2x32xf32>
    %133 = math.tanh %132 : vector<2x32xf32>
    %cst_66 = arith.constant 1.000000e+00 : f32
    %134 = vector.broadcast %cst_66 : f32 to vector<2x32xf32>
    %135 = arith.subf %134, %128 : vector<2x32xf32>
    %136 = arith.mulf %135, %133 : vector<2x32xf32>
    %137 = arith.mulf %128, %108 : vector<2x32xf32>
    %138 = arith.addf %136, %137 : vector<2x32xf32>
    %c2_67 = arith.constant 2 : index
    %c0_68 = arith.constant 0 : index
    %c0_69 = arith.constant 0 : index
    %139 = vector.load %arg12[%c2_67, %c0_68, %c0_69] : memref<8x2x32xf32, #tpu.memory_space<vmem>>, vector<1x2x32xf32>
    %140 = vector.shape_cast %139 : vector<1x2x32xf32> to vector<2x32xf32>
    %141 = vector.shape_cast %138 : vector<2x32xf32> to vector<1x2x32xf32>
    tpu.vector_store %arg12[%c2_67, %c0_68, %c0_69], %141 {strides = array<i32>} : memref<8x2x32xf32, #tpu.memory_space<vmem>>, vector<1x2x32xf32>,
    %142 = vector.extract_strided_slice %15 {offsets = [6, 0], sizes = [2, 32], strides = [1, 1]} : vector<16x32xf32> to vector<2x32xf32>
    %143 = vector.extract_strided_slice %29 {offsets = [6, 0], sizes = [2, 32], strides = [1, 1]} : vector<16x32xf32> to vector<2x32xf32>
    %144 = vector.extract_strided_slice %40 {offsets = [6, 0], sizes = [2, 32], strides = [1, 1]} : vector<16x32xf32> to vector<2x32xf32>
    %cst_70 = arith.constant dense<0.000000e+00> : vector<2x32xf32>
    %145 = tpu.matmul %138, %42, %cst_70 {dimension_numbers = #tpu.dot_dimension_numbers<[1], [0], [0], [1], [0, 0, 1, 1], [], []>} : vector<2x32xf32>, vector<32x32xf32>, vector<2x32xf32> -> vector<2x32xf32>
    %146 = arith.addf %142, %145 : vector<2x32xf32>
    %147 = arith.negf %146 : vector<2x32xf32>
    %148 = math.exp %147 : vector<2x32xf32>
    %cst_71 = arith.constant 1.000000e+00 : f32
    %149 = vector.broadcast %cst_71 : f32 to vector<2x32xf32>
    %150 = arith.addf %149, %148 : vector<2x32xf32>
    %151 = arith.divf %149, %150 : vector<2x32xf32>
    %cst_72 = arith.constant dense<0.000000e+00> : vector<2x32xf32>
    %152 = tpu.matmul %138, %44, %cst_72 {dimension_numbers = #tpu.dot_dimension_numbers<[1], [0], [0], [1], [0, 0, 1, 1], [], []>} : vector<2x32xf32>, vector<32x32xf32>, vector<2x32xf32> -> vector<2x32xf32>
    %153 = arith.addf %143, %152 : vector<2x32xf32>
    %154 = arith.negf %153 : vector<2x32xf32>
    %155 = math.exp %154 : vector<2x32xf32>
    %cst_73 = arith.constant 1.000000e+00 : f32
    %156 = vector.broadcast %cst_73 : f32 to vector<2x32xf32>
    %157 = arith.addf %156, %155 : vector<2x32xf32>
    %158 = arith.divf %156, %157 : vector<2x32xf32>
    %cst_74 = arith.constant dense<0.000000e+00> : vector<2x32xf32>
    %159 = tpu.matmul %138, %46, %cst_74 {dimension_numbers = #tpu.dot_dimension_numbers<[1], [0], [0], [1], [0, 0, 1, 1], [], []>} : vector<2x32xf32>, vector<32x32xf32>, vector<2x32xf32> -> vector<2x32xf32>
    %160 = arith.addf %159, %50 : vector<2x32xf32>
    %161 = arith.mulf %151, %160 : vector<2x32xf32>
    %162 = arith.addf %144, %161 : vector<2x32xf32>
    %163 = math.tanh %162 : vector<2x32xf32>
    %cst_75 = arith.constant 1.000000e+00 : f32
    %164 = vector.broadcast %cst_75 : f32 to vector<2x32xf32>
    %165 = arith.subf %164, %158 : vector<2x32xf32>
    %166 = arith.mulf %165, %163 : vector<2x32xf32>
    %167 = arith.mulf %158, %138 : vector<2x32xf32>
    %168 = arith.addf %166, %167 : vector<2x32xf32>
    %c3 = arith.constant 3 : index
    %c0_76 = arith.constant 0 : index
    %c0_77 = arith.constant 0 : index
    %169 = vector.load %arg12[%c3, %c0_76, %c0_77] : memref<8x2x32xf32, #tpu.memory_space<vmem>>, vector<1x2x32xf32>
    %170 = vector.shape_cast %169 : vector<1x2x32xf32> to vector<2x32xf32>
    %171 = vector.shape_cast %168 : vector<2x32xf32> to vector<1x2x32xf32>
    tpu.vector_store %arg12[%c3, %c0_76, %c0_77], %171 {strides = array<i32>} : memref<8x2x32xf32, #tpu.memory_space<vmem>>, vector<1x2x32xf32>,
    %172 = vector.extract_strided_slice %15 {offsets = [8, 0], sizes = [2, 32], strides = [1, 1]} : vector<16x32xf32> to vector<2x32xf32>
    %173 = vector.extract_strided_slice %29 {offsets = [8, 0], sizes = [2, 32], strides = [1, 1]} : vector<16x32xf32> to vector<2x32xf32>
    %174 = vector.extract_strided_slice %40 {offsets = [8, 0], sizes = [2, 32], strides = [1, 1]} : vector<16x32xf32> to vector<2x32xf32>
    %cst_78 = arith.constant dense<0.000000e+00> : vector<2x32xf32>
    %175 = tpu.matmul %168, %42, %cst_78 {dimension_numbers = #tpu.dot_dimension_numbers<[1], [0], [0], [1], [0, 0, 1, 1], [], []>} : vector<2x32xf32>, vector<32x32xf32>, vector<2x32xf32> -> vector<2x32xf32>
    %176 = arith.addf %172, %175 : vector<2x32xf32>
    %177 = arith.negf %176 : vector<2x32xf32>
    %178 = math.exp %177 : vector<2x32xf32>
    %cst_79 = arith.constant 1.000000e+00 : f32
    %179 = vector.broadcast %cst_79 : f32 to vector<2x32xf32>
    %180 = arith.addf %179, %178 : vector<2x32xf32>
    %181 = arith.divf %179, %180 : vector<2x32xf32>
    %cst_80 = arith.constant dense<0.000000e+00> : vector<2x32xf32>
    %182 = tpu.matmul %168, %44, %cst_80 {dimension_numbers = #tpu.dot_dimension_numbers<[1], [0], [0], [1], [0, 0, 1, 1], [], []>} : vector<2x32xf32>, vector<32x32xf32>, vector<2x32xf32> -> vector<2x32xf32>
    %183 = arith.addf %173, %182 : vector<2x32xf32>
    %184 = arith.negf %183 : vector<2x32xf32>
    %185 = math.exp %184 : vector<2x32xf32>
    %cst_81 = arith.constant 1.000000e+00 : f32
    %186 = vector.broadcast %cst_81 : f32 to vector<2x32xf32>
    %187 = arith.addf %186, %185 : vector<2x32xf32>
    %188 = arith.divf %186, %187 : vector<2x32xf32>
    %cst_82 = arith.constant dense<0.000000e+00> : vector<2x32xf32>
    %189 = tpu.matmul %168, %46, %cst_82 {dimension_numbers = #tpu.dot_dimension_numbers<[1], [0], [0], [1], [0, 0, 1, 1], [], []>} : vector<2x32xf32>, vector<32x32xf32>, vector<2x32xf32> -> vector<2x32xf32>
    %190 = arith.addf %189, %50 : vector<2x32xf32>
    %191 = arith.mulf %181, %190 : vector<2x32xf32>
    %192 = arith.addf %174, %191 : vector<2x32xf32>
    %193 = math.tanh %192 : vector<2x32xf32>
    %cst_83 = arith.constant 1.000000e+00 : f32
    %194 = vector.broadcast %cst_83 : f32 to vector<2x32xf32>
    %195 = arith.subf %194, %188 : vector<2x32xf32>
    %196 = arith.mulf %195, %193 : vector<2x32xf32>
    %197 = arith.mulf %188, %168 : vector<2x32xf32>
    %198 = arith.addf %196, %197 : vector<2x32xf32>
    %c4 = arith.constant 4 : index
    %c0_84 = arith.constant 0 : index
    %c0_85 = arith.constant 0 : index
    %199 = vector.load %arg12[%c4, %c0_84, %c0_85] : memref<8x2x32xf32, #tpu.memory_space<vmem>>, vector<1x2x32xf32>
    %200 = vector.shape_cast %199 : vector<1x2x32xf32> to vector<2x32xf32>
    %201 = vector.shape_cast %198 : vector<2x32xf32> to vector<1x2x32xf32>
    tpu.vector_store %arg12[%c4, %c0_84, %c0_85], %201 {strides = array<i32>} : memref<8x2x32xf32, #tpu.memory_space<vmem>>, vector<1x2x32xf32>,
    %202 = vector.extract_strided_slice %15 {offsets = [10, 0], sizes = [2, 32], strides = [1, 1]} : vector<16x32xf32> to vector<2x32xf32>
    %203 = vector.extract_strided_slice %29 {offsets = [10, 0], sizes = [2, 32], strides = [1, 1]} : vector<16x32xf32> to vector<2x32xf32>
    %204 = vector.extract_strided_slice %40 {offsets = [10, 0], sizes = [2, 32], strides = [1, 1]} : vector<16x32xf32> to vector<2x32xf32>
    %cst_86 = arith.constant dense<0.000000e+00> : vector<2x32xf32>
    %205 = tpu.matmul %198, %42, %cst_86 {dimension_numbers = #tpu.dot_dimension_numbers<[1], [0], [0], [1], [0, 0, 1, 1], [], []>} : vector<2x32xf32>, vector<32x32xf32>, vector<2x32xf32> -> vector<2x32xf32>
    %206 = arith.addf %202, %205 : vector<2x32xf32>
    %207 = arith.negf %206 : vector<2x32xf32>
    %208 = math.exp %207 : vector<2x32xf32>
    %cst_87 = arith.constant 1.000000e+00 : f32
    %209 = vector.broadcast %cst_87 : f32 to vector<2x32xf32>
    %210 = arith.addf %209, %208 : vector<2x32xf32>
    %211 = arith.divf %209, %210 : vector<2x32xf32>
    %cst_88 = arith.constant dense<0.000000e+00> : vector<2x32xf32>
    %212 = tpu.matmul %198, %44, %cst_88 {dimension_numbers = #tpu.dot_dimension_numbers<[1], [0], [0], [1], [0, 0, 1, 1], [], []>} : vector<2x32xf32>, vector<32x32xf32>, vector<2x32xf32> -> vector<2x32xf32>
    %213 = arith.addf %203, %212 : vector<2x32xf32>
    %214 = arith.negf %213 : vector<2x32xf32>
    %215 = math.exp %214 : vector<2x32xf32>
    %cst_89 = arith.constant 1.000000e+00 : f32
    %216 = vector.broadcast %cst_89 : f32 to vector<2x32xf32>
    %217 = arith.addf %216, %215 : vector<2x32xf32>
    %218 = arith.divf %216, %217 : vector<2x32xf32>
    %cst_90 = arith.constant dense<0.000000e+00> : vector<2x32xf32>
    %219 = tpu.matmul %198, %46, %cst_90 {dimension_numbers = #tpu.dot_dimension_numbers<[1], [0], [0], [1], [0, 0, 1, 1], [], []>} : vector<2x32xf32>, vector<32x32xf32>, vector<2x32xf32> -> vector<2x32xf32>
    %220 = arith.addf %219, %50 : vector<2x32xf32>
    %221 = arith.mulf %211, %220 : vector<2x32xf32>
    %222 = arith.addf %204, %221 : vector<2x32xf32>
    %223 = math.tanh %222 : vector<2x32xf32>
    %cst_91 = arith.constant 1.000000e+00 : f32
    %224 = vector.broadcast %cst_91 : f32 to vector<2x32xf32>
    %225 = arith.subf %224, %218 : vector<2x32xf32>
    %226 = arith.mulf %225, %223 : vector<2x32xf32>
    %227 = arith.mulf %218, %198 : vector<2x32xf32>
    %228 = arith.addf %226, %227 : vector<2x32xf32>
    %c5 = arith.constant 5 : index
    %c0_92 = arith.constant 0 : index
    %c0_93 = arith.constant 0 : index
    %229 = vector.load %arg12[%c5, %c0_92, %c0_93] : memref<8x2x32xf32, #tpu.memory_space<vmem>>, vector<1x2x32xf32>
    %230 = vector.shape_cast %229 : vector<1x2x32xf32> to vector<2x32xf32>
    %231 = vector.shape_cast %228 : vector<2x32xf32> to vector<1x2x32xf32>
    tpu.vector_store %arg12[%c5, %c0_92, %c0_93], %231 {strides = array<i32>} : memref<8x2x32xf32, #tpu.memory_space<vmem>>, vector<1x2x32xf32>,
    %232 = vector.extract_strided_slice %15 {offsets = [12, 0], sizes = [2, 32], strides = [1, 1]} : vector<16x32xf32> to vector<2x32xf32>
    %233 = vector.extract_strided_slice %29 {offsets = [12, 0], sizes = [2, 32], strides = [1, 1]} : vector<16x32xf32> to vector<2x32xf32>
    %234 = vector.extract_strided_slice %40 {offsets = [12, 0], sizes = [2, 32], strides = [1, 1]} : vector<16x32xf32> to vector<2x32xf32>
    %cst_94 = arith.constant dense<0.000000e+00> : vector<2x32xf32>
    %235 = tpu.matmul %228, %42, %cst_94 {dimension_numbers = #tpu.dot_dimension_numbers<[1], [0], [0], [1], [0, 0, 1, 1], [], []>} : vector<2x32xf32>, vector<32x32xf32>, vector<2x32xf32> -> vector<2x32xf32>
    %236 = arith.addf %232, %235 : vector<2x32xf32>
    %237 = arith.negf %236 : vector<2x32xf32>
    %238 = math.exp %237 : vector<2x32xf32>
    %cst_95 = arith.constant 1.000000e+00 : f32
    %239 = vector.broadcast %cst_95 : f32 to vector<2x32xf32>
    %240 = arith.addf %239, %238 : vector<2x32xf32>
    %241 = arith.divf %239, %240 : vector<2x32xf32>
    %cst_96 = arith.constant dense<0.000000e+00> : vector<2x32xf32>
    %242 = tpu.matmul %228, %44, %cst_96 {dimension_numbers = #tpu.dot_dimension_numbers<[1], [0], [0], [1], [0, 0, 1, 1], [], []>} : vector<2x32xf32>, vector<32x32xf32>, vector<2x32xf32> -> vector<2x32xf32>
    %243 = arith.addf %233, %242 : vector<2x32xf32>
    %244 = arith.negf %243 : vector<2x32xf32>
    %245 = math.exp %244 : vector<2x32xf32>
    %cst_97 = arith.constant 1.000000e+00 : f32
    %246 = vector.broadcast %cst_97 : f32 to vector<2x32xf32>
    %247 = arith.addf %246, %245 : vector<2x32xf32>
    %248 = arith.divf %246, %247 : vector<2x32xf32>
    %cst_98 = arith.constant dense<0.000000e+00> : vector<2x32xf32>
    %249 = tpu.matmul %228, %46, %cst_98 {dimension_numbers = #tpu.dot_dimension_numbers<[1], [0], [0], [1], [0, 0, 1, 1], [], []>} : vector<2x32xf32>, vector<32x32xf32>, vector<2x32xf32> -> vector<2x32xf32>
    %250 = arith.addf %249, %50 : vector<2x32xf32>
    %251 = arith.mulf %241, %250 : vector<2x32xf32>
    %252 = arith.addf %234, %251 : vector<2x32xf32>
    %253 = math.tanh %252 : vector<2x32xf32>
    %cst_99 = arith.constant 1.000000e+00 : f32
    %254 = vector.broadcast %cst_99 : f32 to vector<2x32xf32>
    %255 = arith.subf %254, %248 : vector<2x32xf32>
    %256 = arith.mulf %255, %253 : vector<2x32xf32>
    %257 = arith.mulf %248, %228 : vector<2x32xf32>
    %258 = arith.addf %256, %257 : vector<2x32xf32>
    %c6 = arith.constant 6 : index
    %c0_100 = arith.constant 0 : index
    %c0_101 = arith.constant 0 : index
    %259 = vector.load %arg12[%c6, %c0_100, %c0_101] : memref<8x2x32xf32, #tpu.memory_space<vmem>>, vector<1x2x32xf32>
    %260 = vector.shape_cast %259 : vector<1x2x32xf32> to vector<2x32xf32>
    %261 = vector.shape_cast %258 : vector<2x32xf32> to vector<1x2x32xf32>
    tpu.vector_store %arg12[%c6, %c0_100, %c0_101], %261 {strides = array<i32>} : memref<8x2x32xf32, #tpu.memory_space<vmem>>, vector<1x2x32xf32>,
    %262 = vector.extract_strided_slice %15 {offsets = [14, 0], sizes = [2, 32], strides = [1, 1]} : vector<16x32xf32> to vector<2x32xf32>
    %263 = vector.extract_strided_slice %29 {offsets = [14, 0], sizes = [2, 32], strides = [1, 1]} : vector<16x32xf32> to vector<2x32xf32>
    %264 = vector.extract_strided_slice %40 {offsets = [14, 0], sizes = [2, 32], strides = [1, 1]} : vector<16x32xf32> to vector<2x32xf32>
    %cst_102 = arith.constant dense<0.000000e+00> : vector<2x32xf32>
    %265 = tpu.matmul %258, %42, %cst_102 {dimension_numbers = #tpu.dot_dimension_numbers<[1], [0], [0], [1], [0, 0, 1, 1], [], []>} : vector<2x32xf32>, vector<32x32xf32>, vector<2x32xf32> -> vector<2x32xf32>
    %266 = arith.addf %262, %265 : vector<2x32xf32>
    %267 = arith.negf %266 : vector<2x32xf32>
    %268 = math.exp %267 : vector<2x32xf32>
    %cst_103 = arith.constant 1.000000e+00 : f32
    %269 = vector.broadcast %cst_103 : f32 to vector<2x32xf32>
    %270 = arith.addf %269, %268 : vector<2x32xf32>
    %271 = arith.divf %269, %270 : vector<2x32xf32>
    %cst_104 = arith.constant dense<0.000000e+00> : vector<2x32xf32>
    %272 = tpu.matmul %258, %44, %cst_104 {dimension_numbers = #tpu.dot_dimension_numbers<[1], [0], [0], [1], [0, 0, 1, 1], [], []>} : vector<2x32xf32>, vector<32x32xf32>, vector<2x32xf32> -> vector<2x32xf32>
    %273 = arith.addf %263, %272 : vector<2x32xf32>
    %274 = arith.negf %273 : vector<2x32xf32>
    %275 = math.exp %274 : vector<2x32xf32>
    %cst_105 = arith.constant 1.000000e+00 : f32
    %276 = vector.broadcast %cst_105 : f32 to vector<2x32xf32>
    %277 = arith.addf %276, %275 : vector<2x32xf32>
    %278 = arith.divf %276, %277 : vector<2x32xf32>
    %cst_106 = arith.constant dense<0.000000e+00> : vector<2x32xf32>
    %279 = tpu.matmul %258, %46, %cst_106 {dimension_numbers = #tpu.dot_dimension_numbers<[1], [0], [0], [1], [0, 0, 1, 1], [], []>} : vector<2x32xf32>, vector<32x32xf32>, vector<2x32xf32> -> vector<2x32xf32>
    %280 = arith.addf %279, %50 : vector<2x32xf32>
    %281 = arith.mulf %271, %280 : vector<2x32xf32>
    %282 = arith.addf %264, %281 : vector<2x32xf32>
    %283 = math.tanh %282 : vector<2x32xf32>
    %cst_107 = arith.constant 1.000000e+00 : f32
    %284 = vector.broadcast %cst_107 : f32 to vector<2x32xf32>
    %285 = arith.subf %284, %278 : vector<2x32xf32>
    %286 = arith.mulf %285, %283 : vector<2x32xf32>
    %287 = arith.mulf %278, %258 : vector<2x32xf32>
    %288 = arith.addf %286, %287 : vector<2x32xf32>
    %c7 = arith.constant 7 : index
    %c0_108 = arith.constant 0 : index
    %c0_109 = arith.constant 0 : index
    %289 = vector.load %arg12[%c7, %c0_108, %c0_109] : memref<8x2x32xf32, #tpu.memory_space<vmem>>, vector<1x2x32xf32>
    %290 = vector.shape_cast %289 : vector<1x2x32xf32> to vector<2x32xf32>
    %291 = vector.shape_cast %288 : vector<2x32xf32> to vector<1x2x32xf32>
    tpu.vector_store %arg12[%c7, %c0_108, %c0_109], %291 {strides = array<i32>} : memref<8x2x32xf32, #tpu.memory_space<vmem>>, vector<1x2x32xf32>,
    %c0_110 = arith.constant 0 : index
    %c0_111 = arith.constant 0 : index
    %292 = vector.load %arg3[%c0_110, %c0_111] : memref<2x24xf32, #tpu.memory_space<vmem>>, vector<2x24xf32>
    %c0_112 = arith.constant 0 : index
    %c0_113 = arith.constant 0 : index
    %293 = vector.load %arg8[%c0_112, %c0_113] : memref<24x32xf32, #tpu.memory_space<vmem>>, vector<24x32xf32>
    %cst_114 = arith.constant dense<0.000000e+00> : vector<2x32xf32>
    %294 = tpu.matmul %292, %293, %cst_114 {dimension_numbers = #tpu.dot_dimension_numbers<[1], [0], [0], [1], [0, 0, 1, 1], [], []>} : vector<2x24xf32>, vector<24x32xf32>, vector<2x32xf32> -> vector<2x32xf32>
    %c0_115 = arith.constant 0 : index
    %c0_116 = arith.constant 0 : index
    %295 = vector.load %arg9[%c0_115, %c0_116] : memref<1x32xf32, #tpu.memory_space<vmem>>, vector<1x32xf32>
    %296 = vector.broadcast %295 : vector<1x32xf32> to vector<2x32xf32>
    %297 = arith.addf %294, %296 : vector<2x32xf32>
    %298 = math.tanh %297 : vector<2x32xf32>
    %c0_117 = arith.constant 0 : index
    %c0_118 = arith.constant 0 : index
    %299 = vector.load %arg10[%c0_117, %c0_118] : memref<64x32xf32, #tpu.memory_space<vmem>>, vector<64x32xf32>
    %300 = vector.extract_strided_slice %299 {offsets = [0, 0], sizes = [32, 32], strides = [1, 1]} : vector<64x32xf32> to vector<32x32xf32>
    %cst_119 = arith.constant dense<0.000000e+00> : vector<2x32xf32>
    %301 = tpu.matmul %288, %300, %cst_119 {dimension_numbers = #tpu.dot_dimension_numbers<[1], [0], [0], [1], [0, 0, 1, 1], [], []>} : vector<2x32xf32>, vector<32x32xf32>, vector<2x32xf32> -> vector<2x32xf32>
    %302 = vector.extract_strided_slice %299 {offsets = [32, 0], sizes = [32, 32], strides = [1, 1]} : vector<64x32xf32> to vector<32x32xf32>
    %cst_120 = arith.constant dense<0.000000e+00> : vector<2x32xf32>
    %303 = tpu.matmul %298, %302, %cst_120 {dimension_numbers = #tpu.dot_dimension_numbers<[1], [0], [0], [1], [0, 0, 1, 1], [], []>} : vector<2x32xf32>, vector<32x32xf32>, vector<2x32xf32> -> vector<2x32xf32>
    %304 = arith.addf %301, %303 : vector<2x32xf32>
    %c0_121 = arith.constant 0 : index
    %c0_122 = arith.constant 0 : index
    %305 = vector.load %arg11[%c0_121, %c0_122] : memref<1x32xf32, #tpu.memory_space<vmem>>, vector<1x32xf32>
    %306 = vector.broadcast %305 : vector<1x32xf32> to vector<2x32xf32>
    %307 = arith.addf %304, %306 : vector<2x32xf32>
    %308 = math.tanh %307 : vector<2x32xf32>
    %c0_123 = arith.constant 0 : index
    %c0_124 = arith.constant 0 : index
    %309 = vector.load %arg13[%c0_123, %c0_124] : memref<2x32xf32, #tpu.memory_space<vmem>>, vector<2x32xf32>
    tpu.vector_store %arg13[%c0_123, %c0_124], %308 {strides = array<i32>} : memref<2x32xf32, #tpu.memory_space<vmem>>, vector<2x32xf32>,
    return
  }
  func.func @transform_0(%arg0: i32) -> (i32, i32) {
    %c0_i32 = arith.constant 0 : i32
    %c0_i32_0 = arith.constant 0 : i32
    %c0_i32_1 = arith.constant 0 : i32
    return %c0_i32, %c0_i32_0 : i32, i32
  }
  func.func @transform_1(%arg0: i32) -> (i32, i32) {
    %c0_i32 = arith.constant 0 : i32
    %c0_i32_0 = arith.constant 0 : i32
    %c0_i32_1 = arith.constant 0 : i32
    return %c0_i32, %c0_i32_0 : i32, i32
  }
  func.func @transform_2(%arg0: i32) -> (i32, i32) {
    %c0_i32 = arith.constant 0 : i32
    %c0_i32_0 = arith.constant 0 : i32
    %c0_i32_1 = arith.constant 0 : i32
    return %c0_i32, %c0_i32_0 : i32, i32
  }
  func.func @transform_3(%arg0: i32) -> (i32, i32, i32) {
    %c0_i32 = arith.constant 0 : i32
    %c0_i32_0 = arith.constant 0 : i32
    %c0_i32_1 = arith.constant 0 : i32
    %c0_i32_2 = arith.constant 0 : i32
    return %c0_i32, %c0_i32_0, %c0_i32_1 : i32, i32, i32
  }
  func.func @transform_4(%arg0: i32) -> (i32, i32, i32) {
    %c0_i32 = arith.constant 0 : i32
    %c0_i32_0 = arith.constant 0 : i32
    %c0_i32_1 = arith.constant 0 : i32
    %c0_i32_2 = arith.constant 0 : i32
    return %c0_i32, %c0_i32_0, %c0_i32_1 : i32, i32, i32
  }
  func.func @transform_5(%arg0: i32) -> (i32, i32, i32) {
    %c0_i32 = arith.constant 0 : i32
    %c0_i32_0 = arith.constant 0 : i32
    %c0_i32_1 = arith.constant 0 : i32
    %c0_i32_2 = arith.constant 0 : i32
    return %c0_i32, %c0_i32_0, %c0_i32_1 : i32, i32, i32
  }
  func.func @transform_6(%arg0: i32) -> (i32, i32, i32) {
    %c0_i32 = arith.constant 0 : i32
    %c0_i32_0 = arith.constant 0 : i32
    %c0_i32_1 = arith.constant 0 : i32
    %c0_i32_2 = arith.constant 0 : i32
    return %c0_i32, %c0_i32_0, %c0_i32_1 : i32, i32, i32
  }
  func.func @transform_7(%arg0: i32) -> (i32, i32) {
    %c0_i32 = arith.constant 0 : i32
    %c0_i32_0 = arith.constant 0 : i32
    %c0_i32_1 = arith.constant 0 : i32
    return %c0_i32, %c0_i32_0 : i32, i32
  }
  func.func @transform_8(%arg0: i32) -> (i32, i32) {
    %c0_i32 = arith.constant 0 : i32
    %c0_i32_0 = arith.constant 0 : i32
    %c0_i32_1 = arith.constant 0 : i32
    return %c0_i32, %c0_i32_0 : i32, i32
  }
  func.func @transform_9(%arg0: i32) -> (i32, i32) {
    %c0_i32 = arith.constant 0 : i32
    %c0_i32_0 = arith.constant 0 : i32
    %c0_i32_1 = arith.constant 0 : i32
    return %c0_i32, %c0_i32_0 : i32, i32
  }
  func.func @transform_10(%arg0: i32) -> (i32, i32) {
    %c0_i32 = arith.constant 0 : i32
    %c0_i32_0 = arith.constant 0 : i32
    %c0_i32_1 = arith.constant 0 : i32
    return %c0_i32, %c0_i32_0 : i32, i32
  }
  func.func @transform_11(%arg0: i32) -> (i32, i32, i32) {
    %c0_i32 = arith.constant 0 : i32
    %c0_i32_0 = arith.constant 0 : i32
    %c0_i32_1 = arith.constant 0 : i32
    %c0_i32_2 = arith.constant 0 : i32
    return %c0_i32, %c0_i32_0, %c0_i32_1 : i32, i32, i32
  }
  func.func @transform_12(%arg0: i32) -> (i32, i32) {
    %c0_i32 = arith.constant 0 : i32
    %c0_i32_0 = arith.constant 0 : i32
    %c0_i32_1 = arith.constant 0 : i32
    return %c0_i32, %c0_i32_0 : i32, i32
  }
}

</mosaic_0001>

<llo_original>
// kernel: tpu_custom_call.1
$region0: #{tpu_custom_call.1}
  #allocation0 [shape = 'u32[]', space=smem, size = 0x4, offset = 0x4, fixed_abs, tag = 'smem constant byte address 0x4 - core index']
  #allocation1 [shape = 'u32[144,128]{1,0:T(1,128)}', space=vmem, size = 0x12000, scoped, tag = 'internal scratch']
  %s0 = inlined_call_operand.hbm [shape: f32[16,16], index: 0, kind: input, shape index: {}]
  %s1 = inlined_call_operand.hbm [shape: f32[16,16], index: 1, kind: input, shape index: {}]
  %s2 = inlined_call_operand.hbm [shape: f32[2,24], index: 2, kind: input, shape index: {}]
  %s3 = inlined_call_operand.vmem [shape: f32[3,32,32], index: 3, kind: input, shape index: {}]
  %s4 = inlined_call_operand.hbm [shape: f32[3,32,32], index: 4, kind: input, shape index: {}]
  %s5 = inlined_call_operand.vmem [shape: f32[3,1,32], index: 5, kind: input, shape index: {}]
  %s6 = inlined_call_operand.vmem [shape: f32[3,1,32], index: 6, kind: input, shape index: {}]
  %s7 = inlined_call_operand.hbm [shape: f32[24,32], index: 7, kind: input, shape index: {}]
  %s8 = inlined_call_operand.vmem [shape: f32[1,32], index: 8, kind: input, shape index: {}]
  %s9 = inlined_call_operand.vmem [shape: f32[64,32], index: 9, kind: input, shape index: {}]
  %s10 = inlined_call_operand.vmem [shape: f32[1,32], index: 10, kind: input, shape index: {}]
  %s11 = inlined_call_operand.hbm [shape: f32[8,2,32], index: 11, kind: output, shape index: {0}]
  %s12 = inlined_call_operand.hbm [shape: f32[2,32], index: 12, kind: output, shape index: {1}]
  %13 = xla_tuple %s11, %s12
  %s14 = sld [smem:[#allocation0]]
  $region82: #{tpu_custom_call.1} parent=0
    _
  %s16 = ssub.s32 1, %s14
  %s17 = scalar_select 0, %s16, %s14
  $region1: #{tpu_custom_call.1} parent=0
    #allocation2 [shape = 'u8[8192]{0}', space=vmem, size = 0x2000, scoped, tag = 'input window, operand 0, single buffered']
    #allocation3 [shape = 's32[1]{0}', space=sflag, size = 0x4, scoped, tag = 'scoped memory for tpu_custom_call.1']
    #allocation4 [shape = 's32[1]{0}', space=sflag, size = 0x4, scoped, tag = 'scoped memory for tpu_custom_call.1']
    #allocation5 [shape = 'u8[8192]{0}', space=vmem, size = 0x2000, scoped, tag = 'input window, operand 1, single buffered']
    #allocation6 [shape = 's32[1]{0}', space=sflag, size = 0x4, scoped, tag = 'scoped memory for tpu_custom_call.1']
    #allocation7 [shape = 'u8[1024]{0}', space=vmem, size = 0x400, scoped, tag = 'input window, operand 2, single buffered']
    #allocation8 [shape = 'u8[49152]{0}', space=vmem, size = 0xc000, scoped, tag = 'input window, operand 4, single buffered']
    #allocation9 [shape = 's32[1]{0}', space=sflag, size = 0x4, scoped, tag = 'scoped memory for tpu_custom_call.1']
    #allocation10 [shape = 'u8[12288]{0}', space=vmem, size = 0x3000, scoped, tag = 'input window, operand 7, single buffered']
    #allocation11 [shape = 'u8[8192]{0}', space=vmem, size = 0x2000, scoped, tag = 'output window, operand 0, single buffered']
    #allocation12 [shape = 'u8[1024]{0}', space=vmem, size = 0x400, scoped, tag = 'output window, operand 1, single buffered']
    #allocation13 [shape = 's32[1]{0}', space=sflag, size = 0x4, scoped, tag = 'scoped memory for tpu_custom_call.1']
    %18 = vsyncpa [#allocation3], 0
    %19 = vsyncpa [#allocation6], 0
    %20 = vsyncpa [#allocation9], 0
    %21 = vsyncpa [#allocation4], 0
    %22 = vsyncpa [#allocation13], 0
    // Predicated region
    $region2: #{tpu_custom_call.1} parent=1 // pred_check
      _
    $region3: #{tpu_custom_call.1} parent=1 // pred_check_branch
      %24 = sbr.rel (0) target = $region5
    $region4: #{tpu_custom_call.1} parent=1 // pred_region
      %s26 = ssub.s32 256, 256
      %27 = vsyncadd [#allocation3], %s26
      %s28 = sshll.u32 [#allocation2], 4
      %s29 = int_to_ptr.vmem [resolvable:$true] %s28
      %34 = dma.hbm_to_vmem [thread:$0]  %s0, 256, %s29, [#allocation3], 128, 128, 8
    $region5: #{tpu_custom_call.1} parent=1 // pred_fallthru
      _
    // Predicated region
    $region6: #{tpu_custom_call.1} parent=1 // pred_check
      _
    $region7: #{tpu_custom_call.1} parent=1 // pred_check_branch
      %36 = sbr.rel (0) target = $region9
    $region8: #{tpu_custom_call.1} parent=1 // pred_region
      %s38 = ssub.s32 256, 256
      %39 = vsyncadd [#allocation6], %s38
      %s40 = sshll.u32 [#allocation5], 4
      %s41 = int_to_ptr.vmem [resolvable:$true] %s40
      %46 = dma.hbm_to_vmem [thread:$0]  %s1, 256, %s41, [#allocation6], 128, 128, 8
    $region9: #{tpu_custom_call.1} parent=1 // pred_fallthru
      _
    // Predicated region
    $region10: #{tpu_custom_call.1} parent=1 // pred_check
      _
    $region11: #{tpu_custom_call.1} parent=1 // pred_check_branch
      %48 = sbr.rel (0) target = $region13
    $region12: #{tpu_custom_call.1} parent=1 // pred_region
      %s50 = ssub.s32 32, 32
      %51 = vsyncadd [#allocation6], %s50
      %s53 = sshll.u32 [#allocation7], 4
      %s54 = int_to_ptr.vmem [resolvable:$true] %s53
      %56 = dma.hbm_to_vmem [thread:$0]  %s2, 32, %s54, [#allocation6]
    $region13: #{tpu_custom_call.1} parent=1 // pred_fallthru
      _
    // Predicated region
    $region14: #{tpu_custom_call.1} parent=1 // pred_check
      _
    $region15: #{tpu_custom_call.1} parent=1 // pred_check_branch
      %58 = sbr.rel (0) target = $region17
    $region16: #{tpu_custom_call.1} parent=1 // pred_region
      _
    $region17: #{tpu_custom_call.1} parent=1 // pred_fallthru
      _
    // Predicated region
    $region18: #{tpu_custom_call.1} parent=1 // pred_check
      _
    $region19: #{tpu_custom_call.1} parent=1 // pred_check_branch
      %60 = sbr.rel (0) target = $region21
    $region20: #{tpu_custom_call.1} parent=1 // pred_region
      %s62 = ssub.s32 1536, 1536
      %63 = vsyncadd [#allocation9], %s62
      %s64 = sshll.u32 [#allocation8], 4
      %s65 = int_to_ptr.vmem [resolvable:$true] %s64
      %70 = dma.hbm_to_vmem [thread:$0]  %s4, 1536, %s65, [#allocation9], 128, 128, 8
    $region21: #{tpu_custom_call.1} parent=1 // pred_fallthru
      _
    // Predicated region
    $region22: #{tpu_custom_call.1} parent=1 // pred_check
      _
    $region23: #{tpu_custom_call.1} parent=1 // pred_check_branch
      %72 = sbr.rel (0) target = $region25
    $region24: #{tpu_custom_call.1} parent=1 // pred_region
      _
    $region25: #{tpu_custom_call.1} parent=1 // pred_fallthru
      _
    // Predicated region
    $region26: #{tpu_custom_call.1} parent=1 // pred_check
      _
    $region27: #{tpu_custom_call.1} parent=1 // pred_check_branch
      %74 = sbr.rel (0) target = $region29
    $region28: #{tpu_custom_call.1} parent=1 // pred_region
      _
    $region29: #{tpu_custom_call.1} parent=1 // pred_fallthru
      _
    // Predicated region
    $region30: #{tpu_custom_call.1} parent=1 // pred_check
      _
    $region31: #{tpu_custom_call.1} parent=1 // pred_check_branch
      %76 = sbr.rel (0) target = $region33
    $region32: #{tpu_custom_call.1} parent=1 // pred_region
      %s78 = ssub.s32 384, 384
      %79 = vsyncadd [#allocation9], %s78
      %s80 = sshll.u32 [#allocation10], 4
      %s81 = int_to_ptr.vmem [resolvable:$true] %s80
      %86 = dma.hbm_to_vmem [thread:$0]  %s7, 384, %s81, [#allocation9], 128, 128, 8
    $region33: #{tpu_custom_call.1} parent=1 // pred_fallthru
      _
    // Predicated region
    $region34: #{tpu_custom_call.1} parent=1 // pred_check
      _
    $region35: #{tpu_custom_call.1} parent=1 // pred_check_branch
      %88 = sbr.rel (0) target = $region37
    $region36: #{tpu_custom_call.1} parent=1 // pred_region
      _
    $region37: #{tpu_custom_call.1} parent=1 // pred_fallthru
      _
    // Predicated region
    $region38: #{tpu_custom_call.1} parent=1 // pred_check
      _
    $region39: #{tpu_custom_call.1} parent=1 // pred_check_branch
      %90 = sbr.rel (0) target = $region41
    $region40: #{tpu_custom_call.1} parent=1 // pred_region
      _
    $region41: #{tpu_custom_call.1} parent=1 // pred_fallthru
      _
    // Predicated region
    $region42: #{tpu_custom_call.1} parent=1 // pred_check
      _
    $region43: #{tpu_custom_call.1} parent=1 // pred_check_branch
      %92 = sbr.rel (0) target = $region45
    $region44: #{tpu_custom_call.1} parent=1 // pred_region
      _
    $region45: #{tpu_custom_call.1} parent=1 // pred_fallthru
      _
    // Predicated region
    $region46: #{tpu_custom_call.1} parent=1 // pred_check
      _
    $region47: #{tpu_custom_call.1} parent=1 // pred_check_branch
      %94 = sbr.rel (0) target = $region49
    $region48: #{tpu_custom_call.1} parent=1 // pred_region
      %95 = dma.done [#allocation3], 256
    $region49: #{tpu_custom_call.1} parent=1 // pred_fallthru
      _
    // Predicated region
    $region50: #{tpu_custom_call.1} parent=1 // pred_check
      _
    $region51: #{tpu_custom_call.1} parent=1 // pred_check_branch
      %97 = sbr.rel (0) target = $region53
    $region52: #{tpu_custom_call.1} parent=1 // pred_region
      %98 = dma.done [#allocation6], 256
    $region53: #{tpu_custom_call.1} parent=1 // pred_fallthru
      _
    // Predicated region
    $region54: #{tpu_custom_call.1} parent=1 // pred_check
      _
    $region55: #{tpu_custom_call.1} parent=1 // pred_check_branch
      %100 = sbr.rel (0) target = $region57
    $region56: #{tpu_custom_call.1} parent=1 // pred_region
      %101 = dma.done [#allocation6], 32
    $region57: #{tpu_custom_call.1} parent=1 // pred_fallthru
      _
    // Predicated region
    $region58: #{tpu_custom_call.1} parent=1 // pred_check
      _
    $region59: #{tpu_custom_call.1} parent=1 // pred_check_branch
      %103 = sbr.rel (0) target = $region61
    $region60: #{tpu_custom_call.1} parent=1 // pred_region
      %104 = dma.done [#allocation9], 1536
    $region61: #{tpu_custom_call.1} parent=1 // pred_fallthru
      _
    // Predicated region
    $region62: #{tpu_custom_call.1} parent=1 // pred_check
      _
    $region63: #{tpu_custom_call.1} parent=1 // pred_check_branch
      %106 = sbr.rel (0) target = $region65
    $region64: #{tpu_custom_call.1} parent=1 // pred_region
      %107 = dma.done [#allocation9], 384
    $region65: #{tpu_custom_call.1} parent=1 // pred_fallthru
      _
    %v108 = vld [vmem:[#allocation2] sm:$0xff]
    %v109 = vld [vmem:[#allocation2 + $0x8] sm:$0xff]
    %v110 = vld [vmem:[#allocation5] sm:$0xff]
    %v111 = vld [vmem:[#allocation5 + $0x8] sm:$0xff]
    %v112 = vld [vmem:[%s5] sm:$0x1]
    %v113 = vld [vmem:[%s6] sm:$0x1]
    %v114 = vadd.f32 %v112, %v113
    %v115 = vld [vmem:[%s3] sm:$0xff]
    %v116 = vld [vmem:[%s3 + $0x8] sm:$0xff]
    %v117 = vld [vmem:[%s3 + $0x10] sm:$0xff]
    %v118 = vld [vmem:[%s3 + $0x18] sm:$0xff]
    %vm119 = vcmask 130048
    %v121 = vsel %vm119, %v110, 0
    %v124 = vsel %vm119, %v111, 0
    %126 = vmatprep.subr.mxu0 0.0
    %127 = vmatpush1.msra.mxu0 0.0
    %128 = vmatprep.subr.mxu0 0.0
    %129 = vmatpush1.msra.mxu0 0.0
    %130 = vmatprep.subr.mxu0 0.0
    %131 = vmatpush1.msra.mxu0 0.0
    %132 = vmatprep.subr.mxu0 0.0
    %133 = vmatpush1.msra.mxu0 0.0
    %134 = vmatprep.subr.mxu0 0.0
    %135 = vmatpush1.msra.mxu0 0.0
    %136 = vmatprep.subr.mxu0 0.0
    %137 = vmatpush1.msra.mxu0 0.0
    %138 = vmatprep.subr.mxu0 0.0
    %139 = vmatpush1.msra.mxu0 0.0
    %140 = vmatprep.subr.mxu0 0.0
    %141 = vmatpush1.msra.mxu0 0.0
    %142 = vmatprep.subr.mxu0 0.0
    %143 = vmatpush1.msra.mxu0 0.0
    %144 = vmatprep.subr.mxu0 0.0
    %145 = vmatpush1.msra.mxu0 0.0
    %146 = vmatprep.subr.mxu0 0.0
    %147 = vmatpush1.msra.mxu0 0.0
    %148 = vmatprep.subr.mxu0 0.0
    %149 = vmatpush1.msra.mxu0 0.0
    %150 = vmatprep.subr.mxu0 0.0
    %151 = vmatpush1.msra.mxu0 0.0
    %152 = vmatprep.subr.mxu0 0.0
    %153 = vmatpush1.msra.mxu0 0.0
    %154 = vmatprep.subr.mxu0 0.0
    %155 = vmatpush1.msra.mxu0 %v118
    %156 = vmatprep.subr.mxu0 0.0
    %157 = vmatpush1.msra.mxu0 %v117
    %158 = vmatprep.subr.mxu0 0.0
    %159 = vmatpush2.msra.mxu0 0.0
    %160 = vmatprep.subr.mxu0 0.0
    %161 = vmatpush2.msra.mxu0 0.0
    %162 = vmatprep.subr.mxu0 0.0
    %163 = vmatpush2.msra.mxu0 0.0
    %164 = vmatprep.subr.mxu0 0.0
    %165 = vmatpush2.msra.mxu0 0.0
    %166 = vmatprep.subr.mxu0 0.0
    %167 = vmatpush2.msra.mxu0 0.0
    %168 = vmatprep.subr.mxu0 0.0
    %169 = vmatpush2.msra.mxu0 0.0
    %170 = vmatprep.subr.mxu0 0.0
    %171 = vmatpush2.msra.mxu0 0.0
    %172 = vmatprep.subr.mxu0 0.0
    %173 = vmatpush2.msra.mxu0 0.0
    %174 = vmatprep.subr.mxu0 0.0
    %175 = vmatpush2.msra.mxu0 0.0
    %176 = vmatprep.subr.mxu0 0.0
    %177 = vmatpush2.msra.mxu0 0.0
    %178 = vmatprep.subr.mxu0 0.0
    %179 = vmatpush2.msra.mxu0 0.0
    %180 = vmatprep.subr.mxu0 0.0
    %181 = vmatpush2.msra.mxu0 0.0
    %182 = vmatprep.subr.mxu0 0.0
    %183 = vmatpush2.msra.mxu0 0.0
    %184 = vmatprep.subr.mxu0 0.0
    %185 = vmatpush2.msra.mxu0 0.0
    %186 = vmatprep.subr.mxu0 0.0
    %187 = vmatpush2.msra.mxu0 0.0
    %188 = vmatprep.subr.mxu0 0.0
    %189 = vmatpush2.msra.mxu0 0.0
    %190 = vmatprep.mubr.f32.mxu0 0.0
    %191 = vmatmul.mubr.f32.gmra.mxu0 %v121
    %v192 = vpop.f32.mrf.mxu0
    %v193 = vadd.f32 0.0, %v192
    %v194 = vpop.f32.mrf.mxu0
    %195 = vmatprep.mubr.f32.mxu0 0.0
    %196 = vmatmul.mubr.f32.gmra.mxu0 %v124
    %v197 = vpop.f32.mrf.mxu0
    %v198 = vadd.f32 0.0, %v197
    %v199 = vpop.f32.mrf.mxu0
    %200 = vdwg.mxu0
    %v202 = vsel %vm119, %v108, 0
    %v205 = vsel %vm119, %v109, 0
    %207 = vmatprep.subr.mxu0 0.0
    %208 = vmatpush1.msra.mxu0 0.0
    %209 = vmatprep.subr.mxu0 0.0
    %210 = vmatpush1.msra.mxu0 0.0
    %211 = vmatprep.subr.mxu0 0.0
    %212 = vmatpush1.msra.mxu0 0.0
    %213 = vmatprep.subr.mxu0 0.0
    %214 = vmatpush1.msra.mxu0 0.0
    %215 = vmatprep.subr.mxu0 0.0
    %216 = vmatpush1.msra.mxu0 0.0
    %217 = vmatprep.subr.mxu0 0.0
    %218 = vmatpush1.msra.mxu0 0.0
    %219 = vmatprep.subr.mxu0 0.0
    %220 = vmatpush1.msra.mxu0 0.0
    %221 = vmatprep.subr.mxu0 0.0
    %222 = vmatpush1.msra.mxu0 0.0
    %223 = vmatprep.subr.mxu0 0.0
    %224 = vmatpush1.msra.mxu0 0.0
    %225 = vmatprep.subr.mxu0 0.0
    %226 = vmatpush1.msra.mxu0 0.0
    %227 = vmatprep.subr.mxu0 0.0
    %228 = vmatpush1.msra.mxu0 0.0
    %229 = vmatprep.subr.mxu0 0.0
    %230 = vmatpush1.msra.mxu0 0.0
    %231 = vmatprep.subr.mxu0 0.0
    %232 = vmatpush1.msra.mxu0 0.0
    %233 = vmatprep.subr.mxu0 0.0
    %234 = vmatpush1.msra.mxu0 0.0
    %235 = vmatprep.subr.mxu0 0.0
    %236 = vmatpush1.msra.mxu0 %v116
    %237 = vmatprep.subr.mxu0 0.0
    %238 = vmatpush1.msra.mxu0 %v115
    %239 = vmatprep.subr.mxu0 0.0
    %240 = vmatpush2.msra.mxu0 0.0
    %241 = vmatprep.subr.mxu0 0.0
    %242 = vmatpush2.msra.mxu0 0.0
    %243 = vmatprep.subr.mxu0 0.0
    %244 = vmatpush2.msra.mxu0 0.0
    %245 = vmatprep.subr.mxu0 0.0
    %246 = vmatpush2.msra.mxu0 0.0
    %247 = vmatprep.subr.mxu0 0.0
    %248 = vmatpush2.msra.mxu0 0.0
    %249 = vmatprep.subr.mxu0 0.0
    %250 = vmatpush2.msra.mxu0 0.0
    %251 = vmatprep.subr.mxu0 0.0
    %252 = vmatpush2.msra.mxu0 0.0
    %253 = vmatprep.subr.mxu0 0.0
    %254 = vmatpush2.msra.mxu0 0.0
    %255 = vmatprep.subr.mxu0 0.0
    %256 = vmatpush2.msra.mxu0 0.0
    %257 = vmatprep.subr.mxu0 0.0
    %258 = vmatpush2.msra.mxu0 0.0
    %259 = vmatprep.subr.mxu0 0.0
    %260 = vmatpush2.msra.mxu0 0.0
    %261 = vmatprep.subr.mxu0 0.0
    %262 = vmatpush2.msra.mxu0 0.0
    %263 = vmatprep.subr.mxu0 0.0
    %264 = vmatpush2.msra.mxu0 0.0
    %265 = vmatprep.subr.mxu0 0.0
    %266 = vmatpush2.msra.mxu0 0.0
    %267 = vmatprep.subr.mxu0 0.0
    %268 = vmatpush2.msra.mxu0 0.0
    %269 = vmatprep.subr.mxu0 0.0
    %270 = vmatpush2.msra.mxu0 0.0
    %271 = vmatprep.mubr.f32.mxu0 0.0
    %272 = vmatmul.mubr.f32.gmra.mxu0 %v202
    %v273 = vpop.f32.mrf.mxu0
    %v274 = vadd.f32 %v193, %v273
    %v275 = vpop.f32.mrf.mxu0
    %276 = vmatprep.mubr.f32.mxu0 0.0
    %277 = vmatmul.mubr.f32.gmra.mxu0 %v205
    %v278 = vpop.f32.mrf.mxu0
    %v279 = vadd.f32 %v198, %v278
    %v280 = vpop.f32.mrf.mxu0
    %281 = vdwg.mxu0
    %v283 = vlaneseq
    %v284 = vshrl.u32 %v283, 7
    %v285 = vsub.s32 0, %v284
    %v286 = vrot.slane %v114, %v285
    %v288 = vadd.f32 %v274, %v286
    %v289 = vadd.f32 %v279, %v286
    %s290 = scalar_lea.vmem %s5, 1
    %v291 = vld [vmem:[%s290] sm:$0x1]
    %s292 = scalar_lea.vmem %s6, 1
    %v293 = vld [vmem:[%s292] sm:$0x1]
    %v294 = vadd.f32 %v291, %v293
    %s295 = scalar_lea.vmem %s3, 32
    %v296 = vld [vmem:[%s295] sm:$0xff]
    %v297 = vld [vmem:[%s295 + $0x8] sm:$0xff]
    %v298 = vld [vmem:[%s295 + $0x10] sm:$0xff]
    %v299 = vld [vmem:[%s295 + $0x18] sm:$0xff]
    %300 = vmatprep.subr.mxu0 0.0
    %301 = vmatpush1.msra.mxu0 0.0
    %302 = vmatprep.subr.mxu0 0.0
    %303 = vmatpush1.msra.mxu0 0.0
    %304 = vmatprep.subr.mxu0 0.0
    %305 = vmatpush1.msra.mxu0 0.0
    %306 = vmatprep.subr.mxu0 0.0
    %307 = vmatpush1.msra.mxu0 0.0
    %308 = vmatprep.subr.mxu0 0.0
    %309 = vmatpush1.msra.mxu0 0.0
    %310 = vmatprep.subr.mxu0 0.0
    %311 = vmatpush1.msra.mxu0 0.0
    %312 = vmatprep.subr.mxu0 0.0
    %313 = vmatpush1.msra.mxu0 0.0
    %314 = vmatprep.subr.mxu0 0.0
    %315 = vmatpush1.msra.mxu0 0.0
    %316 = vmatprep.subr.mxu0 0.0
    %317 = vmatpush1.msra.mxu0 0.0
    %318 = vmatprep.subr.mxu0 0.0
    %319 = vmatpush1.msra.mxu0 0.0
    %320 = vmatprep.subr.mxu0 0.0
    %321 = vmatpush1.msra.mxu0 0.0
    %322 = vmatprep.subr.mxu0 0.0
    %323 = vmatpush1.msra.mxu0 0.0
    %324 = vmatprep.subr.mxu0 0.0
    %325 = vmatpush1.msra.mxu0 0.0
    %326 = vmatprep.subr.mxu0 0.0
    %327 = vmatpush1.msra.mxu0 0.0
    %328 = vmatprep.subr.mxu0 0.0
    %329 = vmatpush1.msra.mxu0 %v299
    %330 = vmatprep.subr.mxu0 0.0
    %331 = vmatpush1.msra.mxu0 %v298
    %332 = vmatprep.subr.mxu0 0.0
    %333 = vmatpush2.msra.mxu0 0.0
    %334 = vmatprep.subr.mxu0 0.0
    %335 = vmatpush2.msra.mxu0 0.0
    %336 = vmatprep.subr.mxu0 0.0
    %337 = vmatpush2.msra.mxu0 0.0
    %338 = vmatprep.subr.mxu0 0.0
    %339 = vmatpush2.msra.mxu0 0.0
    %340 = vmatprep.subr.mxu0 0.0
    %341 = vmatpush2.msra.mxu0 0.0
    %342 = vmatprep.subr.mxu0 0.0
    %343 = vmatpush2.msra.mxu0 0.0
    %344 = vmatprep.subr.mxu0 0.0
    %345 = vmatpush2.msra.mxu0 0.0
    %346 = vmatprep.subr.mxu0 0.0
    %347 = vmatpush2.msra.mxu0 0.0
    %348 = vmatprep.subr.mxu0 0.0
    %349 = vmatpush2.msra.mxu0 0.0
    %350 = vmatprep.subr.mxu0 0.0
    %351 = vmatpush2.msra.mxu0 0.0
    %352 = vmatprep.subr.mxu0 0.0
    %353 = vmatpush2.msra.mxu0 0.0
    %354 = vmatprep.subr.mxu0 0.0
    %355 = vmatpush2.msra.mxu0 0.0
    %356 = vmatprep.subr.mxu0 0.0
    %357 = vmatpush2.msra.mxu0 0.0
    %358 = vmatprep.subr.mxu0 0.0
    %359 = vmatpush2.msra.mxu0 0.0
    %360 = vmatprep.subr.mxu0 0.0
    %361 = vmatpush2.msra.mxu0 0.0
    %362 = vmatprep.subr.mxu0 0.0
    %363 = vmatpush2.msra.mxu0 0.0
    %364 = vmatprep.mubr.f32.mxu0 0.0
    %365 = vmatmul.mubr.f32.gmra.mxu0 %v121
    %v366 = vpop.f32.mrf.mxu0
    %v367 = vadd.f32 0.0, %v366
    %v368 = vpop.f32.mrf.mxu0
    %369 = vmatprep.mubr.f32.mxu0 0.0
    %370 = vmatmul.mubr.f32.gmra.mxu0 %v124
    %v371 = vpop.f32.mrf.mxu0
    %v372 = vadd.f32 0.0, %v371
    %v373 = vpop.f32.mrf.mxu0
    %374 = vdwg.mxu0
    %375 = vmatprep.subr.mxu0 0.0
    %376 = vmatpush1.msra.mxu0 0.0
    %377 = vmatprep.subr.mxu0 0.0
    %378 = vmatpush1.msra.mxu0 0.0
    %379 = vmatprep.subr.mxu0 0.0
    %380 = vmatpush1.msra.mxu0 0.0
    %381 = vmatprep.subr.mxu0 0.0
    %382 = vmatpush1.msra.mxu0 0.0
    %383 = vmatprep.subr.mxu0 0.0
    %384 = vmatpush1.msra.mxu0 0.0
    %385 = vmatprep.subr.mxu0 0.0
    %386 = vmatpush1.msra.mxu0 0.0
    %387 = vmatprep.subr.mxu0 0.0
    %388 = vmatpush1.msra.mxu0 0.0
    %389 = vmatprep.subr.mxu0 0.0
    %390 = vmatpush1.msra.mxu0 0.0
    %391 = vmatprep.subr.mxu0 0.0
    %392 = vmatpush1.msra.mxu0 0.0
    %393 = vmatprep.subr.mxu0 0.0
    %394 = vmatpush1.msra.mxu0 0.0
    %395 = vmatprep.subr.mxu0 0.0
    %396 = vmatpush1.msra.mxu0 0.0
    %397 = vmatprep.subr.mxu0 0.0
    %398 = vmatpush1.msra.mxu0 0.0
    %399 = vmatprep.subr.mxu0 0.0
    %400 = vmatpush1.msra.mxu0 0.0
    %401 = vmatprep.subr.mxu0 0.0
    %402 = vmatpush1.msra.mxu0 0.0
    %403 = vmatprep.subr.mxu0 0.0
    %404 = vmatpush1.msra.mxu0 %v297
    %405 = vmatprep.subr.mxu0 0.0
    %406 = vmatpush1.msra.mxu0 %v296
    %407 = vmatprep.subr.mxu0 0.0
    %408 = vmatpush2.msra.mxu0 0.0
    %409 = vmatprep.subr.mxu0 0.0
    %410 = vmatpush2.msra.mxu0 0.0
    %411 = vmatprep.subr.mxu0 0.0
    %412 = vmatpush2.msra.mxu0 0.0
    %413 = vmatprep.subr.mxu0 0.0
    %414 = vmatpush2.msra.mxu0 0.0
    %415 = vmatprep.subr.mxu0 0.0
    %416 = vmatpush2.msra.mxu0 0.0
    %417 = vmatprep.subr.mxu0 0.0
    %418 = vmatpush2.msra.mxu0 0.0
    %419 = vmatprep.subr.mxu0 0.0
    %420 = vmatpush2.msra.mxu0 0.0
    %421 = vmatprep.subr.mxu0 0.0
    %422 = vmatpush2.msra.mxu0 0.0
    %423 = vmatprep.subr.mxu0 0.0
    %424 = vmatpush2.msra.mxu0 0.0
    %425 = vmatprep.subr.mxu0 0.0
    %426 = vmatpush2.msra.mxu0 0.0
    %427 = vmatprep.subr.mxu0 0.0
    %428 = vmatpush2.msra.mxu0 0.0
    %429 = vmatprep.subr.mxu0 0.0
    %430 = vmatpush2.msra.mxu0 0.0
    %431 = vmatprep.subr.mxu0 0.0
    %432 = vmatpush2.msra.mxu0 0.0
    %433 = vmatprep.subr.mxu0 0.0
    %434 = vmatpush2.msra.mxu0 0.0
    %435 = vmatprep.subr.mxu0 0.0
    %436 = vmatpush2.msra.mxu0 0.0
    %437 = vmatprep.subr.mxu0 0.0
    %438 = vmatpush2.msra.mxu0 0.0
    %439 = vmatprep.mubr.f32.mxu0 0.0
    %440 = vmatmul.mubr.f32.gmra.mxu0 %v202
    %v441 = vpop.f32.mrf.mxu0
    %v442 = vadd.f32 %v367, %v441
    %v443 = vpop.f32.mrf.mxu0
    %444 = vmatprep.mubr.f32.mxu0 0.0
    %445 = vmatmul.mubr.f32.gmra.mxu0 %v205
    %v446 = vpop.f32.mrf.mxu0
    %v447 = vadd.f32 %v372, %v446
    %v448 = vpop.f32.mrf.mxu0
    %449 = vdwg.mxu0
    %v451 = vlaneseq
    %v452 = vshrl.u32 %v451, 7
    %v453 = vsub.s32 0, %v452
    %v454 = vrot.slane %v294, %v453
    %v456 = vadd.f32 %v442, %v454
    %v457 = vadd.f32 %v447, %v454
    %s458 = scalar_lea.vmem %s5, 2
    %v459 = vld [vmem:[%s458] sm:$0x1]
    %s460 = scalar_lea.vmem %s3, 64
    %v461 = vld [vmem:[%s460] sm:$0xff]
    %v462 = vld [vmem:[%s460 + $0x8] sm:$0xff]
    %v463 = vld [vmem:[%s460 + $0x10] sm:$0xff]
    %v464 = vld [vmem:[%s460 + $0x18] sm:$0xff]
    %465 = vmatprep.subr.mxu0 0.0
    %466 = vmatpush1.msra.mxu0 0.0
    %467 = vmatprep.subr.mxu0 0.0
    %468 = vmatpush1.msra.mxu0 0.0
    %469 = vmatprep.subr.mxu0 0.0
    %470 = vmatpush1.msra.mxu0 0.0
    %471 = vmatprep.subr.mxu0 0.0
    %472 = vmatpush1.msra.mxu0 0.0
    %473 = vmatprep.subr.mxu0 0.0
    %474 = vmatpush1.msra.mxu0 0.0
    %475 = vmatprep.subr.mxu0 0.0
    %476 = vmatpush1.msra.mxu0 0.0
    %477 = vmatprep.subr.mxu0 0.0
    %478 = vmatpush1.msra.mxu0 0.0
    %479 = vmatprep.subr.mxu0 0.0
    %480 = vmatpush1.msra.mxu0 0.0
    %481 = vmatprep.subr.mxu0 0.0
    %482 = vmatpush1.msra.mxu0 0.0
    %483 = vmatprep.subr.mxu0 0.0
    %484 = vmatpush1.msra.mxu0 0.0
    %485 = vmatprep.subr.mxu0 0.0
    %486 = vmatpush1.msra.mxu0 0.0
    %487 = vmatprep.subr.mxu0 0.0
    %488 = vmatpush1.msra.mxu0 0.0
    %489 = vmatprep.subr.mxu0 0.0
    %490 = vmatpush1.msra.mxu0 0.0
    %491 = vmatprep.subr.mxu0 0.0
    %492 = vmatpush1.msra.mxu0 0.0
    %493 = vmatprep.subr.mxu0 0.0
    %494 = vmatpush1.msra.mxu0 %v464
    %495 = vmatprep.subr.mxu0 0.0
    %496 = vmatpush1.msra.mxu0 %v463
    %497 = vmatprep.subr.mxu0 0.0
    %498 = vmatpush2.msra.mxu0 0.0
    %499 = vmatprep.subr.mxu0 0.0
    %500 = vmatpush2.msra.mxu0 0.0
    %501 = vmatprep.subr.mxu0 0.0
    %502 = vmatpush2.msra.mxu0 0.0
    %503 = vmatprep.subr.mxu0 0.0
    %504 = vmatpush2.msra.mxu0 0.0
    %505 = vmatprep.subr.mxu0 0.0
    %506 = vmatpush2.msra.mxu0 0.0
    %507 = vmatprep.subr.mxu0 0.0
    %508 = vmatpush2.msra.mxu0 0.0
    %509 = vmatprep.subr.mxu0 0.0
    %510 = vmatpush2.msra.mxu0 0.0
    %511 = vmatprep.subr.mxu0 0.0
    %512 = vmatpush2.msra.mxu0 0.0
    %513 = vmatprep.subr.mxu0 0.0
    %514 = vmatpush2.msra.mxu0 0.0
    %515 = vmatprep.subr.mxu0 0.0
    %516 = vmatpush2.msra.mxu0 0.0
    %517 = vmatprep.subr.mxu0 0.0
    %518 = vmatpush2.msra.mxu0 0.0
    %519 = vmatprep.subr.mxu0 0.0
    %520 = vmatpush2.msra.mxu0 0.0
    %521 = vmatprep.subr.mxu0 0.0
    %522 = vmatpush2.msra.mxu0 0.0
    %523 = vmatprep.subr.mxu0 0.0
    %524 = vmatpush2.msra.mxu0 0.0
    %525 = vmatprep.subr.mxu0 0.0
    %526 = vmatpush2.msra.mxu0 0.0
    %527 = vmatprep.subr.mxu0 0.0
    %528 = vmatpush2.msra.mxu0 0.0
    %529 = vmatprep.mubr.f32.mxu0 0.0
    %530 = vmatmul.mubr.f32.gmra.mxu0 %v121
    %v531 = vpop.f32.mrf.mxu0
    %v532 = vadd.f32 0.0, %v531
    %v533 = vpop.f32.mrf.mxu0
    %534 = vmatprep.mubr.f32.mxu0 0.0
    %535 = vmatmul.mubr.f32.gmra.mxu0 %v124
    %v536 = vpop.f32.mrf.mxu0
    %v537 = vadd.f32 0.0, %v536
    %v538 = vpop.f32.mrf.mxu0
    %539 = vdwg.mxu0
    %540 = vmatprep.subr.mxu0 0.0
    %541 = vmatpush1.msra.mxu0 0.0
    %542 = vmatprep.subr.mxu0 0.0
    %543 = vmatpush1.msra.mxu0 0.0
    %544 = vmatprep.subr.mxu0 0.0
    %545 = vmatpush1.msra.mxu0 0.0
    %546 = vmatprep.subr.mxu0 0.0
    %547 = vmatpush1.msra.mxu0 0.0
    %548 = vmatprep.subr.mxu0 0.0
    %549 = vmatpush1.msra.mxu0 0.0
    %550 = vmatprep.subr.mxu0 0.0
    %551 = vmatpush1.msra.mxu0 0.0
    %552 = vmatprep.subr.mxu0 0.0
    %553 = vmatpush1.msra.mxu0 0.0
    %554 = vmatprep.subr.mxu0 0.0
    %555 = vmatpush1.msra.mxu0 0.0
    %556 = vmatprep.subr.mxu0 0.0
    %557 = vmatpush1.msra.mxu0 0.0
    %558 = vmatprep.subr.mxu0 0.0
    %559 = vmatpush1.msra.mxu0 0.0
    %560 = vmatprep.subr.mxu0 0.0
    %561 = vmatpush1.msra.mxu0 0.0
    %562 = vmatprep.subr.mxu0 0.0
    %563 = vmatpush1.msra.mxu0 0.0
    %564 = vmatprep.subr.mxu0 0.0
    %565 = vmatpush1.msra.mxu0 0.0
    %566 = vmatprep.subr.mxu0 0.0
    %567 = vmatpush1.msra.mxu0 0.0
    %568 = vmatprep.subr.mxu0 0.0
    %569 = vmatpush1.msra.mxu0 %v462
    %570 = vmatprep.subr.mxu0 0.0
    %571 = vmatpush1.msra.mxu0 %v461
    %572 = vmatprep.subr.mxu0 0.0
    %573 = vmatpush2.msra.mxu0 0.0
    %574 = vmatprep.subr.mxu0 0.0
    %575 = vmatpush2.msra.mxu0 0.0
    %576 = vmatprep.subr.mxu0 0.0
    %577 = vmatpush2.msra.mxu0 0.0
    %578 = vmatprep.subr.mxu0 0.0
    %579 = vmatpush2.msra.mxu0 0.0
    %580 = vmatprep.subr.mxu0 0.0
    %581 = vmatpush2.msra.mxu0 0.0
    %582 = vmatprep.subr.mxu0 0.0
    %583 = vmatpush2.msra.mxu0 0.0
    %584 = vmatprep.subr.mxu0 0.0
    %585 = vmatpush2.msra.mxu0 0.0
    %586 = vmatprep.subr.mxu0 0.0
    %587 = vmatpush2.msra.mxu0 0.0
    %588 = vmatprep.subr.mxu0 0.0
    %589 = vmatpush2.msra.mxu0 0.0
    %590 = vmatprep.subr.mxu0 0.0
    %591 = vmatpush2.msra.mxu0 0.0
    %592 = vmatprep.subr.mxu0 0.0
    %593 = vmatpush2.msra.mxu0 0.0
    %594 = vmatprep.subr.mxu0 0.0
    %595 = vmatpush2.msra.mxu0 0.0
    %596 = vmatprep.subr.mxu0 0.0
    %597 = vmatpush2.msra.mxu0 0.0
    %598 = vmatprep.subr.mxu0 0.0
    %599 = vmatpush2.msra.mxu0 0.0
    %600 = vmatprep.subr.mxu0 0.0
    %601 = vmatpush2.msra.mxu0 0.0
    %602 = vmatprep.subr.mxu0 0.0
    %603 = vmatpush2.msra.mxu0 0.0
    %604 = vmatprep.mubr.f32.mxu0 0.0
    %605 = vmatmul.mubr.f32.gmra.mxu0 %v202
    %v606 = vpop.f32.mrf.mxu0
    %v607 = vadd.f32 %v532, %v606
    %v608 = vpop.f32.mrf.mxu0
    %609 = vmatprep.mubr.f32.mxu0 0.0
    %610 = vmatmul.mubr.f32.gmra.mxu0 %v205
    %v611 = vpop.f32.mrf.mxu0
    %v612 = vadd.f32 %v537, %v611
    %v613 = vpop.f32.mrf.mxu0
    %614 = vdwg.mxu0
    %v616 = vlaneseq
    %v617 = vshrl.u32 %v616, 7
    %v618 = vsub.s32 0, %v617
    %v619 = vrot.slane %v459, %v618
    %v621 = vadd.f32 %v607, %v619
    %v622 = vadd.f32 %v612, %v619
    %v623 = vld [vmem:[#allocation8] sm:$0xff]
    %v624 = vld [vmem:[#allocation8 + $0x8] sm:$0xff]
    %v625 = vld [vmem:[#allocation8 + $0x10] sm:$0xff]
    %v626 = vld [vmem:[#allocation8 + $0x18] sm:$0xff]
    %s627 = scalar_lea.vmem [#allocation8], 32
    %v628 = vld [vmem:[%s627] sm:$0xff]
    %v629 = vld [vmem:[%s627 + $0x8] sm:$0xff]
    %v630 = vld [vmem:[%s627 + $0x10] sm:$0xff]
    %v631 = vld [vmem:[%s627 + $0x18] sm:$0xff]
    %s632 = scalar_lea.vmem [#allocation8], 64
    %v633 = vld [vmem:[%s632] sm:$0xff]
    %v634 = vld [vmem:[%s632 + $0x8] sm:$0xff]
    %v635 = vld [vmem:[%s632 + $0x10] sm:$0xff]
    %v636 = vld [vmem:[%s632 + $0x18] sm:$0xff]
    %s637 = scalar_lea.vmem %s6, 2
    %v638 = vld [vmem:[%s637] sm:$0x1]
    %v640 = vlaneseq
    %v641 = vshrl.u32 %v640, 7
    %v642 = vsub.s32 0, %v641
    %v643 = vrot.slane %v638, %v642
    %vm645 = vcmask 261120
    %v647 = vsel %vm645, 0.0, 0
    %649 = vmatprep.subr.mxu0 0.0
    %650 = vmatpush1.msra.mxu0 0.0
    %651 = vmatprep.subr.mxu0 0.0
    %652 = vmatpush1.msra.mxu0 0.0
    %653 = vmatprep.subr.mxu0 0.0
    %654 = vmatpush1.msra.mxu0 0.0
    %655 = vmatprep.subr.mxu0 0.0
    %656 = vmatpush1.msra.mxu0 0.0
    %657 = vmatprep.subr.mxu0 0.0
    %658 = vmatpush1.msra.mxu0 0.0
    %659 = vmatprep.subr.mxu0 0.0
    %660 = vmatpush1.msra.mxu0 0.0
    %661 = vmatprep.subr.mxu0 0.0
    %662 = vmatpush1.msra.mxu0 0.0
    %663 = vmatprep.subr.mxu0 0.0
    %664 = vmatpush1.msra.mxu0 0.0
    %665 = vmatprep.subr.mxu0 0.0
    %666 = vmatpush1.msra.mxu0 0.0
    %667 = vmatprep.subr.mxu0 0.0
    %668 = vmatpush1.msra.mxu0 0.0
    %669 = vmatprep.subr.mxu0 0.0
    %670 = vmatpush1.msra.mxu0 0.0
    %671 = vmatprep.subr.mxu0 0.0
    %672 = vmatpush1.msra.mxu0 0.0
    %673 = vmatprep.subr.mxu0 0.0
    %674 = vmatpush1.msra.mxu0 %v626
    %675 = vmatprep.subr.mxu0 0.0
    %676 = vmatpush1.msra.mxu0 %v625
    %677 = vmatprep.subr.mxu0 0.0
    %678 = vmatpush1.msra.mxu0 %v624
    %679 = vmatprep.subr.mxu0 0.0
    %680 = vmatpush1.msra.mxu0 %v623
    %681 = vmatprep.subr.mxu0 0.0
    %682 = vmatpush2.msra.mxu0 0.0
    %683 = vmatprep.subr.mxu0 0.0
    %684 = vmatpush2.msra.mxu0 0.0
    %685 = vmatprep.subr.mxu0 0.0
    %686 = vmatpush2.msra.mxu0 0.0
    %687 = vmatprep.subr.mxu0 0.0
    %688 = vmatpush2.msra.mxu0 0.0
    %689 = vmatprep.subr.mxu0 0.0
    %690 = vmatpush2.msra.mxu0 0.0
    %691 = vmatprep.subr.mxu0 0.0
    %692 = vmatpush2.msra.mxu0 0.0
    %693 = vmatprep.subr.mxu0 0.0
    %694 = vmatpush2.msra.mxu0 0.0
    %695 = vmatprep.subr.mxu0 0.0
    %696 = vmatpush2.msra.mxu0 0.0
    %697 = vmatprep.subr.mxu0 0.0
    %698 = vmatpush2.msra.mxu0 0.0
    %699 = vmatprep.subr.mxu0 0.0
    %700 = vmatpush2.msra.mxu0 0.0
    %701 = vmatprep.subr.mxu0 0.0
    %702 = vmatpush2.msra.mxu0 0.0
    %703 = vmatprep.subr.mxu0 0.0
    %704 = vmatpush2.msra.mxu0 0.0
    %705 = vmatprep.subr.mxu0 0.0
    %706 = vmatpush2.msra.mxu0 0.0
    %707 = vmatprep.subr.mxu0 0.0
    %708 = vmatpush2.msra.mxu0 0.0
    %709 = vmatprep.subr.mxu0 0.0
    %710 = vmatpush2.msra.mxu0 0.0
    %711 = vmatprep.subr.mxu0 0.0
    %712 = vmatpush2.msra.mxu0 0.0
    %713 = vmatprep.mubr.f32.mxu0 0.0
    %714 = vmatmul.mubr.f32.gmra.mxu0 %v647
    %v715 = vpop.f32.mrf.mxu0
    %v716 = vadd.f32 0.0, %v715
    %v717 = vpop.f32.mrf.mxu0
    %718 = vdwg.mxu0
    %v719 = vadd.f32 %v288, %v716
    %v720 = vxor.u32 %v719, 2147483648
    %v721 = vmul.f32 %v720, 1.442695
    %v722 = vpow.pop %v721
    %v723 = vadd.f32 %v722, 1.0
    %v724 = vrcp.pop %v723
    %v725 = vmul.f32 1.0, %v724
    %726 = vmatprep.subr.mxu0 0.0
    %727 = vmatpush1.msra.mxu0 0.0
    %728 = vmatprep.subr.mxu0 0.0
    %729 = vmatpush1.msra.mxu0 0.0
    %730 = vmatprep.subr.mxu0 0.0
    %731 = vmatpush1.msra.mxu0 0.0
    %732 = vmatprep.subr.mxu0 0.0
    %733 = vmatpush1.msra.mxu0 0.0
    %734 = vmatprep.subr.mxu0 0.0
    %735 = vmatpush1.msra.mxu0 0.0
    %736 = vmatprep.subr.mxu0 0.0
    %737 = vmatpush1.msra.mxu0 0.0
    %738 = vmatprep.subr.mxu0 0.0
    %739 = vmatpush1.msra.mxu0 0.0
    %740 = vmatprep.subr.mxu0 0.0
    %741 = vmatpush1.msra.mxu0 0.0
    %742 = vmatprep.subr.mxu0 0.0
    %743 = vmatpush1.msra.mxu0 0.0
    %744 = vmatprep.subr.mxu0 0.0
    %745 = vmatpush1.msra.mxu0 0.0
    %746 = vmatprep.subr.mxu0 0.0
    %747 = vmatpush1.msra.mxu0 0.0
    %748 = vmatprep.subr.mxu0 0.0
    %749 = vmatpush1.msra.mxu0 0.0
    %750 = vmatprep.subr.mxu0 0.0
    %751 = vmatpush1.msra.mxu0 %v631
    %752 = vmatprep.subr.mxu0 0.0
    %753 = vmatpush1.msra.mxu0 %v630
    %754 = vmatprep.subr.mxu0 0.0
    %755 = vmatpush1.msra.mxu0 %v629
    %756 = vmatprep.subr.mxu0 0.0
    %757 = vmatpush1.msra.mxu0 %v628
    %758 = vmatprep.subr.mxu0 0.0
    %759 = vmatpush2.msra.mxu0 0.0
    %760 = vmatprep.subr.mxu0 0.0
    %761 = vmatpush2.msra.mxu0 0.0
    %762 = vmatprep.subr.mxu0 0.0
    %763 = vmatpush2.msra.mxu0 0.0
    %764 = vmatprep.subr.mxu0 0.0
    %765 = vmatpush2.msra.mxu0 0.0
    %766 = vmatprep.subr.mxu0 0.0
    %767 = vmatpush2.msra.mxu0 0.0
    %768 = vmatprep.subr.mxu0 0.0
    %769 = vmatpush2.msra.mxu0 0.0
    %770 = vmatprep.subr.mxu0 0.0
    %771 = vmatpush2.msra.mxu0 0.0
    %772 = vmatprep.subr.mxu0 0.0
    %773 = vmatpush2.msra.mxu0 0.0
    %774 = vmatprep.subr.mxu0 0.0
    %775 = vmatpush2.msra.mxu0 0.0
    %776 = vmatprep.subr.mxu0 0.0
    %777 = vmatpush2.msra.mxu0 0.0
    %778 = vmatprep.subr.mxu0 0.0
    %779 = vmatpush2.msra.mxu0 0.0
    %780 = vmatprep.subr.mxu0 0.0
    %781 = vmatpush2.msra.mxu0 0.0
    %782 = vmatprep.subr.mxu0 0.0
    %783 = vmatpush2.msra.mxu0 0.0
    %784 = vmatprep.subr.mxu0 0.0
    %785 = vmatpush2.msra.mxu0 0.0
    %786 = vmatprep.subr.mxu0 0.0
    %787 = vmatpush2.msra.mxu0 0.0
    %788 = vmatprep.subr.mxu0 0.0
    %789 = vmatpush2.msra.mxu0 0.0
    %790 = vmatprep.mubr.f32.mxu0 0.0
    %791 = vmatmul.mubr.f32.gmra.mxu0 %v647
    %v792 = vpop.f32.mrf.mxu0
    %v793 = vadd.f32 0.0, %v792
    %v794 = vpop.f32.mrf.mxu0
    %795 = vdwg.mxu0
    %v796 = vadd.f32 %v456, %v793
    %v797 = vxor.u32 %v796, 2147483648
    %v798 = vmul.f32 %v797, 1.442695
    %v799 = vpow.pop %v798
    %v800 = vadd.f32 %v799, 1.0
    %v801 = vrcp.pop %v800
    %v802 = vmul.f32 1.0, %v801
    %803 = vmatprep.subr.mxu0 0.0
    %804 = vmatpush1.msra.mxu0 0.0
    %805 = vmatprep.subr.mxu0 0.0
    %806 = vmatpush1.msra.mxu0 0.0
    %807 = vmatprep.subr.mxu0 0.0
    %808 = vmatpush1.msra.mxu0 0.0
    %809 = vmatprep.subr.mxu0 0.0
    %810 = vmatpush1.msra.mxu0 0.0
    %811 = vmatprep.subr.mxu0 0.0
    %812 = vmatpush1.msra.mxu0 0.0
    %813 = vmatprep.subr.mxu0 0.0
    %814 = vmatpush1.msra.mxu0 0.0
    %815 = vmatprep.subr.mxu0 0.0
    %816 = vmatpush1.msra.mxu0 0.0
    %817 = vmatprep.subr.mxu0 0.0
    %818 = vmatpush1.msra.mxu0 0.0
    %819 = vmatprep.subr.mxu0 0.0
    %820 = vmatpush1.msra.mxu0 0.0
    %821 = vmatprep.subr.mxu0 0.0
    %822 = vmatpush1.msra.mxu0 0.0
    %823 = vmatprep.subr.mxu0 0.0
    %824 = vmatpush1.msra.mxu0 0.0
    %825 = vmatprep.subr.mxu0 0.0
    %826 = vmatpush1.msra.mxu0 0.0
    %827 = vmatprep.subr.mxu0 0.0
    %828 = vmatpush1.msra.mxu0 %v636
    %829 = vmatprep.subr.mxu0 0.0
    %830 = vmatpush1.msra.mxu0 %v635
    %831 = vmatprep.subr.mxu0 0.0
    %832 = vmatpush1.msra.mxu0 %v634
    %833 = vmatprep.subr.mxu0 0.0
    %834 = vmatpush1.msra.mxu0 %v633
    %835 = vmatprep.subr.mxu0 0.0
    %836 = vmatpush2.msra.mxu0 0.0
    %837 = vmatprep.subr.mxu0 0.0
    %838 = vmatpush2.msra.mxu0 0.0
    %839 = vmatprep.subr.mxu0 0.0
    %840 = vmatpush2.msra.mxu0 0.0
    %841 = vmatprep.subr.mxu0 0.0
    %842 = vmatpush2.msra.mxu0 0.0
    %843 = vmatprep.subr.mxu0 0.0
    %844 = vmatpush2.msra.mxu0 0.0
    %845 = vmatprep.subr.mxu0 0.0
    %846 = vmatpush2.msra.mxu0 0.0
    %847 = vmatprep.subr.mxu0 0.0
    %848 = vmatpush2.msra.mxu0 0.0
    %849 = vmatprep.subr.mxu0 0.0
    %850 = vmatpush2.msra.mxu0 0.0
    %851 = vmatprep.subr.mxu0 0.0
    %852 = vmatpush2.msra.mxu0 0.0
    %853 = vmatprep.subr.mxu0 0.0
    %854 = vmatpush2.msra.mxu0 0.0
    %855 = vmatprep.subr.mxu0 0.0
    %856 = vmatpush2.msra.mxu0 0.0
    %857 = vmatprep.subr.mxu0 0.0
    %858 = vmatpush2.msra.mxu0 0.0
    %859 = vmatprep.subr.mxu0 0.0
    %860 = vmatpush2.msra.mxu0 0.0
    %861 = vmatprep.subr.mxu0 0.0
    %862 = vmatpush2.msra.mxu0 0.0
    %863 = vmatprep.subr.mxu0 0.0
    %864 = vmatpush2.msra.mxu0 0.0
    %865 = vmatprep.subr.mxu0 0.0
    %866 = vmatpush2.msra.mxu0 0.0
    %867 = vmatprep.mubr.f32.mxu0 0.0
    %868 = vmatmul.mubr.f32.gmra.mxu0 %v647
    %v869 = vpop.f32.mrf.mxu0
    %v870 = vadd.f32 %v643, %v869
    %v871 = vpop.f32.mrf.mxu0
    %872 = vdwg.mxu0
    %v873 = vmul.f32 %v725, %v870
    %v874 = vadd.f32 %v621, %v873
    %v875 = vtanh.pop %v874
    %v876 = vsub.f32 1.0, %v802
    %v877 = vmul.f32 %v876, %v875
    %v878 = vmul.f32 %v802, 0.0
    %v879 = vadd.f32 %v877, %v878
    %vm880 = vcmask 254976
    %881 = vst.msk [vmem:[#allocation11] sm:$0x3] %vm880, %v879
    %v883 = vsel %vm645, %v879, 0
    %885 = vmatprep.subr.mxu0 0.0
    %886 = vmatpush1.msra.mxu0 0.0
    %887 = vmatprep.subr.mxu0 0.0
    %888 = vmatpush1.msra.mxu0 0.0
    %889 = vmatprep.subr.mxu0 0.0
    %890 = vmatpush1.msra.mxu0 0.0
    %891 = vmatprep.subr.mxu0 0.0
    %892 = vmatpush1.msra.mxu0 0.0
    %893 = vmatprep.subr.mxu0 0.0
    %894 = vmatpush1.msra.mxu0 0.0
    %895 = vmatprep.subr.mxu0 0.0
    %896 = vmatpush1.msra.mxu0 0.0
    %897 = vmatprep.subr.mxu0 0.0
    %898 = vmatpush1.msra.mxu0 0.0
    %899 = vmatprep.subr.mxu0 0.0
    %900 = vmatpush1.msra.mxu0 0.0
    %901 = vmatprep.subr.mxu0 0.0
    %902 = vmatpush1.msra.mxu0 0.0
    %903 = vmatprep.subr.mxu0 0.0
    %904 = vmatpush1.msra.mxu0 0.0
    %905 = vmatprep.subr.mxu0 0.0
    %906 = vmatpush1.msra.mxu0 0.0
    %907 = vmatprep.subr.mxu0 0.0
    %908 = vmatpush1.msra.mxu0 0.0
    %909 = vmatprep.subr.mxu0 0.0
    %910 = vmatpush1.msra.mxu0 %v626
    %911 = vmatprep.subr.mxu0 0.0
    %912 = vmatpush1.msra.mxu0 %v625
    %913 = vmatprep.subr.mxu0 0.0
    %914 = vmatpush1.msra.mxu0 %v624
    %915 = vmatprep.subr.mxu0 0.0
    %916 = vmatpush1.msra.mxu0 %v623
    %917 = vmatprep.subr.mxu0 0.0
    %918 = vmatpush2.msra.mxu0 0.0
    %919 = vmatprep.subr.mxu0 0.0
    %920 = vmatpush2.msra.mxu0 0.0
    %921 = vmatprep.subr.mxu0 0.0
    %922 = vmatpush2.msra.mxu0 0.0
    %923 = vmatprep.subr.mxu0 0.0
    %924 = vmatpush2.msra.mxu0 0.0
    %925 = vmatprep.subr.mxu0 0.0
    %926 = vmatpush2.msra.mxu0 0.0
    %927 = vmatprep.subr.mxu0 0.0
    %928 = vmatpush2.msra.mxu0 0.0
    %929 = vmatprep.subr.mxu0 0.0
    %930 = vmatpush2.msra.mxu0 0.0
    %931 = vmatprep.subr.mxu0 0.0
    %932 = vmatpush2.msra.mxu0 0.0
    %933 = vmatprep.subr.mxu0 0.0
    %934 = vmatpush2.msra.mxu0 0.0
    %935 = vmatprep.subr.mxu0 0.0
    %936 = vmatpush2.msra.mxu0 0.0
    %937 = vmatprep.subr.mxu0 0.0
    %938 = vmatpush2.msra.mxu0 0.0
    %939 = vmatprep.subr.mxu0 0.0
    %940 = vmatpush2.msra.mxu0 0.0
    %941 = vmatprep.subr.mxu0 0.0
    %942 = vmatpush2.msra.mxu0 0.0
    %943 = vmatprep.subr.mxu0 0.0
    %944 = vmatpush2.msra.mxu0 0.0
    %945 = vmatprep.subr.mxu0 0.0
    %946 = vmatpush2.msra.mxu0 0.0
    %947 = vmatprep.subr.mxu0 0.0
    %948 = vmatpush2.msra.mxu0 0.0
    %949 = vmatprep.mubr.f32.mxu0 0.0
    %950 = vmatmul.mubr.f32.gmra.mxu0 %v883
    %v951 = vpop.f32.mrf.mxu0
    %v952 = vadd.f32 0.0, %v951
    %v953 = vpop.f32.mrf.mxu0
    %954 = vdwg.mxu0
    %v956 = vrot.slane %v952, 6
    %v958 = vadd.f32 %v288, %v956
    %v959 = vxor.u32 %v958, 2147483648
    %v960 = vmul.f32 %v959, 1.442695
    %v961 = vpow.pop %v960
    %v962 = vadd.f32 %v961, 1.0
    %v963 = vrcp.pop %v962
    %v964 = vmul.f32 1.0, %v963
    %965 = vmatprep.subr.mxu0 0.0
    %966 = vmatpush1.msra.mxu0 0.0
    %967 = vmatprep.subr.mxu0 0.0
    %968 = vmatpush1.msra.mxu0 0.0
    %969 = vmatprep.subr.mxu0 0.0
    %970 = vmatpush1.msra.mxu0 0.0
    %971 = vmatprep.subr.mxu0 0.0
    %972 = vmatpush1.msra.mxu0 0.0
    %973 = vmatprep.subr.mxu0 0.0
    %974 = vmatpush1.msra.mxu0 0.0
    %975 = vmatprep.subr.mxu0 0.0
    %976 = vmatpush1.msra.mxu0 0.0
    %977 = vmatprep.subr.mxu0 0.0
    %978 = vmatpush1.msra.mxu0 0.0
    %979 = vmatprep.subr.mxu0 0.0
    %980 = vmatpush1.msra.mxu0 0.0
    %981 = vmatprep.subr.mxu0 0.0
    %982 = vmatpush1.msra.mxu0 0.0
    %983 = vmatprep.subr.mxu0 0.0
    %984 = vmatpush1.msra.mxu0 0.0
    %985 = vmatprep.subr.mxu0 0.0
    %986 = vmatpush1.msra.mxu0 0.0
    %987 = vmatprep.subr.mxu0 0.0
    %988 = vmatpush1.msra.mxu0 0.0
    %989 = vmatprep.subr.mxu0 0.0
    %990 = vmatpush1.msra.mxu0 %v631
    %991 = vmatprep.subr.mxu0 0.0
    %992 = vmatpush1.msra.mxu0 %v630
    %993 = vmatprep.subr.mxu0 0.0
    %994 = vmatpush1.msra.mxu0 %v629
    %995 = vmatprep.subr.mxu0 0.0
    %996 = vmatpush1.msra.mxu0 %v628
    %997 = vmatprep.subr.mxu0 0.0
    %998 = vmatpush2.msra.mxu0 0.0
    %999 = vmatprep.subr.mxu0 0.0
    %1000 = vmatpush2.msra.mxu0 0.0
    %1001 = vmatprep.subr.mxu0 0.0
    %1002 = vmatpush2.msra.mxu0 0.0
    %1003 = vmatprep.subr.mxu0 0.0
    %1004 = vmatpush2.msra.mxu0 0.0
    %1005 = vmatprep.subr.mxu0 0.0
    %1006 = vmatpush2.msra.mxu0 0.0
    %1007 = vmatprep.subr.mxu0 0.0
    %1008 = vmatpush2.msra.mxu0 0.0
    %1009 = vmatprep.subr.mxu0 0.0
    %1010 = vmatpush2.msra.mxu0 0.0
    %1011 = vmatprep.subr.mxu0 0.0
    %1012 = vmatpush2.msra.mxu0 0.0
    %1013 = vmatprep.subr.mxu0 0.0
    %1014 = vmatpush2.msra.mxu0 0.0
    %1015 = vmatprep.subr.mxu0 0.0
    %1016 = vmatpush2.msra.mxu0 0.0
    %1017 = vmatprep.subr.mxu0 0.0
    %1018 = vmatpush2.msra.mxu0 0.0
    %1019 = vmatprep.subr.mxu0 0.0
    %1020 = vmatpush2.msra.mxu0 0.0
    %1021 = vmatprep.subr.mxu0 0.0
    %1022 = vmatpush2.msra.mxu0 0.0
    %1023 = vmatprep.subr.mxu0 0.0
    %1024 = vmatpush2.msra.mxu0 0.0
    %1025 = vmatprep.subr.mxu0 0.0
    %1026 = vmatpush2.msra.mxu0 0.0
    %1027 = vmatprep.subr.mxu0 0.0
    %1028 = vmatpush2.msra.mxu0 0.0
    %1029 = vmatprep.mubr.f32.mxu0 0.0
    %1030 = vmatmul.mubr.f32.gmra.mxu0 %v883
    %v1031 = vpop.f32.mrf.mxu0
    %v1032 = vadd.f32 0.0, %v1031
    %v1033 = vpop.f32.mrf.mxu0
    %1034 = vdwg.mxu0
    %v1036 = vrot.slane %v1032, 6
    %v1038 = vadd.f32 %v456, %v1036
    %v1039 = vxor.u32 %v1038, 2147483648
    %v1040 = vmul.f32 %v1039, 1.442695
    %v1041 = vpow.pop %v1040
    %v1042 = vadd.f32 %v1041, 1.0
    %v1043 = vrcp.pop %v1042
    %v1044 = vmul.f32 1.0, %v1043
    %1045 = vmatprep.subr.mxu0 0.0
    %1046 = vmatpush1.msra.mxu0 0.0
    %1047 = vmatprep.subr.mxu0 0.0
    %1048 = vmatpush1.msra.mxu0 0.0
    %1049 = vmatprep.subr.mxu0 0.0
    %1050 = vmatpush1.msra.mxu0 0.0
    %1051 = vmatprep.subr.mxu0 0.0
    %1052 = vmatpush1.msra.mxu0 0.0
    %1053 = vmatprep.subr.mxu0 0.0
    %1054 = vmatpush1.msra.mxu0 0.0
    %1055 = vmatprep.subr.mxu0 0.0
    %1056 = vmatpush1.msra.mxu0 0.0
    %1057 = vmatprep.subr.mxu0 0.0
    %1058 = vmatpush1.msra.mxu0 0.0
    %1059 = vmatprep.subr.mxu0 0.0
    %1060 = vmatpush1.msra.mxu0 0.0
    %1061 = vmatprep.subr.mxu0 0.0
    %1062 = vmatpush1.msra.mxu0 0.0
    %1063 = vmatprep.subr.mxu0 0.0
    %1064 = vmatpush1.msra.mxu0 0.0
    %1065 = vmatprep.subr.mxu0 0.0
    %1066 = vmatpush1.msra.mxu0 0.0
    %1067 = vmatprep.subr.mxu0 0.0
    %1068 = vmatpush1.msra.mxu0 0.0
    %1069 = vmatprep.subr.mxu0 0.0
    %1070 = vmatpush1.msra.mxu0 %v636
    %1071 = vmatprep.subr.mxu0 0.0
    %1072 = vmatpush1.msra.mxu0 %v635
    %1073 = vmatprep.subr.mxu0 0.0
    %1074 = vmatpush1.msra.mxu0 %v634
    %1075 = vmatprep.subr.mxu0 0.0
    %1076 = vmatpush1.msra.mxu0 %v633
    %1077 = vmatprep.subr.mxu0 0.0
    %1078 = vmatpush2.msra.mxu0 0.0
    %1079 = vmatprep.subr.mxu0 0.0
    %1080 = vmatpush2.msra.mxu0 0.0
    %1081 = vmatprep.subr.mxu0 0.0
    %1082 = vmatpush2.msra.mxu0 0.0
    %1083 = vmatprep.subr.mxu0 0.0
    %1084 = vmatpush2.msra.mxu0 0.0
    %1085 = vmatprep.subr.mxu0 0.0
    %1086 = vmatpush2.msra.mxu0 0.0
    %1087 = vmatprep.subr.mxu0 0.0
    %1088 = vmatpush2.msra.mxu0 0.0
    %1089 = vmatprep.subr.mxu0 0.0
    %1090 = vmatpush2.msra.mxu0 0.0
    %1091 = vmatprep.subr.mxu0 0.0
    %1092 = vmatpush2.msra.mxu0 0.0
    %1093 = vmatprep.subr.mxu0 0.0
    %1094 = vmatpush2.msra.mxu0 0.0
    %1095 = vmatprep.subr.mxu0 0.0
    %1096 = vmatpush2.msra.mxu0 0.0
    %1097 = vmatprep.subr.mxu0 0.0
    %1098 = vmatpush2.msra.mxu0 0.0
    %1099 = vmatprep.subr.mxu0 0.0
    %1100 = vmatpush2.msra.mxu0 0.0
    %1101 = vmatprep.subr.mxu0 0.0
    %1102 = vmatpush2.msra.mxu0 0.0
    %1103 = vmatprep.subr.mxu0 0.0
    %1104 = vmatpush2.msra.mxu0 0.0
    %1105 = vmatprep.subr.mxu0 0.0
    %1106 = vmatpush2.msra.mxu0 0.0
    %1107 = vmatprep.subr.mxu0 0.0
    %1108 = vmatpush2.msra.mxu0 0.0
    %1109 = vmatprep.mubr.f32.mxu0 0.0
    %1110 = vmatmul.mubr.f32.gmra.mxu0 %v883
    %v1111 = vpop.f32.mrf.mxu0
    %v1112 = vadd.f32 %v643, %v1111
    %v1113 = vpop.f32.mrf.mxu0
    %1114 = vdwg.mxu0
    %v1116 = vrot.slane %v1112, 6
    %v1118 = vmul.f32 %v964, %v1116
    %v1119 = vadd.f32 %v621, %v1118
    %v1120 = vtanh.pop %v1119
    %v1121 = vsub.f32 1.0, %v1044
    %v1122 = vmul.f32 %v1121, %v1120
    %v1123 = vrot.slane %v879, 6
    %v1125 = vmul.f32 %v1044, %v1123
    %v1126 = vadd.f32 %v1122, %v1125
    %s1127 = scalar_lea.vmem [#allocation11], 2
    %vm1128 = vcmask 257026
    %1129 = vst.msk [vmem:[%s1127 - $0x2] sm:$0xc] %vm1128, %v1126
    %v1131 = vrot.slane %v1126, 2
    %v1132 = vsel %vm645, %v1131, 0
    %1134 = vmatprep.subr.mxu0 0.0
    %1135 = vmatpush1.msra.mxu0 0.0
    %1136 = vmatprep.subr.mxu0 0.0
    %1137 = vmatpush1.msra.mxu0 0.0
    %1138 = vmatprep.subr.mxu0 0.0
    %1139 = vmatpush1.msra.mxu0 0.0
    %1140 = vmatprep.subr.mxu0 0.0
    %1141 = vmatpush1.msra.mxu0 0.0
    %1142 = vmatprep.subr.mxu0 0.0
    %1143 = vmatpush1.msra.mxu0 0.0
    %1144 = vmatprep.subr.mxu0 0.0
    %1145 = vmatpush1.msra.mxu0 0.0
    %1146 = vmatprep.subr.mxu0 0.0
    %1147 = vmatpush1.msra.mxu0 0.0
    %1148 = vmatprep.subr.mxu0 0.0
    %1149 = vmatpush1.msra.mxu0 0.0
    %1150 = vmatprep.subr.mxu0 0.0
    %1151 = vmatpush1.msra.mxu0 0.0
    %1152 = vmatprep.subr.mxu0 0.0
    %1153 = vmatpush1.msra.mxu0 0.0
    %1154 = vmatprep.subr.mxu0 0.0
    %1155 = vmatpush1.msra.mxu0 0.0
    %1156 = vmatprep.subr.mxu0 0.0
    %1157 = vmatpush1.msra.mxu0 0.0
    %1158 = vmatprep.subr.mxu0 0.0
    %1159 = vmatpush1.msra.mxu0 %v626
    %1160 = vmatprep.subr.mxu0 0.0
    %1161 = vmatpush1.msra.mxu0 %v625
    %1162 = vmatprep.subr.mxu0 0.0
    %1163 = vmatpush1.msra.mxu0 %v624
    %1164 = vmatprep.subr.mxu0 0.0
    %1165 = vmatpush1.msra.mxu0 %v623
    %1166 = vmatprep.subr.mxu0 0.0
    %1167 = vmatpush2.msra.mxu0 0.0
    %1168 = vmatprep.subr.mxu0 0.0
    %1169 = vmatpush2.msra.mxu0 0.0
    %1170 = vmatprep.subr.mxu0 0.0
    %1171 = vmatpush2.msra.mxu0 0.0
    %1172 = vmatprep.subr.mxu0 0.0
    %1173 = vmatpush2.msra.mxu0 0.0
    %1174 = vmatprep.subr.mxu0 0.0
    %1175 = vmatpush2.msra.mxu0 0.0
    %1176 = vmatprep.subr.mxu0 0.0
    %1177 = vmatpush2.msra.mxu0 0.0
    %1178 = vmatprep.subr.mxu0 0.0
    %1179 = vmatpush2.msra.mxu0 0.0
    %1180 = vmatprep.subr.mxu0 0.0
    %1181 = vmatpush2.msra.mxu0 0.0
    %1182 = vmatprep.subr.mxu0 0.0
    %1183 = vmatpush2.msra.mxu0 0.0
    %1184 = vmatprep.subr.mxu0 0.0
    %1185 = vmatpush2.msra.mxu0 0.0
    %1186 = vmatprep.subr.mxu0 0.0
    %1187 = vmatpush2.msra.mxu0 0.0
    %1188 = vmatprep.subr.mxu0 0.0
    %1189 = vmatpush2.msra.mxu0 0.0
    %1190 = vmatprep.subr.mxu0 0.0
    %1191 = vmatpush2.msra.mxu0 0.0
    %1192 = vmatprep.subr.mxu0 0.0
    %1193 = vmatpush2.msra.mxu0 0.0
    %1194 = vmatprep.subr.mxu0 0.0
    %1195 = vmatpush2.msra.mxu0 0.0
    %1196 = vmatprep.subr.mxu0 0.0
    %1197 = vmatpush2.msra.mxu0 0.0
    %1198 = vmatprep.mubr.f32.mxu0 0.0
    %1199 = vmatmul.mubr.f32.gmra.mxu0 %v1132
    %v1200 = vpop.f32.mrf.mxu0
    %v1201 = vadd.f32 0.0, %v1200
    %v1202 = vpop.f32.mrf.mxu0
    %1203 = vdwg.mxu0
    %v1205 = vrot.slane %v1201, 4
    %v1207 = vadd.f32 %v288, %v1205
    %v1208 = vxor.u32 %v1207, 2147483648
    %v1209 = vmul.f32 %v1208, 1.442695
    %v1210 = vpow.pop %v1209
    %v1211 = vadd.f32 %v1210, 1.0
    %v1212 = vrcp.pop %v1211
    %v1213 = vmul.f32 1.0, %v1212
    %1214 = vmatprep.subr.mxu0 0.0
    %1215 = vmatpush1.msra.mxu0 0.0
    %1216 = vmatprep.subr.mxu0 0.0
    %1217 = vmatpush1.msra.mxu0 0.0
    %1218 = vmatprep.subr.mxu0 0.0
    %1219 = vmatpush1.msra.mxu0 0.0
    %1220 = vmatprep.subr.mxu0 0.0
    %1221 = vmatpush1.msra.mxu0 0.0
    %1222 = vmatprep.subr.mxu0 0.0
    %1223 = vmatpush1.msra.mxu0 0.0
    %1224 = vmatprep.subr.mxu0 0.0
    %1225 = vmatpush1.msra.mxu0 0.0
    %1226 = vmatprep.subr.mxu0 0.0
    %1227 = vmatpush1.msra.mxu0 0.0
    %1228 = vmatprep.subr.mxu0 0.0
    %1229 = vmatpush1.msra.mxu0 0.0
    %1230 = vmatprep.subr.mxu0 0.0
    %1231 = vmatpush1.msra.mxu0 0.0
    %1232 = vmatprep.subr.mxu0 0.0
    %1233 = vmatpush1.msra.mxu0 0.0
    %1234 = vmatprep.subr.mxu0 0.0
    %1235 = vmatpush1.msra.mxu0 0.0
    %1236 = vmatprep.subr.mxu0 0.0
    %1237 = vmatpush1.msra.mxu0 0.0
    %1238 = vmatprep.subr.mxu0 0.0
    %1239 = vmatpush1.msra.mxu0 %v631
    %1240 = vmatprep.subr.mxu0 0.0
    %1241 = vmatpush1.msra.mxu0 %v630
    %1242 = vmatprep.subr.mxu0 0.0
    %1243 = vmatpush1.msra.mxu0 %v629
    %1244 = vmatprep.subr.mxu0 0.0
    %1245 = vmatpush1.msra.mxu0 %v628
    %1246 = vmatprep.subr.mxu0 0.0
    %1247 = vmatpush2.msra.mxu0 0.0
    %1248 = vmatprep.subr.mxu0 0.0
    %1249 = vmatpush2.msra.mxu0 0.0
    %1250 = vmatprep.subr.mxu0 0.0
    %1251 = vmatpush2.msra.mxu0 0.0
    %1252 = vmatprep.subr.mxu0 0.0
    %1253 = vmatpush2.msra.mxu0 0.0
    %1254 = vmatprep.subr.mxu0 0.0
    %1255 = vmatpush2.msra.mxu0 0.0
    %1256 = vmatprep.subr.mxu0 0.0
    %1257 = vmatpush2.msra.mxu0 0.0
    %1258 = vmatprep.subr.mxu0 0.0
    %1259 = vmatpush2.msra.mxu0 0.0
    %1260 = vmatprep.subr.mxu0 0.0
    %1261 = vmatpush2.msra.mxu0 0.0
    %1262 = vmatprep.subr.mxu0 0.0
    %1263 = vmatpush2.msra.mxu0 0.0
    %1264 = vmatprep.subr.mxu0 0.0
    %1265 = vmatpush2.msra.mxu0 0.0
    %1266 = vmatprep.subr.mxu0 0.0
    %1267 = vmatpush2.msra.mxu0 0.0
    %1268 = vmatprep.subr.mxu0 0.0
    %1269 = vmatpush2.msra.mxu0 0.0
    %1270 = vmatprep.subr.mxu0 0.0
    %1271 = vmatpush2.msra.mxu0 0.0
    %1272 = vmatprep.subr.mxu0 0.0
    %1273 = vmatpush2.msra.mxu0 0.0
    %1274 = vmatprep.subr.mxu0 0.0
    %1275 = vmatpush2.msra.mxu0 0.0
    %1276 = vmatprep.subr.mxu0 0.0
    %1277 = vmatpush2.msra.mxu0 0.0
    %1278 = vmatprep.mubr.f32.mxu0 0.0
    %1279 = vmatmul.mubr.f32.gmra.mxu0 %v1132
    %v1280 = vpop.f32.mrf.mxu0
    %v1281 = vadd.f32 0.0, %v1280
    %v1282 = vpop.f32.mrf.mxu0
    %1283 = vdwg.mxu0
    %v1285 = vrot.slane %v1281, 4
    %v1287 = vadd.f32 %v456, %v1285
    %v1288 = vxor.u32 %v1287, 2147483648
    %v1289 = vmul.f32 %v1288, 1.442695
    %v1290 = vpow.pop %v1289
    %v1291 = vadd.f32 %v1290, 1.0
    %v1292 = vrcp.pop %v1291
    %v1293 = vmul.f32 1.0, %v1292
    %1294 = vmatprep.subr.mxu0 0.0
    %1295 = vmatpush1.msra.mxu0 0.0
    %1296 = vmatprep.subr.mxu0 0.0
    %1297 = vmatpush1.msra.mxu0 0.0
    %1298 = vmatprep.subr.mxu0 0.0
    %1299 = vmatpush1.msra.mxu0 0.0
    %1300 = vmatprep.subr.mxu0 0.0
    %1301 = vmatpush1.msra.mxu0 0.0
    %1302 = vmatprep.subr.mxu0 0.0
    %1303 = vmatpush1.msra.mxu0 0.0
    %1304 = vmatprep.subr.mxu0 0.0
    %1305 = vmatpush1.msra.mxu0 0.0
    %1306 = vmatprep.subr.mxu0 0.0
    %1307 = vmatpush1.msra.mxu0 0.0
    %1308 = vmatprep.subr.mxu0 0.0
    %1309 = vmatpush1.msra.mxu0 0.0
    %1310 = vmatprep.subr.mxu0 0.0
    %1311 = vmatpush1.msra.mxu0 0.0
    %1312 = vmatprep.subr.mxu0 0.0
    %1313 = vmatpush1.msra.mxu0 0.0
    %1314 = vmatprep.subr.mxu0 0.0
    %1315 = vmatpush1.msra.mxu0 0.0
    %1316 = vmatprep.subr.mxu0 0.0
    %1317 = vmatpush1.msra.mxu0 0.0
    %1318 = vmatprep.subr.mxu0 0.0
    %1319 = vmatpush1.msra.mxu0 %v636
    %1320 = vmatprep.subr.mxu0 0.0
    %1321 = vmatpush1.msra.mxu0 %v635
    %1322 = vmatprep.subr.mxu0 0.0
    %1323 = vmatpush1.msra.mxu0 %v634
    %1324 = vmatprep.subr.mxu0 0.0
    %1325 = vmatpush1.msra.mxu0 %v633
    %1326 = vmatprep.subr.mxu0 0.0
    %1327 = vmatpush2.msra.mxu0 0.0
    %1328 = vmatprep.subr.mxu0 0.0
    %1329 = vmatpush2.msra.mxu0 0.0
    %1330 = vmatprep.subr.mxu0 0.0
    %1331 = vmatpush2.msra.mxu0 0.0
    %1332 = vmatprep.subr.mxu0 0.0
    %1333 = vmatpush2.msra.mxu0 0.0
    %1334 = vmatprep.subr.mxu0 0.0
    %1335 = vmatpush2.msra.mxu0 0.0
    %1336 = vmatprep.subr.mxu0 0.0
    %1337 = vmatpush2.msra.mxu0 0.0
    %1338 = vmatprep.subr.mxu0 0.0
    %1339 = vmatpush2.msra.mxu0 0.0
    %1340 = vmatprep.subr.mxu0 0.0
    %1341 = vmatpush2.msra.mxu0 0.0
    %1342 = vmatprep.subr.mxu0 0.0
    %1343 = vmatpush2.msra.mxu0 0.0
    %1344 = vmatprep.subr.mxu0 0.0
    %1345 = vmatpush2.msra.mxu0 0.0
    %1346 = vmatprep.subr.mxu0 0.0
    %1347 = vmatpush2.msra.mxu0 0.0
    %1348 = vmatprep.subr.mxu0 0.0
    %1349 = vmatpush2.msra.mxu0 0.0
    %1350 = vmatprep.subr.mxu0 0.0
    %1351 = vmatpush2.msra.mxu0 0.0
    %1352 = vmatprep.subr.mxu0 0.0
    %1353 = vmatpush2.msra.mxu0 0.0
    %1354 = vmatprep.subr.mxu0 0.0
    %1355 = vmatpush2.msra.mxu0 0.0
    %1356 = vmatprep.subr.mxu0 0.0
    %1357 = vmatpush2.msra.mxu0 0.0
    %1358 = vmatprep.mubr.f32.mxu0 0.0
    %1359 = vmatmul.mubr.f32.gmra.mxu0 %v1132
    %v1360 = vpop.f32.mrf.mxu0
    %v1361 = vadd.f32 %v643, %v1360
    %v1362 = vpop.f32.mrf.mxu0
    %1363 = vdwg.mxu0
    %v1365 = vrot.slane %v1361, 4
    %v1367 = vmul.f32 %v1213, %v1365
    %v1368 = vadd.f32 %v621, %v1367
    %v1369 = vtanh.pop %v1368
    %v1370 = vsub.f32 1.0, %v1293
    %v1371 = vmul.f32 %v1370, %v1369
    %v1372 = vrot.slane %v1126, 6
    %v1374 = vmul.f32 %v1293, %v1372
    %v1375 = vadd.f32 %v1371, %v1374
    %s1376 = scalar_lea.vmem [#allocation11], 4
    %vm1377 = vcmask 259076
    %1378 = vst.msk [vmem:[%s1376 - $0x4] sm:$0x30] %vm1377, %v1375
    %v1380 = vrot.slane %v1375, 4
    %v1381 = vsel %vm645, %v1380, 0
    %1383 = vmatprep.subr.mxu0 0.0
    %1384 = vmatpush1.msra.mxu0 0.0
    %1385 = vmatprep.subr.mxu0 0.0
    %1386 = vmatpush1.msra.mxu0 0.0
    %1387 = vmatprep.subr.mxu0 0.0
    %1388 = vmatpush1.msra.mxu0 0.0
    %1389 = vmatprep.subr.mxu0 0.0
    %1390 = vmatpush1.msra.mxu0 0.0
    %1391 = vmatprep.subr.mxu0 0.0
    %1392 = vmatpush1.msra.mxu0 0.0
    %1393 = vmatprep.subr.mxu0 0.0
    %1394 = vmatpush1.msra.mxu0 0.0
    %1395 = vmatprep.subr.mxu0 0.0
    %1396 = vmatpush1.msra.mxu0 0.0
    %1397 = vmatprep.subr.mxu0 0.0
    %1398 = vmatpush1.msra.mxu0 0.0
    %1399 = vmatprep.subr.mxu0 0.0
    %1400 = vmatpush1.msra.mxu0 0.0
    %1401 = vmatprep.subr.mxu0 0.0
    %1402 = vmatpush1.msra.mxu0 0.0
    %1403 = vmatprep.subr.mxu0 0.0
    %1404 = vmatpush1.msra.mxu0 0.0
    %1405 = vmatprep.subr.mxu0 0.0
    %1406 = vmatpush1.msra.mxu0 0.0
    %1407 = vmatprep.subr.mxu0 0.0
    %1408 = vmatpush1.msra.mxu0 %v626
    %1409 = vmatprep.subr.mxu0 0.0
    %1410 = vmatpush1.msra.mxu0 %v625
    %1411 = vmatprep.subr.mxu0 0.0
    %1412 = vmatpush1.msra.mxu0 %v624
    %1413 = vmatprep.subr.mxu0 0.0
    %1414 = vmatpush1.msra.mxu0 %v623
    %1415 = vmatprep.subr.mxu0 0.0
    %1416 = vmatpush2.msra.mxu0 0.0
    %1417 = vmatprep.subr.mxu0 0.0
    %1418 = vmatpush2.msra.mxu0 0.0
    %1419 = vmatprep.subr.mxu0 0.0
    %1420 = vmatpush2.msra.mxu0 0.0
    %1421 = vmatprep.subr.mxu0 0.0
    %1422 = vmatpush2.msra.mxu0 0.0
    %1423 = vmatprep.subr.mxu0 0.0
    %1424 = vmatpush2.msra.mxu0 0.0
    %1425 = vmatprep.subr.mxu0 0.0
    %1426 = vmatpush2.msra.mxu0 0.0
    %1427 = vmatprep.subr.mxu0 0.0
    %1428 = vmatpush2.msra.mxu0 0.0
    %1429 = vmatprep.subr.mxu0 0.0
    %1430 = vmatpush2.msra.mxu0 0.0
    %1431 = vmatprep.subr.mxu0 0.0
    %1432 = vmatpush2.msra.mxu0 0.0
    %1433 = vmatprep.subr.mxu0 0.0
    %1434 = vmatpush2.msra.mxu0 0.0
    %1435 = vmatprep.subr.mxu0 0.0
    %1436 = vmatpush2.msra.mxu0 0.0
    %1437 = vmatprep.subr.mxu0 0.0
    %1438 = vmatpush2.msra.mxu0 0.0
    %1439 = vmatprep.subr.mxu0 0.0
    %1440 = vmatpush2.msra.mxu0 0.0
    %1441 = vmatprep.subr.mxu0 0.0
    %1442 = vmatpush2.msra.mxu0 0.0
    %1443 = vmatprep.subr.mxu0 0.0
    %1444 = vmatpush2.msra.mxu0 0.0
    %1445 = vmatprep.subr.mxu0 0.0
    %1446 = vmatpush2.msra.mxu0 0.0
    %1447 = vmatprep.mubr.f32.mxu0 0.0
    %1448 = vmatmul.mubr.f32.gmra.mxu0 %v1381
    %v1449 = vpop.f32.mrf.mxu0
    %v1450 = vadd.f32 0.0, %v1449
    %v1451 = vpop.f32.mrf.mxu0
    %1452 = vdwg.mxu0
    %v1454 = vrot.slane %v1450, 2
    %v1456 = vadd.f32 %v288, %v1454
    %v1457 = vxor.u32 %v1456, 2147483648
    %v1458 = vmul.f32 %v1457, 1.442695
    %v1459 = vpow.pop %v1458
    %v1460 = vadd.f32 %v1459, 1.0
    %v1461 = vrcp.pop %v1460
    %v1462 = vmul.f32 1.0, %v1461
    %1463 = vmatprep.subr.mxu0 0.0
    %1464 = vmatpush1.msra.mxu0 0.0
    %1465 = vmatprep.subr.mxu0 0.0
    %1466 = vmatpush1.msra.mxu0 0.0
    %1467 = vmatprep.subr.mxu0 0.0
    %1468 = vmatpush1.msra.mxu0 0.0
    %1469 = vmatprep.subr.mxu0 0.0
    %1470 = vmatpush1.msra.mxu0 0.0
    %1471 = vmatprep.subr.mxu0 0.0
    %1472 = vmatpush1.msra.mxu0 0.0
    %1473 = vmatprep.subr.mxu0 0.0
    %1474 = vmatpush1.msra.mxu0 0.0
    %1475 = vmatprep.subr.mxu0 0.0
    %1476 = vmatpush1.msra.mxu0 0.0
    %1477 = vmatprep.subr.mxu0 0.0
    %1478 = vmatpush1.msra.mxu0 0.0
    %1479 = vmatprep.subr.mxu0 0.0
    %1480 = vmatpush1.msra.mxu0 0.0
    %1481 = vmatprep.subr.mxu0 0.0
    %1482 = vmatpush1.msra.mxu0 0.0
    %1483 = vmatprep.subr.mxu0 0.0
    %1484 = vmatpush1.msra.mxu0 0.0
    %1485 = vmatprep.subr.mxu0 0.0
    %1486 = vmatpush1.msra.mxu0 0.0
    %1487 = vmatprep.subr.mxu0 0.0
    %1488 = vmatpush1.msra.mxu0 %v631
    %1489 = vmatprep.subr.mxu0 0.0
    %1490 = vmatpush1.msra.mxu0 %v630
    %1491 = vmatprep.subr.mxu0 0.0
    %1492 = vmatpush1.msra.mxu0 %v629
    %1493 = vmatprep.subr.mxu0 0.0
    %1494 = vmatpush1.msra.mxu0 %v628
    %1495 = vmatprep.subr.mxu0 0.0
    %1496 = vmatpush2.msra.mxu0 0.0
    %1497 = vmatprep.subr.mxu0 0.0
    %1498 = vmatpush2.msra.mxu0 0.0
    %1499 = vmatprep.subr.mxu0 0.0
    %1500 = vmatpush2.msra.mxu0 0.0
    %1501 = vmatprep.subr.mxu0 0.0
    %1502 = vmatpush2.msra.mxu0 0.0
    %1503 = vmatprep.subr.mxu0 0.0
    %1504 = vmatpush2.msra.mxu0 0.0
    %1505 = vmatprep.subr.mxu0 0.0
    %1506 = vmatpush2.msra.mxu0 0.0
    %1507 = vmatprep.subr.mxu0 0.0
    %1508 = vmatpush2.msra.mxu0 0.0
    %1509 = vmatprep.subr.mxu0 0.0
    %1510 = vmatpush2.msra.mxu0 0.0
    %1511 = vmatprep.subr.mxu0 0.0
    %1512 = vmatpush2.msra.mxu0 0.0
    %1513 = vmatprep.subr.mxu0 0.0
    %1514 = vmatpush2.msra.mxu0 0.0
    %1515 = vmatprep.subr.mxu0 0.0
    %1516 = vmatpush2.msra.mxu0 0.0
    %1517 = vmatprep.subr.mxu0 0.0
    %1518 = vmatpush2.msra.mxu0 0.0
    %1519 = vmatprep.subr.mxu0 0.0
    %1520 = vmatpush2.msra.mxu0 0.0
    %1521 = vmatprep.subr.mxu0 0.0
    %1522 = vmatpush2.msra.mxu0 0.0
    %1523 = vmatprep.subr.mxu0 0.0
    %1524 = vmatpush2.msra.mxu0 0.0
    %1525 = vmatprep.subr.mxu0 0.0
    %1526 = vmatpush2.msra.mxu0 0.0
    %1527 = vmatprep.mubr.f32.mxu0 0.0
    %1528 = vmatmul.mubr.f32.gmra.mxu0 %v1381
    %v1529 = vpop.f32.mrf.mxu0
    %v1530 = vadd.f32 0.0, %v1529
    %v1531 = vpop.f32.mrf.mxu0
    %1532 = vdwg.mxu0
    %v1534 = vrot.slane %v1530, 2
    %v1536 = vadd.f32 %v456, %v1534
    %v1537 = vxor.u32 %v1536, 2147483648
    %v1538 = vmul.f32 %v1537, 1.442695
    %v1539 = vpow.pop %v1538
    %v1540 = vadd.f32 %v1539, 1.0
    %v1541 = vrcp.pop %v1540
    %v1542 = vmul.f32 1.0, %v1541
    %1543 = vmatprep.subr.mxu0 0.0
    %1544 = vmatpush1.msra.mxu0 0.0
    %1545 = vmatprep.subr.mxu0 0.0
    %1546 = vmatpush1.msra.mxu0 0.0
    %1547 = vmatprep.subr.mxu0 0.0
    %1548 = vmatpush1.msra.mxu0 0.0
    %1549 = vmatprep.subr.mxu0 0.0
    %1550 = vmatpush1.msra.mxu0 0.0
    %1551 = vmatprep.subr.mxu0 0.0
    %1552 = vmatpush1.msra.mxu0 0.0
    %1553 = vmatprep.subr.mxu0 0.0
    %1554 = vmatpush1.msra.mxu0 0.0
    %1555 = vmatprep.subr.mxu0 0.0
    %1556 = vmatpush1.msra.mxu0 0.0
    %1557 = vmatprep.subr.mxu0 0.0
    %1558 = vmatpush1.msra.mxu0 0.0
    %1559 = vmatprep.subr.mxu0 0.0
    %1560 = vmatpush1.msra.mxu0 0.0
    %1561 = vmatprep.subr.mxu0 0.0
    %1562 = vmatpush1.msra.mxu0 0.0
    %1563 = vmatprep.subr.mxu0 0.0
    %1564 = vmatpush1.msra.mxu0 0.0
    %1565 = vmatprep.subr.mxu0 0.0
    %1566 = vmatpush1.msra.mxu0 0.0
    %1567 = vmatprep.subr.mxu0 0.0
    %1568 = vmatpush1.msra.mxu0 %v636
    %1569 = vmatprep.subr.mxu0 0.0
    %1570 = vmatpush1.msra.mxu0 %v635
    %1571 = vmatprep.subr.mxu0 0.0
    %1572 = vmatpush1.msra.mxu0 %v634
    %1573 = vmatprep.subr.mxu0 0.0
    %1574 = vmatpush1.msra.mxu0 %v633
    %1575 = vmatprep.subr.mxu0 0.0
    %1576 = vmatpush2.msra.mxu0 0.0
    %1577 = vmatprep.subr.mxu0 0.0
    %1578 = vmatpush2.msra.mxu0 0.0
    %1579 = vmatprep.subr.mxu0 0.0
    %1580 = vmatpush2.msra.mxu0 0.0
    %1581 = vmatprep.subr.mxu0 0.0
    %1582 = vmatpush2.msra.mxu0 0.0
    %1583 = vmatprep.subr.mxu0 0.0
    %1584 = vmatpush2.msra.mxu0 0.0
    %1585 = vmatprep.subr.mxu0 0.0
    %1586 = vmatpush2.msra.mxu0 0.0
    %1587 = vmatprep.subr.mxu0 0.0
    %1588 = vmatpush2.msra.mxu0 0.0
    %1589 = vmatprep.subr.mxu0 0.0
    %1590 = vmatpush2.msra.mxu0 0.0
    %1591 = vmatprep.subr.mxu0 0.0
    %1592 = vmatpush2.msra.mxu0 0.0
    %1593 = vmatprep.subr.mxu0 0.0
    %1594 = vmatpush2.msra.mxu0 0.0
    %1595 = vmatprep.subr.mxu0 0.0
    %1596 = vmatpush2.msra.mxu0 0.0
    %1597 = vmatprep.subr.mxu0 0.0
    %1598 = vmatpush2.msra.mxu0 0.0
    %1599 = vmatprep.subr.mxu0 0.0
    %1600 = vmatpush2.msra.mxu0 0.0
    %1601 = vmatprep.subr.mxu0 0.0
    %1602 = vmatpush2.msra.mxu0 0.0
    %1603 = vmatprep.subr.mxu0 0.0
    %1604 = vmatpush2.msra.mxu0 0.0
    %1605 = vmatprep.subr.mxu0 0.0
    %1606 = vmatpush2.msra.mxu0 0.0
    %1607 = vmatprep.mubr.f32.mxu0 0.0
    %1608 = vmatmul.mubr.f32.gmra.mxu0 %v1381
    %v1609 = vpop.f32.mrf.mxu0
    %v1610 = vadd.f32 %v643, %v1609
    %v1611 = vpop.f32.mrf.mxu0
    %1612 = vdwg.mxu0
    %v1614 = vrot.slane %v1610, 2
    %v1616 = vmul.f32 %v1462, %v1614
    %v1617 = vadd.f32 %v621, %v1616
    %v1618 = vtanh.pop %v1617
    %v1619 = vsub.f32 1.0, %v1542
    %v1620 = vmul.f32 %v1619, %v1618
    %v1621 = vrot.slane %v1375, 6
    %v1623 = vmul.f32 %v1542, %v1621
    %v1624 = vadd.f32 %v1620, %v1623
    %s1625 = scalar_lea.vmem [#allocation11], 6
    %vm1626 = vcmask 261126
    %1627 = vst.msk [vmem:[%s1625 - $0x6] sm:$0xc0] %vm1626, %v1624
    %v1629 = vrot.slane %v1624, 6
    %v1630 = vsel %vm645, %v1629, 0
    %1632 = vmatprep.subr.mxu0 0.0
    %1633 = vmatpush1.msra.mxu0 0.0
    %1634 = vmatprep.subr.mxu0 0.0
    %1635 = vmatpush1.msra.mxu0 0.0
    %1636 = vmatprep.subr.mxu0 0.0
    %1637 = vmatpush1.msra.mxu0 0.0
    %1638 = vmatprep.subr.mxu0 0.0
    %1639 = vmatpush1.msra.mxu0 0.0
    %1640 = vmatprep.subr.mxu0 0.0
    %1641 = vmatpush1.msra.mxu0 0.0
    %1642 = vmatprep.subr.mxu0 0.0
    %1643 = vmatpush1.msra.mxu0 0.0
    %1644 = vmatprep.subr.mxu0 0.0
    %1645 = vmatpush1.msra.mxu0 0.0
    %1646 = vmatprep.subr.mxu0 0.0
    %1647 = vmatpush1.msra.mxu0 0.0
    %1648 = vmatprep.subr.mxu0 0.0
    %1649 = vmatpush1.msra.mxu0 0.0
    %1650 = vmatprep.subr.mxu0 0.0
    %1651 = vmatpush1.msra.mxu0 0.0
    %1652 = vmatprep.subr.mxu0 0.0
    %1653 = vmatpush1.msra.mxu0 0.0
    %1654 = vmatprep.subr.mxu0 0.0
    %1655 = vmatpush1.msra.mxu0 0.0
    %1656 = vmatprep.subr.mxu0 0.0
    %1657 = vmatpush1.msra.mxu0 %v626
    %1658 = vmatprep.subr.mxu0 0.0
    %1659 = vmatpush1.msra.mxu0 %v625
    %1660 = vmatprep.subr.mxu0 0.0
    %1661 = vmatpush1.msra.mxu0 %v624
    %1662 = vmatprep.subr.mxu0 0.0
    %1663 = vmatpush1.msra.mxu0 %v623
    %1664 = vmatprep.subr.mxu0 0.0
    %1665 = vmatpush2.msra.mxu0 0.0
    %1666 = vmatprep.subr.mxu0 0.0
    %1667 = vmatpush2.msra.mxu0 0.0
    %1668 = vmatprep.subr.mxu0 0.0
    %1669 = vmatpush2.msra.mxu0 0.0
    %1670 = vmatprep.subr.mxu0 0.0
    %1671 = vmatpush2.msra.mxu0 0.0
    %1672 = vmatprep.subr.mxu0 0.0
    %1673 = vmatpush2.msra.mxu0 0.0
    %1674 = vmatprep.subr.mxu0 0.0
    %1675 = vmatpush2.msra.mxu0 0.0
    %1676 = vmatprep.subr.mxu0 0.0
    %1677 = vmatpush2.msra.mxu0 0.0
    %1678 = vmatprep.subr.mxu0 0.0
    %1679 = vmatpush2.msra.mxu0 0.0
    %1680 = vmatprep.subr.mxu0 0.0
    %1681 = vmatpush2.msra.mxu0 0.0
    %1682 = vmatprep.subr.mxu0 0.0
    %1683 = vmatpush2.msra.mxu0 0.0
    %1684 = vmatprep.subr.mxu0 0.0
    %1685 = vmatpush2.msra.mxu0 0.0
    %1686 = vmatprep.subr.mxu0 0.0
    %1687 = vmatpush2.msra.mxu0 0.0
    %1688 = vmatprep.subr.mxu0 0.0
    %1689 = vmatpush2.msra.mxu0 0.0
    %1690 = vmatprep.subr.mxu0 0.0
    %1691 = vmatpush2.msra.mxu0 0.0
    %1692 = vmatprep.subr.mxu0 0.0
    %1693 = vmatpush2.msra.mxu0 0.0
    %1694 = vmatprep.subr.mxu0 0.0
    %1695 = vmatpush2.msra.mxu0 0.0
    %1696 = vmatprep.mubr.f32.mxu0 0.0
    %1697 = vmatmul.mubr.f32.gmra.mxu0 %v1630
    %v1698 = vpop.f32.mrf.mxu0
    %v1699 = vadd.f32 0.0, %v1698
    %v1700 = vpop.f32.mrf.mxu0
    %1701 = vdwg.mxu0
    %v1702 = vadd.f32 %v289, %v1699
    %v1703 = vxor.u32 %v1702, 2147483648
    %v1704 = vmul.f32 %v1703, 1.442695
    %v1705 = vpow.pop %v1704
    %v1706 = vadd.f32 %v1705, 1.0
    %v1707 = vrcp.pop %v1706
    %v1708 = vmul.f32 1.0, %v1707
    %1709 = vmatprep.subr.mxu0 0.0
    %1710 = vmatpush1.msra.mxu0 0.0
    %1711 = vmatprep.subr.mxu0 0.0
    %1712 = vmatpush1.msra.mxu0 0.0
    %1713 = vmatprep.subr.mxu0 0.0
    %1714 = vmatpush1.msra.mxu0 0.0
    %1715 = vmatprep.subr.mxu0 0.0
    %1716 = vmatpush1.msra.mxu0 0.0
    %1717 = vmatprep.subr.mxu0 0.0
    %1718 = vmatpush1.msra.mxu0 0.0
    %1719 = vmatprep.subr.mxu0 0.0
    %1720 = vmatpush1.msra.mxu0 0.0
    %1721 = vmatprep.subr.mxu0 0.0
    %1722 = vmatpush1.msra.mxu0 0.0
    %1723 = vmatprep.subr.mxu0 0.0
    %1724 = vmatpush1.msra.mxu0 0.0
    %1725 = vmatprep.subr.mxu0 0.0
    %1726 = vmatpush1.msra.mxu0 0.0
    %1727 = vmatprep.subr.mxu0 0.0
    %1728 = vmatpush1.msra.mxu0 0.0
    %1729 = vmatprep.subr.mxu0 0.0
    %1730 = vmatpush1.msra.mxu0 0.0
    %1731 = vmatprep.subr.mxu0 0.0
    %1732 = vmatpush1.msra.mxu0 0.0
    %1733 = vmatprep.subr.mxu0 0.0
    %1734 = vmatpush1.msra.mxu0 %v631
    %1735 = vmatprep.subr.mxu0 0.0
    %1736 = vmatpush1.msra.mxu0 %v630
    %1737 = vmatprep.subr.mxu0 0.0
    %1738 = vmatpush1.msra.mxu0 %v629
    %1739 = vmatprep.subr.mxu0 0.0
    %1740 = vmatpush1.msra.mxu0 %v628
    %1741 = vmatprep.subr.mxu0 0.0
    %1742 = vmatpush2.msra.mxu0 0.0
    %1743 = vmatprep.subr.mxu0 0.0
    %1744 = vmatpush2.msra.mxu0 0.0
    %1745 = vmatprep.subr.mxu0 0.0
    %1746 = vmatpush2.msra.mxu0 0.0
    %1747 = vmatprep.subr.mxu0 0.0
    %1748 = vmatpush2.msra.mxu0 0.0
    %1749 = vmatprep.subr.mxu0 0.0
    %1750 = vmatpush2.msra.mxu0 0.0
    %1751 = vmatprep.subr.mxu0 0.0
    %1752 = vmatpush2.msra.mxu0 0.0
    %1753 = vmatprep.subr.mxu0 0.0
    %1754 = vmatpush2.msra.mxu0 0.0
    %1755 = vmatprep.subr.mxu0 0.0
    %1756 = vmatpush2.msra.mxu0 0.0
    %1757 = vmatprep.subr.mxu0 0.0
    %1758 = vmatpush2.msra.mxu0 0.0
    %1759 = vmatprep.subr.mxu0 0.0
    %1760 = vmatpush2.msra.mxu0 0.0
    %1761 = vmatprep.subr.mxu0 0.0
    %1762 = vmatpush2.msra.mxu0 0.0
    %1763 = vmatprep.subr.mxu0 0.0
    %1764 = vmatpush2.msra.mxu0 0.0
    %1765 = vmatprep.subr.mxu0 0.0
    %1766 = vmatpush2.msra.mxu0 0.0
    %1767 = vmatprep.subr.mxu0 0.0
    %1768 = vmatpush2.msra.mxu0 0.0
    %1769 = vmatprep.subr.mxu0 0.0
    %1770 = vmatpush2.msra.mxu0 0.0
    %1771 = vmatprep.subr.mxu0 0.0
    %1772 = vmatpush2.msra.mxu0 0.0
    %1773 = vmatprep.mubr.f32.mxu0 0.0
    %1774 = vmatmul.mubr.f32.gmra.mxu0 %v1630
    %v1775 = vpop.f32.mrf.mxu0
    %v1776 = vadd.f32 0.0, %v1775
    %v1777 = vpop.f32.mrf.mxu0
    %1778 = vdwg.mxu0
    %v1779 = vadd.f32 %v457, %v1776
    %v1780 = vxor.u32 %v1779, 2147483648
    %v1781 = vmul.f32 %v1780, 1.442695
    %v1782 = vpow.pop %v1781
    %v1783 = vadd.f32 %v1782, 1.0
    %v1784 = vrcp.pop %v1783
    %v1785 = vmul.f32 1.0, %v1784
    %1786 = vmatprep.subr.mxu0 0.0
    %1787 = vmatpush1.msra.mxu0 0.0
    %1788 = vmatprep.subr.mxu0 0.0
    %1789 = vmatpush1.msra.mxu0 0.0
    %1790 = vmatprep.subr.mxu0 0.0
    %1791 = vmatpush1.msra.mxu0 0.0
    %1792 = vmatprep.subr.mxu0 0.0
    %1793 = vmatpush1.msra.mxu0 0.0
    %1794 = vmatprep.subr.mxu0 0.0
    %1795 = vmatpush1.msra.mxu0 0.0
    %1796 = vmatprep.subr.mxu0 0.0
    %1797 = vmatpush1.msra.mxu0 0.0
    %1798 = vmatprep.subr.mxu0 0.0
    %1799 = vmatpush1.msra.mxu0 0.0
    %1800 = vmatprep.subr.mxu0 0.0
    %1801 = vmatpush1.msra.mxu0 0.0
    %1802 = vmatprep.subr.mxu0 0.0
    %1803 = vmatpush1.msra.mxu0 0.0
    %1804 = vmatprep.subr.mxu0 0.0
    %1805 = vmatpush1.msra.mxu0 0.0
    %1806 = vmatprep.subr.mxu0 0.0
    %1807 = vmatpush1.msra.mxu0 0.0
    %1808 = vmatprep.subr.mxu0 0.0
    %1809 = vmatpush1.msra.mxu0 0.0
    %1810 = vmatprep.subr.mxu0 0.0
    %1811 = vmatpush1.msra.mxu0 %v636
    %1812 = vmatprep.subr.mxu0 0.0
    %1813 = vmatpush1.msra.mxu0 %v635
    %1814 = vmatprep.subr.mxu0 0.0
    %1815 = vmatpush1.msra.mxu0 %v634
    %1816 = vmatprep.subr.mxu0 0.0
    %1817 = vmatpush1.msra.mxu0 %v633
    %1818 = vmatprep.subr.mxu0 0.0
    %1819 = vmatpush2.msra.mxu0 0.0
    %1820 = vmatprep.subr.mxu0 0.0
    %1821 = vmatpush2.msra.mxu0 0.0
    %1822 = vmatprep.subr.mxu0 0.0
    %1823 = vmatpush2.msra.mxu0 0.0
    %1824 = vmatprep.subr.mxu0 0.0
    %1825 = vmatpush2.msra.mxu0 0.0
    %1826 = vmatprep.subr.mxu0 0.0
    %1827 = vmatpush2.msra.mxu0 0.0
    %1828 = vmatprep.subr.mxu0 0.0
    %1829 = vmatpush2.msra.mxu0 0.0
    %1830 = vmatprep.subr.mxu0 0.0
    %1831 = vmatpush2.msra.mxu0 0.0
    %1832 = vmatprep.subr.mxu0 0.0
    %1833 = vmatpush2.msra.mxu0 0.0
    %1834 = vmatprep.subr.mxu0 0.0
    %1835 = vmatpush2.msra.mxu0 0.0
    %1836 = vmatprep.subr.mxu0 0.0
    %1837 = vmatpush2.msra.mxu0 0.0
    %1838 = vmatprep.subr.mxu0 0.0
    %1839 = vmatpush2.msra.mxu0 0.0
    %1840 = vmatprep.subr.mxu0 0.0
    %1841 = vmatpush2.msra.mxu0 0.0
    %1842 = vmatprep.subr.mxu0 0.0
    %1843 = vmatpush2.msra.mxu0 0.0
    %1844 = vmatprep.subr.mxu0 0.0
    %1845 = vmatpush2.msra.mxu0 0.0
    %1846 = vmatprep.subr.mxu0 0.0
    %1847 = vmatpush2.msra.mxu0 0.0
    %1848 = vmatprep.subr.mxu0 0.0
    %1849 = vmatpush2.msra.mxu0 0.0
    %1850 = vmatprep.mubr.f32.mxu0 0.0
    %1851 = vmatmul.mubr.f32.gmra.mxu0 %v1630
    %v1852 = vpop.f32.mrf.mxu0
    %v1853 = vadd.f32 %v643, %v1852
    %v1854 = vpop.f32.mrf.mxu0
    %1855 = vdwg.mxu0
    %v1856 = vmul.f32 %v1708, %v1853
    %v1857 = vadd.f32 %v622, %v1856
    %v1858 = vtanh.pop %v1857
    %v1859 = vsub.f32 1.0, %v1785
    %v1860 = vmul.f32 %v1859, %v1858
    %v1862 = vmul.f32 %v1785, %v1629
    %v1863 = vadd.f32 %v1860, %v1862
    %s1864 = scalar_lea.vmem [#allocation11], 8
    %1865 = vst.msk [vmem:[%s1864] sm:$0x3] %vm880, %v1863
    %v1867 = vsel %vm645, %v1863, 0
    %1869 = vmatprep.subr.mxu0 0.0
    %1870 = vmatpush1.msra.mxu0 0.0
    %1871 = vmatprep.subr.mxu0 0.0
    %1872 = vmatpush1.msra.mxu0 0.0
    %1873 = vmatprep.subr.mxu0 0.0
    %1874 = vmatpush1.msra.mxu0 0.0
    %1875 = vmatprep.subr.mxu0 0.0
    %1876 = vmatpush1.msra.mxu0 0.0
    %1877 = vmatprep.subr.mxu0 0.0
    %1878 = vmatpush1.msra.mxu0 0.0
    %1879 = vmatprep.subr.mxu0 0.0
    %1880 = vmatpush1.msra.mxu0 0.0
    %1881 = vmatprep.subr.mxu0 0.0
    %1882 = vmatpush1.msra.mxu0 0.0
    %1883 = vmatprep.subr.mxu0 0.0
    %1884 = vmatpush1.msra.mxu0 0.0
    %1885 = vmatprep.subr.mxu0 0.0
    %1886 = vmatpush1.msra.mxu0 0.0
    %1887 = vmatprep.subr.mxu0 0.0
    %1888 = vmatpush1.msra.mxu0 0.0
    %1889 = vmatprep.subr.mxu0 0.0
    %1890 = vmatpush1.msra.mxu0 0.0
    %1891 = vmatprep.subr.mxu0 0.0
    %1892 = vmatpush1.msra.mxu0 0.0
    %1893 = vmatprep.subr.mxu0 0.0
    %1894 = vmatpush1.msra.mxu0 %v626
    %1895 = vmatprep.subr.mxu0 0.0
    %1896 = vmatpush1.msra.mxu0 %v625
    %1897 = vmatprep.subr.mxu0 0.0
    %1898 = vmatpush1.msra.mxu0 %v624
    %1899 = vmatprep.subr.mxu0 0.0
    %1900 = vmatpush1.msra.mxu0 %v623
    %1901 = vmatprep.subr.mxu0 0.0
    %1902 = vmatpush2.msra.mxu0 0.0
    %1903 = vmatprep.subr.mxu0 0.0
    %1904 = vmatpush2.msra.mxu0 0.0
    %1905 = vmatprep.subr.mxu0 0.0
    %1906 = vmatpush2.msra.mxu0 0.0
    %1907 = vmatprep.subr.mxu0 0.0
    %1908 = vmatpush2.msra.mxu0 0.0
    %1909 = vmatprep.subr.mxu0 0.0
    %1910 = vmatpush2.msra.mxu0 0.0
    %1911 = vmatprep.subr.mxu0 0.0
    %1912 = vmatpush2.msra.mxu0 0.0
    %1913 = vmatprep.subr.mxu0 0.0
    %1914 = vmatpush2.msra.mxu0 0.0
    %1915 = vmatprep.subr.mxu0 0.0
    %1916 = vmatpush2.msra.mxu0 0.0
    %1917 = vmatprep.subr.mxu0 0.0
    %1918 = vmatpush2.msra.mxu0 0.0
    %1919 = vmatprep.subr.mxu0 0.0
    %1920 = vmatpush2.msra.mxu0 0.0
    %1921 = vmatprep.subr.mxu0 0.0
    %1922 = vmatpush2.msra.mxu0 0.0
    %1923 = vmatprep.subr.mxu0 0.0
    %1924 = vmatpush2.msra.mxu0 0.0
    %1925 = vmatprep.subr.mxu0 0.0
    %1926 = vmatpush2.msra.mxu0 0.0
    %1927 = vmatprep.subr.mxu0 0.0
    %1928 = vmatpush2.msra.mxu0 0.0
    %1929 = vmatprep.subr.mxu0 0.0
    %1930 = vmatpush2.msra.mxu0 0.0
    %1931 = vmatprep.subr.mxu0 0.0
    %1932 = vmatpush2.msra.mxu0 0.0
    %1933 = vmatprep.mubr.f32.mxu0 0.0
    %1934 = vmatmul.mubr.f32.gmra.mxu0 %v1867
    %v1935 = vpop.f32.mrf.mxu0
    %v1936 = vadd.f32 0.0, %v1935
    %v1937 = vpop.f32.mrf.mxu0
    %1938 = vdwg.mxu0
    %v1940 = vrot.slane %v1936, 6
    %v1942 = vadd.f32 %v289, %v1940
    %v1943 = vxor.u32 %v1942, 2147483648
    %v1944 = vmul.f32 %v1943, 1.442695
    %v1945 = vpow.pop %v1944
    %v1946 = vadd.f32 %v1945, 1.0
    %v1947 = vrcp.pop %v1946
    %v1948 = vmul.f32 1.0, %v1947
    %1949 = vmatprep.subr.mxu0 0.0
    %1950 = vmatpush1.msra.mxu0 0.0
    %1951 = vmatprep.subr.mxu0 0.0
    %1952 = vmatpush1.msra.mxu0 0.0
    %1953 = vmatprep.subr.mxu0 0.0
    %1954 = vmatpush1.msra.mxu0 0.0
    %1955 = vmatprep.subr.mxu0 0.0
    %1956 = vmatpush1.msra.mxu0 0.0
    %1957 = vmatprep.subr.mxu0 0.0
    %1958 = vmatpush1.msra.mxu0 0.0
    %1959 = vmatprep.subr.mxu0 0.0
    %1960 = vmatpush1.msra.mxu0 0.0
    %1961 = vmatprep.subr.mxu0 0.0
    %1962 = vmatpush1.msra.mxu0 0.0
    %1963 = vmatprep.subr.mxu0 0.0
    %1964 = vmatpush1.msra.mxu0 0.0
    %1965 = vmatprep.subr.mxu0 0.0
    %1966 = vmatpush1.msra.mxu0 0.0
    %1967 = vmatprep.subr.mxu0 0.0
    %1968 = vmatpush1.msra.mxu0 0.0
    %1969 = vmatprep.subr.mxu0 0.0
    %1970 = vmatpush1.msra.mxu0 0.0
    %1971 = vmatprep.subr.mxu0 0.0
    %1972 = vmatpush1.msra.mxu0 0.0
    %1973 = vmatprep.subr.mxu0 0.0
    %1974 = vmatpush1.msra.mxu0 %v631
    %1975 = vmatprep.subr.mxu0 0.0
    %1976 = vmatpush1.msra.mxu0 %v630
    %1977 = vmatprep.subr.mxu0 0.0
    %1978 = vmatpush1.msra.mxu0 %v629
    %1979 = vmatprep.subr.mxu0 0.0
    %1980 = vmatpush1.msra.mxu0 %v628
    %1981 = vmatprep.subr.mxu0 0.0
    %1982 = vmatpush2.msra.mxu0 0.0
    %1983 = vmatprep.subr.mxu0 0.0
    %1984 = vmatpush2.msra.mxu0 0.0
    %1985 = vmatprep.subr.mxu0 0.0
    %1986 = vmatpush2.msra.mxu0 0.0
    %1987 = vmatprep.subr.mxu0 0.0
    %1988 = vmatpush2.msra.mxu0 0.0
    %1989 = vmatprep.subr.mxu0 0.0
    %1990 = vmatpush2.msra.mxu0 0.0
    %1991 = vmatprep.subr.mxu0 0.0
    %1992 = vmatpush2.msra.mxu0 0.0
    %1993 = vmatprep.subr.mxu0 0.0
    %1994 = vmatpush2.msra.mxu0 0.0
    %1995 = vmatprep.subr.mxu0 0.0
    %1996 = vmatpush2.msra.mxu0 0.0
    %1997 = vmatprep.subr.mxu0 0.0
    %1998 = vmatpush2.msra.mxu0 0.0
    %1999 = vmatprep.subr.mxu0 0.0
    %2000 = vmatpush2.msra.mxu0 0.0
    %2001 = vmatprep.subr.mxu0 0.0
    %2002 = vmatpush2.msra.mxu0 0.0
    %2003 = vmatprep.subr.mxu0 0.0
    %2004 = vmatpush2.msra.mxu0 0.0
    %2005 = vmatprep.subr.mxu0 0.0
    %2006 = vmatpush2.msra.mxu0 0.0
    %2007 = vmatprep.subr.mxu0 0.0
    %2008 = vmatpush2.msra.mxu0 0.0
    %2009 = vmatprep.subr.mxu0 0.0
    %2010 = vmatpush2.msra.mxu0 0.0
    %2011 = vmatprep.subr.mxu0 0.0
    %2012 = vmatpush2.msra.mxu0 0.0
    %2013 = vmatprep.mubr.f32.mxu0 0.0
    %2014 = vmatmul.mubr.f32.gmra.mxu0 %v1867
    %v2015 = vpop.f32.mrf.mxu0
    %v2016 = vadd.f32 0.0, %v2015
    %v2017 = vpop.f32.mrf.mxu0
    %2018 = vdwg.mxu0
    %v2020 = vrot.slane %v2016, 6
    %v2022 = vadd.f32 %v457, %v2020
    %v2023 = vxor.u32 %v2022, 2147483648
    %v2024 = vmul.f32 %v2023, 1.442695
    %v2025 = vpow.pop %v2024
    %v2026 = vadd.f32 %v2025, 1.0
    %v2027 = vrcp.pop %v2026
    %v2028 = vmul.f32 1.0, %v2027
    %2029 = vmatprep.subr.mxu0 0.0
    %2030 = vmatpush1.msra.mxu0 0.0
    %2031 = vmatprep.subr.mxu0 0.0
    %2032 = vmatpush1.msra.mxu0 0.0
    %2033 = vmatprep.subr.mxu0 0.0
    %2034 = vmatpush1.msra.mxu0 0.0
    %2035 = vmatprep.subr.mxu0 0.0
    %2036 = vmatpush1.msra.mxu0 0.0
    %2037 = vmatprep.subr.mxu0 0.0
    %2038 = vmatpush1.msra.mxu0 0.0
    %2039 = vmatprep.subr.mxu0 0.0
    %2040 = vmatpush1.msra.mxu0 0.0
    %2041 = vmatprep.subr.mxu0 0.0
    %2042 = vmatpush1.msra.mxu0 0.0
    %2043 = vmatprep.subr.mxu0 0.0
    %2044 = vmatpush1.msra.mxu0 0.0
    %2045 = vmatprep.subr.mxu0 0.0
    %2046 = vmatpush1.msra.mxu0 0.0
    %2047 = vmatprep.subr.mxu0 0.0
    %2048 = vmatpush1.msra.mxu0 0.0
    %2049 = vmatprep.subr.mxu0 0.0
    %2050 = vmatpush1.msra.mxu0 0.0
    %2051 = vmatprep.subr.mxu0 0.0
    %2052 = vmatpush1.msra.mxu0 0.0
    %2053 = vmatprep.subr.mxu0 0.0
    %2054 = vmatpush1.msra.mxu0 %v636
    %2055 = vmatprep.subr.mxu0 0.0
    %2056 = vmatpush1.msra.mxu0 %v635
    %2057 = vmatprep.subr.mxu0 0.0
    %2058 = vmatpush1.msra.mxu0 %v634
    %2059 = vmatprep.subr.mxu0 0.0
    %2060 = vmatpush1.msra.mxu0 %v633
    %2061 = vmatprep.subr.mxu0 0.0
    %2062 = vmatpush2.msra.mxu0 0.0
    %2063 = vmatprep.subr.mxu0 0.0
    %2064 = vmatpush2.msra.mxu0 0.0
    %2065 = vmatprep.subr.mxu0 0.0
    %2066 = vmatpush2.msra.mxu0 0.0
    %2067 = vmatprep.subr.mxu0 0.0
    %2068 = vmatpush2.msra.mxu0 0.0
    %2069 = vmatprep.subr.mxu0 0.0
    %2070 = vmatpush2.msra.mxu0 0.0
    %2071 = vmatprep.subr.mxu0 0.0
    %2072 = vmatpush2.msra.mxu0 0.0
    %2073 = vmatprep.subr.mxu0 0.0
    %2074 = vmatpush2.msra.mxu0 0.0
    %2075 = vmatprep.subr.mxu0 0.0
    %2076 = vmatpush2.msra.mxu0 0.0
    %2077 = vmatprep.subr.mxu0 0.0
    %2078 = vmatpush2.msra.mxu0 0.0
    %2079 = vmatprep.subr.mxu0 0.0
    %2080 = vmatpush2.msra.mxu0 0.0
    %2081 = vmatprep.subr.mxu0 0.0
    %2082 = vmatpush2.msra.mxu0 0.0
    %2083 = vmatprep.subr.mxu0 0.0
    %2084 = vmatpush2.msra.mxu0 0.0
    %2085 = vmatprep.subr.mxu0 0.0
    %2086 = vmatpush2.msra.mxu0 0.0
    %2087 = vmatprep.subr.mxu0 0.0
    %2088 = vmatpush2.msra.mxu0 0.0
    %2089 = vmatprep.subr.mxu0 0.0
    %2090 = vmatpush2.msra.mxu0 0.0
    %2091 = vmatprep.subr.mxu0 0.0
    %2092 = vmatpush2.msra.mxu0 0.0
    %2093 = vmatprep.mubr.f32.mxu0 0.0
    %2094 = vmatmul.mubr.f32.gmra.mxu0 %v1867
    %v2095 = vpop.f32.mrf.mxu0
    %v2096 = vadd.f32 %v643, %v2095
    %v2097 = vpop.f32.mrf.mxu0
    %2098 = vdwg.mxu0
    %v2100 = vrot.slane %v2096, 6
    %v2102 = vmul.f32 %v1948, %v2100
    %v2103 = vadd.f32 %v622, %v2102
    %v2104 = vtanh.pop %v2103
    %v2105 = vsub.f32 1.0, %v2028
    %v2106 = vmul.f32 %v2105, %v2104
    %v2107 = vrot.slane %v1863, 6
    %v2109 = vmul.f32 %v2028, %v2107
    %v2110 = vadd.f32 %v2106, %v2109
    %s2111 = scalar_lea.vmem [#allocation11], 10
    %2112 = vst.msk [vmem:[%s2111 - $0x2] sm:$0xc] %vm1128, %v2110
    %v2114 = vrot.slane %v2110, 2
    %v2115 = vsel %vm645, %v2114, 0
    %2117 = vmatprep.subr.mxu0 0.0
    %2118 = vmatpush1.msra.mxu0 0.0
    %2119 = vmatprep.subr.mxu0 0.0
    %2120 = vmatpush1.msra.mxu0 0.0
    %2121 = vmatprep.subr.mxu0 0.0
    %2122 = vmatpush1.msra.mxu0 0.0
    %2123 = vmatprep.subr.mxu0 0.0
    %2124 = vmatpush1.msra.mxu0 0.0
    %2125 = vmatprep.subr.mxu0 0.0
    %2126 = vmatpush1.msra.mxu0 0.0
    %2127 = vmatprep.subr.mxu0 0.0
    %2128 = vmatpush1.msra.mxu0 0.0
    %2129 = vmatprep.subr.mxu0 0.0
    %2130 = vmatpush1.msra.mxu0 0.0
    %2131 = vmatprep.subr.mxu0 0.0
    %2132 = vmatpush1.msra.mxu0 0.0
    %2133 = vmatprep.subr.mxu0 0.0
    %2134 = vmatpush1.msra.mxu0 0.0
    %2135 = vmatprep.subr.mxu0 0.0
    %2136 = vmatpush1.msra.mxu0 0.0
    %2137 = vmatprep.subr.mxu0 0.0
    %2138 = vmatpush1.msra.mxu0 0.0
    %2139 = vmatprep.subr.mxu0 0.0
    %2140 = vmatpush1.msra.mxu0 0.0
    %2141 = vmatprep.subr.mxu0 0.0
    %2142 = vmatpush1.msra.mxu0 %v626
    %2143 = vmatprep.subr.mxu0 0.0
    %2144 = vmatpush1.msra.mxu0 %v625
    %2145 = vmatprep.subr.mxu0 0.0
    %2146 = vmatpush1.msra.mxu0 %v624
    %2147 = vmatprep.subr.mxu0 0.0
    %2148 = vmatpush1.msra.mxu0 %v623
    %2149 = vmatprep.subr.mxu0 0.0
    %2150 = vmatpush2.msra.mxu0 0.0
    %2151 = vmatprep.subr.mxu0 0.0
    %2152 = vmatpush2.msra.mxu0 0.0
    %2153 = vmatprep.subr.mxu0 0.0
    %2154 = vmatpush2.msra.mxu0 0.0
    %2155 = vmatprep.subr.mxu0 0.0
    %2156 = vmatpush2.msra.mxu0 0.0
    %2157 = vmatprep.subr.mxu0 0.0
    %2158 = vmatpush2.msra.mxu0 0.0
    %2159 = vmatprep.subr.mxu0 0.0
    %2160 = vmatpush2.msra.mxu0 0.0
    %2161 = vmatprep.subr.mxu0 0.0
    %2162 = vmatpush2.msra.mxu0 0.0
    %2163 = vmatprep.subr.mxu0 0.0
    %2164 = vmatpush2.msra.mxu0 0.0
    %2165 = vmatprep.subr.mxu0 0.0
    %2166 = vmatpush2.msra.mxu0 0.0
    %2167 = vmatprep.subr.mxu0 0.0
    %2168 = vmatpush2.msra.mxu0 0.0
    %2169 = vmatprep.subr.mxu0 0.0
    %2170 = vmatpush2.msra.mxu0 0.0
    %2171 = vmatprep.subr.mxu0 0.0
    %2172 = vmatpush2.msra.mxu0 0.0
    %2173 = vmatprep.subr.mxu0 0.0
    %2174 = vmatpush2.msra.mxu0 0.0
    %2175 = vmatprep.subr.mxu0 0.0
    %2176 = vmatpush2.msra.mxu0 0.0
    %2177 = vmatprep.subr.mxu0 0.0
    %2178 = vmatpush2.msra.mxu0 0.0
    %2179 = vmatprep.subr.mxu0 0.0
    %2180 = vmatpush2.msra.mxu0 0.0
    %2181 = vmatprep.mubr.f32.mxu0 0.0
    %2182 = vmatmul.mubr.f32.gmra.mxu0 %v2115
    %v2183 = vpop.f32.mrf.mxu0
    %v2184 = vadd.f32 0.0, %v2183
    %v2185 = vpop.f32.mrf.mxu0
    %2186 = vdwg.mxu0
    %v2188 = vrot.slane %v2184, 4
    %v2190 = vadd.f32 %v289, %v2188
    %v2191 = vxor.u32 %v2190, 2147483648
    %v2192 = vmul.f32 %v2191, 1.442695
    %v2193 = vpow.pop %v2192
    %v2194 = vadd.f32 %v2193, 1.0
    %v2195 = vrcp.pop %v2194
    %v2196 = vmul.f32 1.0, %v2195
    %2197 = vmatprep.subr.mxu0 0.0
    %2198 = vmatpush1.msra.mxu0 0.0
    %2199 = vmatprep.subr.mxu0 0.0
    %2200 = vmatpush1.msra.mxu0 0.0
    %2201 = vmatprep.subr.mxu0 0.0
    %2202 = vmatpush1.msra.mxu0 0.0
    %2203 = vmatprep.subr.mxu0 0.0
    %2204 = vmatpush1.msra.mxu0 0.0
    %2205 = vmatprep.subr.mxu0 0.0
    %2206 = vmatpush1.msra.mxu0 0.0
    %2207 = vmatprep.subr.mxu0 0.0
    %2208 = vmatpush1.msra.mxu0 0.0
    %2209 = vmatprep.subr.mxu0 0.0
    %2210 = vmatpush1.msra.mxu0 0.0
    %2211 = vmatprep.subr.mxu0 0.0
    %2212 = vmatpush1.msra.mxu0 0.0
    %2213 = vmatprep.subr.mxu0 0.0
    %2214 = vmatpush1.msra.mxu0 0.0
    %2215 = vmatprep.subr.mxu0 0.0
    %2216 = vmatpush1.msra.mxu0 0.0
    %2217 = vmatprep.subr.mxu0 0.0
    %2218 = vmatpush1.msra.mxu0 0.0
    %2219 = vmatprep.subr.mxu0 0.0
    %2220 = vmatpush1.msra.mxu0 0.0
    %2221 = vmatprep.subr.mxu0 0.0
    %2222 = vmatpush1.msra.mxu0 %v631
    %2223 = vmatprep.subr.mxu0 0.0
    %2224 = vmatpush1.msra.mxu0 %v630
    %2225 = vmatprep.subr.mxu0 0.0
    %2226 = vmatpush1.msra.mxu0 %v629
    %2227 = vmatprep.subr.mxu0 0.0
    %2228 = vmatpush1.msra.mxu0 %v628
    %2229 = vmatprep.subr.mxu0 0.0
    %2230 = vmatpush2.msra.mxu0 0.0
    %2231 = vmatprep.subr.mxu0 0.0
    %2232 = vmatpush2.msra.mxu0 0.0
    %2233 = vmatprep.subr.mxu0 0.0
    %2234 = vmatpush2.msra.mxu0 0.0
    %2235 = vmatprep.subr.mxu0 0.0
    %2236 = vmatpush2.msra.mxu0 0.0
    %2237 = vmatprep.subr.mxu0 0.0
    %2238 = vmatpush2.msra.mxu0 0.0
    %2239 = vmatprep.subr.mxu0 0.0
    %2240 = vmatpush2.msra.mxu0 0.0
    %2241 = vmatprep.subr.mxu0 0.0
    %2242 = vmatpush2.msra.mxu0 0.0
    %2243 = vmatprep.subr.mxu0 0.0
    %2244 = vmatpush2.msra.mxu0 0.0
    %2245 = vmatprep.subr.mxu0 0.0
    %2246 = vmatpush2.msra.mxu0 0.0
    %2247 = vmatprep.subr.mxu0 0.0
    %2248 = vmatpush2.msra.mxu0 0.0
    %2249 = vmatprep.subr.mxu0 0.0
    %2250 = vmatpush2.msra.mxu0 0.0
    %2251 = vmatprep.subr.mxu0 0.0
    %2252 = vmatpush2.msra.mxu0 0.0
    %2253 = vmatprep.subr.mxu0 0.0
    %2254 = vmatpush2.msra.mxu0 0.0
    %2255 = vmatprep.subr.mxu0 0.0
    %2256 = vmatpush2.msra.mxu0 0.0
    %2257 = vmatprep.subr.mxu0 0.0
    %2258 = vmatpush2.msra.mxu0 0.0
    %2259 = vmatprep.subr.mxu0 0.0
    %2260 = vmatpush2.msra.mxu0 0.0
    %2261 = vmatprep.mubr.f32.mxu0 0.0
    %2262 = vmatmul.mubr.f32.gmra.mxu0 %v2115
    %v2263 = vpop.f32.mrf.mxu0
    %v2264 = vadd.f32 0.0, %v2263
    %v2265 = vpop.f32.mrf.mxu0
    %2266 = vdwg.mxu0
    %v2268 = vrot.slane %v2264, 4
    %v2270 = vadd.f32 %v457, %v2268
    %v2271 = vxor.u32 %v2270, 2147483648
    %v2272 = vmul.f32 %v2271, 1.442695
    %v2273 = vpow.pop %v2272
    %v2274 = vadd.f32 %v2273, 1.0
    %v2275 = vrcp.pop %v2274
    %v2276 = vmul.f32 1.0, %v2275
    %2277 = vmatprep.subr.mxu0 0.0
    %2278 = vmatpush1.msra.mxu0 0.0
    %2279 = vmatprep.subr.mxu0 0.0
    %2280 = vmatpush1.msra.mxu0 0.0
    %2281 = vmatprep.subr.mxu0 0.0
    %2282 = vmatpush1.msra.mxu0 0.0
    %2283 = vmatprep.subr.mxu0 0.0
    %2284 = vmatpush1.msra.mxu0 0.0
    %2285 = vmatprep.subr.mxu0 0.0
    %2286 = vmatpush1.msra.mxu0 0.0
    %2287 = vmatprep.subr.mxu0 0.0
    %2288 = vmatpush1.msra.mxu0 0.0
    %2289 = vmatprep.subr.mxu0 0.0
    %2290 = vmatpush1.msra.mxu0 0.0
    %2291 = vmatprep.subr.mxu0 0.0
    %2292 = vmatpush1.msra.mxu0 0.0
    %2293 = vmatprep.subr.mxu0 0.0
    %2294 = vmatpush1.msra.mxu0 0.0
    %2295 = vmatprep.subr.mxu0 0.0
    %2296 = vmatpush1.msra.mxu0 0.0
    %2297 = vmatprep.subr.mxu0 0.0
    %2298 = vmatpush1.msra.mxu0 0.0
    %2299 = vmatprep.subr.mxu0 0.0
    %2300 = vmatpush1.msra.mxu0 0.0
    %2301 = vmatprep.subr.mxu0 0.0
    %2302 = vmatpush1.msra.mxu0 %v636
    %2303 = vmatprep.subr.mxu0 0.0
    %2304 = vmatpush1.msra.mxu0 %v635
    %2305 = vmatprep.subr.mxu0 0.0
    %2306 = vmatpush1.msra.mxu0 %v634
    %2307 = vmatprep.subr.mxu0 0.0
    %2308 = vmatpush1.msra.mxu0 %v633
    %2309 = vmatprep.subr.mxu0 0.0
    %2310 = vmatpush2.msra.mxu0 0.0
    %2311 = vmatprep.subr.mxu0 0.0
    %2312 = vmatpush2.msra.mxu0 0.0
    %2313 = vmatprep.subr.mxu0 0.0
    %2314 = vmatpush2.msra.mxu0 0.0
    %2315 = vmatprep.subr.mxu0 0.0
    %2316 = vmatpush2.msra.mxu0 0.0
    %2317 = vmatprep.subr.mxu0 0.0
    %2318 = vmatpush2.msra.mxu0 0.0
    %2319 = vmatprep.subr.mxu0 0.0
    %2320 = vmatpush2.msra.mxu0 0.0
    %2321 = vmatprep.subr.mxu0 0.0
    %2322 = vmatpush2.msra.mxu0 0.0
    %2323 = vmatprep.subr.mxu0 0.0
    %2324 = vmatpush2.msra.mxu0 0.0
    %2325 = vmatprep.subr.mxu0 0.0
    %2326 = vmatpush2.msra.mxu0 0.0
    %2327 = vmatprep.subr.mxu0 0.0
    %2328 = vmatpush2.msra.mxu0 0.0
    %2329 = vmatprep.subr.mxu0 0.0
    %2330 = vmatpush2.msra.mxu0 0.0
    %2331 = vmatprep.subr.mxu0 0.0
    %2332 = vmatpush2.msra.mxu0 0.0
    %2333 = vmatprep.subr.mxu0 0.0
    %2334 = vmatpush2.msra.mxu0 0.0
    %2335 = vmatprep.subr.mxu0 0.0
    %2336 = vmatpush2.msra.mxu0 0.0
    %2337 = vmatprep.subr.mxu0 0.0
    %2338 = vmatpush2.msra.mxu0 0.0
    %2339 = vmatprep.subr.mxu0 0.0
    %2340 = vmatpush2.msra.mxu0 0.0
    %2341 = vmatprep.mubr.f32.mxu0 0.0
    %2342 = vmatmul.mubr.f32.gmra.mxu0 %v2115
    %v2343 = vpop.f32.mrf.mxu0
    %v2344 = vadd.f32 %v643, %v2343
    %v2345 = vpop.f32.mrf.mxu0
    %2346 = vdwg.mxu0
    %v2348 = vrot.slane %v2344, 4
    %v2350 = vmul.f32 %v2196, %v2348
    %v2351 = vadd.f32 %v622, %v2350
    %v2352 = vtanh.pop %v2351
    %v2353 = vsub.f32 1.0, %v2276
    %v2354 = vmul.f32 %v2353, %v2352
    %v2355 = vrot.slane %v2110, 6
    %v2357 = vmul.f32 %v2276, %v2355
    %v2358 = vadd.f32 %v2354, %v2357
    %s2359 = scalar_lea.vmem [#allocation11], 12
    %2360 = vst.msk [vmem:[%s2359 - $0x4] sm:$0x30] %vm1377, %v2358
    %v2362 = vrot.slane %v2358, 4
    %v2363 = vsel %vm645, %v2362, 0
    %2365 = vmatprep.subr.mxu0 0.0
    %2366 = vmatpush1.msra.mxu0 0.0
    %2367 = vmatprep.subr.mxu0 0.0
    %2368 = vmatpush1.msra.mxu0 0.0
    %2369 = vmatprep.subr.mxu0 0.0
    %2370 = vmatpush1.msra.mxu0 0.0
    %2371 = vmatprep.subr.mxu0 0.0
    %2372 = vmatpush1.msra.mxu0 0.0
    %2373 = vmatprep.subr.mxu0 0.0
    %2374 = vmatpush1.msra.mxu0 0.0
    %2375 = vmatprep.subr.mxu0 0.0
    %2376 = vmatpush1.msra.mxu0 0.0
    %2377 = vmatprep.subr.mxu0 0.0
    %2378 = vmatpush1.msra.mxu0 0.0
    %2379 = vmatprep.subr.mxu0 0.0
    %2380 = vmatpush1.msra.mxu0 0.0
    %2381 = vmatprep.subr.mxu0 0.0
    %2382 = vmatpush1.msra.mxu0 0.0
    %2383 = vmatprep.subr.mxu0 0.0
    %2384 = vmatpush1.msra.mxu0 0.0
    %2385 = vmatprep.subr.mxu0 0.0
    %2386 = vmatpush1.msra.mxu0 0.0
    %2387 = vmatprep.subr.mxu0 0.0
    %2388 = vmatpush1.msra.mxu0 0.0
    %2389 = vmatprep.subr.mxu0 0.0
    %2390 = vmatpush1.msra.mxu0 %v626
    %2391 = vmatprep.subr.mxu0 0.0
    %2392 = vmatpush1.msra.mxu0 %v625
    %2393 = vmatprep.subr.mxu0 0.0
    %2394 = vmatpush1.msra.mxu0 %v624
    %2395 = vmatprep.subr.mxu0 0.0
    %2396 = vmatpush1.msra.mxu0 %v623
    %2397 = vmatprep.subr.mxu0 0.0
    %2398 = vmatpush2.msra.mxu0 0.0
    %2399 = vmatprep.subr.mxu0 0.0
    %2400 = vmatpush2.msra.mxu0 0.0
    %2401 = vmatprep.subr.mxu0 0.0
    %2402 = vmatpush2.msra.mxu0 0.0
    %2403 = vmatprep.subr.mxu0 0.0
    %2404 = vmatpush2.msra.mxu0 0.0
    %2405 = vmatprep.subr.mxu0 0.0
    %2406 = vmatpush2.msra.mxu0 0.0
    %2407 = vmatprep.subr.mxu0 0.0
    %2408 = vmatpush2.msra.mxu0 0.0
    %2409 = vmatprep.subr.mxu0 0.0
    %2410 = vmatpush2.msra.mxu0 0.0
    %2411 = vmatprep.subr.mxu0 0.0
    %2412 = vmatpush2.msra.mxu0 0.0
    %2413 = vmatprep.subr.mxu0 0.0
    %2414 = vmatpush2.msra.mxu0 0.0
    %2415 = vmatprep.subr.mxu0 0.0
    %2416 = vmatpush2.msra.mxu0 0.0
    %2417 = vmatprep.subr.mxu0 0.0
    %2418 = vmatpush2.msra.mxu0 0.0
    %2419 = vmatprep.subr.mxu0 0.0
    %2420 = vmatpush2.msra.mxu0 0.0
    %2421 = vmatprep.subr.mxu0 0.0
    %2422 = vmatpush2.msra.mxu0 0.0
    %2423 = vmatprep.subr.mxu0 0.0
    %2424 = vmatpush2.msra.mxu0 0.0
    %2425 = vmatprep.subr.mxu0 0.0
    %2426 = vmatpush2.msra.mxu0 0.0
    %2427 = vmatprep.subr.mxu0 0.0
    %2428 = vmatpush2.msra.mxu0 0.0
    %2429 = vmatprep.mubr.f32.mxu0 0.0
    %2430 = vmatmul.mubr.f32.gmra.mxu0 %v2363
    %v2431 = vpop.f32.mrf.mxu0
    %v2432 = vadd.f32 0.0, %v2431
    %v2433 = vpop.f32.mrf.mxu0
    %2434 = vdwg.mxu0
    %v2436 = vrot.slane %v2432, 2
    %v2438 = vadd.f32 %v289, %v2436
    %v2439 = vxor.u32 %v2438, 2147483648
    %v2440 = vmul.f32 %v2439, 1.442695
    %v2441 = vpow.pop %v2440
    %v2442 = vadd.f32 %v2441, 1.0
    %v2443 = vrcp.pop %v2442
    %v2444 = vmul.f32 1.0, %v2443
    %2445 = vmatprep.subr.mxu0 0.0
    %2446 = vmatpush1.msra.mxu0 0.0
    %2447 = vmatprep.subr.mxu0 0.0
    %2448 = vmatpush1.msra.mxu0 0.0
    %2449 = vmatprep.subr.mxu0 0.0
    %2450 = vmatpush1.msra.mxu0 0.0
    %2451 = vmatprep.subr.mxu0 0.0
    %2452 = vmatpush1.msra.mxu0 0.0
    %2453 = vmatprep.subr.mxu0 0.0
    %2454 = vmatpush1.msra.mxu0 0.0
    %2455 = vmatprep.subr.mxu0 0.0
    %2456 = vmatpush1.msra.mxu0 0.0
    %2457 = vmatprep.subr.mxu0 0.0
    %2458 = vmatpush1.msra.mxu0 0.0
    %2459 = vmatprep.subr.mxu0 0.0
    %2460 = vmatpush1.msra.mxu0 0.0
    %2461 = vmatprep.subr.mxu0 0.0
    %2462 = vmatpush1.msra.mxu0 0.0
    %2463 = vmatprep.subr.mxu0 0.0
    %2464 = vmatpush1.msra.mxu0 0.0
    %2465 = vmatprep.subr.mxu0 0.0
    %2466 = vmatpush1.msra.mxu0 0.0
    %2467 = vmatprep.subr.mxu0 0.0
    %2468 = vmatpush1.msra.mxu0 0.0
    %2469 = vmatprep.subr.mxu0 0.0
    %2470 = vmatpush1.msra.mxu0 %v631
    %2471 = vmatprep.subr.mxu0 0.0
    %2472 = vmatpush1.msra.mxu0 %v630
    %2473 = vmatprep.subr.mxu0 0.0
    %2474 = vmatpush1.msra.mxu0 %v629
    %2475 = vmatprep.subr.mxu0 0.0
    %2476 = vmatpush1.msra.mxu0 %v628
    %2477 = vmatprep.subr.mxu0 0.0
    %2478 = vmatpush2.msra.mxu0 0.0
    %2479 = vmatprep.subr.mxu0 0.0
    %2480 = vmatpush2.msra.mxu0 0.0
    %2481 = vmatprep.subr.mxu0 0.0
    %2482 = vmatpush2.msra.mxu0 0.0
    %2483 = vmatprep.subr.mxu0 0.0
    %2484 = vmatpush2.msra.mxu0 0.0
    %2485 = vmatprep.subr.mxu0 0.0
    %2486 = vmatpush2.msra.mxu0 0.0
    %2487 = vmatprep.subr.mxu0 0.0
    %2488 = vmatpush2.msra.mxu0 0.0
    %2489 = vmatprep.subr.mxu0 0.0
    %2490 = vmatpush2.msra.mxu0 0.0
    %2491 = vmatprep.subr.mxu0 0.0
    %2492 = vmatpush2.msra.mxu0 0.0
    %2493 = vmatprep.subr.mxu0 0.0
    %2494 = vmatpush2.msra.mxu0 0.0
    %2495 = vmatprep.subr.mxu0 0.0
    %2496 = vmatpush2.msra.mxu0 0.0
    %2497 = vmatprep.subr.mxu0 0.0
    %2498 = vmatpush2.msra.mxu0 0.0
    %2499 = vmatprep.subr.mxu0 0.0
    %2500 = vmatpush2.msra.mxu0 0.0
    %2501 = vmatprep.subr.mxu0 0.0
    %2502 = vmatpush2.msra.mxu0 0.0
    %2503 = vmatprep.subr.mxu0 0.0
    %2504 = vmatpush2.msra.mxu0 0.0
    %2505 = vmatprep.subr.mxu0 0.0
    %2506 = vmatpush2.msra.mxu0 0.0
    %2507 = vmatprep.subr.mxu0 0.0
    %2508 = vmatpush2.msra.mxu0 0.0
    %2509 = vmatprep.mubr.f32.mxu0 0.0
    %2510 = vmatmul.mubr.f32.gmra.mxu0 %v2363
    %v2511 = vpop.f32.mrf.mxu0
    %v2512 = vadd.f32 0.0, %v2511
    %v2513 = vpop.f32.mrf.mxu0
    %2514 = vdwg.mxu0
    %v2516 = vrot.slane %v2512, 2
    %v2518 = vadd.f32 %v457, %v2516
    %v2519 = vxor.u32 %v2518, 2147483648
    %v2520 = vmul.f32 %v2519, 1.442695
    %v2521 = vpow.pop %v2520
    %v2522 = vadd.f32 %v2521, 1.0
    %v2523 = vrcp.pop %v2522
    %v2524 = vmul.f32 1.0, %v2523
    %2525 = vmatprep.subr.mxu0 0.0
    %2526 = vmatpush1.msra.mxu0 0.0
    %2527 = vmatprep.subr.mxu0 0.0
    %2528 = vmatpush1.msra.mxu0 0.0
    %2529 = vmatprep.subr.mxu0 0.0
    %2530 = vmatpush1.msra.mxu0 0.0
    %2531 = vmatprep.subr.mxu0 0.0
    %2532 = vmatpush1.msra.mxu0 0.0
    %2533 = vmatprep.subr.mxu0 0.0
    %2534 = vmatpush1.msra.mxu0 0.0
    %2535 = vmatprep.subr.mxu0 0.0
    %2536 = vmatpush1.msra.mxu0 0.0
    %2537 = vmatprep.subr.mxu0 0.0
    %2538 = vmatpush1.msra.mxu0 0.0
    %2539 = vmatprep.subr.mxu0 0.0
    %2540 = vmatpush1.msra.mxu0 0.0
    %2541 = vmatprep.subr.mxu0 0.0
    %2542 = vmatpush1.msra.mxu0 0.0
    %2543 = vmatprep.subr.mxu0 0.0
    %2544 = vmatpush1.msra.mxu0 0.0
    %2545 = vmatprep.subr.mxu0 0.0
    %2546 = vmatpush1.msra.mxu0 0.0
    %2547 = vmatprep.subr.mxu0 0.0
    %2548 = vmatpush1.msra.mxu0 0.0
    %2549 = vmatprep.subr.mxu0 0.0
    %2550 = vmatpush1.msra.mxu0 %v636
    %2551 = vmatprep.subr.mxu0 0.0
    %2552 = vmatpush1.msra.mxu0 %v635
    %2553 = vmatprep.subr.mxu0 0.0
    %2554 = vmatpush1.msra.mxu0 %v634
    %2555 = vmatprep.subr.mxu0 0.0
    %2556 = vmatpush1.msra.mxu0 %v633
    %2557 = vmatprep.subr.mxu0 0.0
    %2558 = vmatpush2.msra.mxu0 0.0
    %2559 = vmatprep.subr.mxu0 0.0
    %2560 = vmatpush2.msra.mxu0 0.0
    %2561 = vmatprep.subr.mxu0 0.0
    %2562 = vmatpush2.msra.mxu0 0.0
    %2563 = vmatprep.subr.mxu0 0.0
    %2564 = vmatpush2.msra.mxu0 0.0
    %2565 = vmatprep.subr.mxu0 0.0
    %2566 = vmatpush2.msra.mxu0 0.0
    %2567 = vmatprep.subr.mxu0 0.0
    %2568 = vmatpush2.msra.mxu0 0.0
    %2569 = vmatprep.subr.mxu0 0.0
    %2570 = vmatpush2.msra.mxu0 0.0
    %2571 = vmatprep.subr.mxu0 0.0
    %2572 = vmatpush2.msra.mxu0 0.0
    %2573 = vmatprep.subr.mxu0 0.0
    %2574 = vmatpush2.msra.mxu0 0.0
    %2575 = vmatprep.subr.mxu0 0.0
    %2576 = vmatpush2.msra.mxu0 0.0
    %2577 = vmatprep.subr.mxu0 0.0
    %2578 = vmatpush2.msra.mxu0 0.0
    %2579 = vmatprep.subr.mxu0 0.0
    %2580 = vmatpush2.msra.mxu0 0.0
    %2581 = vmatprep.subr.mxu0 0.0
    %2582 = vmatpush2.msra.mxu0 0.0
    %2583 = vmatprep.subr.mxu0 0.0
    %2584 = vmatpush2.msra.mxu0 0.0
    %2585 = vmatprep.subr.mxu0 0.0
    %2586 = vmatpush2.msra.mxu0 0.0
    %2587 = vmatprep.subr.mxu0 0.0
    %2588 = vmatpush2.msra.mxu0 0.0
    %2589 = vmatprep.mubr.f32.mxu0 0.0
    %2590 = vmatmul.mubr.f32.gmra.mxu0 %v2363
    %v2591 = vpop.f32.mrf.mxu0
    %v2592 = vadd.f32 %v643, %v2591
    %v2593 = vpop.f32.mrf.mxu0
    %2594 = vdwg.mxu0
    %v2596 = vrot.slane %v2592, 2
    %v2598 = vmul.f32 %v2444, %v2596
    %v2599 = vadd.f32 %v622, %v2598
    %v2600 = vtanh.pop %v2599
    %v2601 = vsub.f32 1.0, %v2524
    %v2602 = vmul.f32 %v2601, %v2600
    %v2603 = vrot.slane %v2358, 6
    %v2605 = vmul.f32 %v2524, %v2603
    %v2606 = vadd.f32 %v2602, %v2605
    %s2607 = scalar_lea.vmem [#allocation11], 14
    %2608 = vst.msk [vmem:[%s2607 - $0x6] sm:$0xc0] %vm1626, %v2606
    %v2609 = vld [vmem:[#allocation7] sm:$0x3]
    %v2610 = vld [vmem:[#allocation10] sm:$0xff]
    %v2611 = vld [vmem:[#allocation10 + $0x8] sm:$0xff]
    %v2612 = vld [vmem:[#allocation10 + $0x10] sm:$0xff]
    %v2613 = vld [vmem:[%s8] sm:$0x1]
    %v2615 = vlaneseq
    %v2616 = vshrl.u32 %v2615, 7
    %v2617 = vsub.s32 0, %v2616
    %v2618 = vrot.slane %v2613, %v2617
    %vm2620 = vcmask 195584
    %v2622 = vsel %vm2620, %v2609, 0
    %2624 = vmatprep.subr.mxu0 0.0
    %2625 = vmatpush1.msra.mxu0 0.0
    %2626 = vmatprep.subr.mxu0 0.0
    %2627 = vmatpush1.msra.mxu0 0.0
    %2628 = vmatprep.subr.mxu0 0.0
    %2629 = vmatpush1.msra.mxu0 0.0
    %2630 = vmatprep.subr.mxu0 0.0
    %2631 = vmatpush1.msra.mxu0 0.0
    %2632 = vmatprep.subr.mxu0 0.0
    %2633 = vmatpush1.msra.mxu0 0.0
    %2634 = vmatprep.subr.mxu0 0.0
    %2635 = vmatpush1.msra.mxu0 0.0
    %2636 = vmatprep.subr.mxu0 0.0
    %2637 = vmatpush1.msra.mxu0 0.0
    %2638 = vmatprep.subr.mxu0 0.0
    %2639 = vmatpush1.msra.mxu0 0.0
    %2640 = vmatprep.subr.mxu0 0.0
    %2641 = vmatpush1.msra.mxu0 0.0
    %2642 = vmatprep.subr.mxu0 0.0
    %2643 = vmatpush1.msra.mxu0 0.0
    %2644 = vmatprep.subr.mxu0 0.0
    %2645 = vmatpush1.msra.mxu0 0.0
    %2646 = vmatprep.subr.mxu0 0.0
    %2647 = vmatpush1.msra.mxu0 0.0
    %2648 = vmatprep.subr.mxu0 0.0
    %2649 = vmatpush1.msra.mxu0 0.0
    %2650 = vmatprep.subr.mxu0 0.0
    %2651 = vmatpush1.msra.mxu0 %v2612
    %2652 = vmatprep.subr.mxu0 0.0
    %2653 = vmatpush1.msra.mxu0 %v2611
    %2654 = vmatprep.subr.mxu0 0.0
    %2655 = vmatpush1.msra.mxu0 %v2610
    %2656 = vmatprep.subr.mxu0 0.0
    %2657 = vmatpush2.msra.mxu0 0.0
    %2658 = vmatprep.subr.mxu0 0.0
    %2659 = vmatpush2.msra.mxu0 0.0
    %2660 = vmatprep.subr.mxu0 0.0
    %2661 = vmatpush2.msra.mxu0 0.0
    %2662 = vmatprep.subr.mxu0 0.0
    %2663 = vmatpush2.msra.mxu0 0.0
    %2664 = vmatprep.subr.mxu0 0.0
    %2665 = vmatpush2.msra.mxu0 0.0
    %2666 = vmatprep.subr.mxu0 0.0
    %2667 = vmatpush2.msra.mxu0 0.0
    %2668 = vmatprep.subr.mxu0 0.0
    %2669 = vmatpush2.msra.mxu0 0.0
    %2670 = vmatprep.subr.mxu0 0.0
    %2671 = vmatpush2.msra.mxu0 0.0
    %2672 = vmatprep.subr.mxu0 0.0
    %2673 = vmatpush2.msra.mxu0 0.0
    %2674 = vmatprep.subr.mxu0 0.0
    %2675 = vmatpush2.msra.mxu0 0.0
    %2676 = vmatprep.subr.mxu0 0.0
    %2677 = vmatpush2.msra.mxu0 0.0
    %2678 = vmatprep.subr.mxu0 0.0
    %2679 = vmatpush2.msra.mxu0 0.0
    %2680 = vmatprep.subr.mxu0 0.0
    %2681 = vmatpush2.msra.mxu0 0.0
    %2682 = vmatprep.subr.mxu0 0.0
    %2683 = vmatpush2.msra.mxu0 0.0
    %2684 = vmatprep.subr.mxu0 0.0
    %2685 = vmatpush2.msra.mxu0 0.0
    %2686 = vmatprep.subr.mxu0 0.0
    %2687 = vmatpush2.msra.mxu0 0.0
    %2688 = vmatprep.mubr.f32.mxu0 0.0
    %2689 = vmatmul.mubr.f32.gmra.mxu0 %v2622
    %v2690 = vpop.f32.mrf.mxu0
    %v2691 = vadd.f32 %v2618, %v2690
    %v2692 = vpop.f32.mrf.mxu0
    %2693 = vdwg.mxu0
    %v2694 = vtanh.pop %v2691
    %v2695 = vld [vmem:[%s9] sm:$0xff]
    %v2696 = vld [vmem:[%s9 + $0x8] sm:$0xff]
    %v2697 = vld [vmem:[%s9 + $0x10] sm:$0xff]
    %v2698 = vld [vmem:[%s9 + $0x18] sm:$0xff]
    %v2699 = vld [vmem:[%s9 + $0x20] sm:$0xff]
    %v2700 = vld [vmem:[%s9 + $0x28] sm:$0xff]
    %v2701 = vld [vmem:[%s9 + $0x30] sm:$0xff]
    %v2702 = vld [vmem:[%s9 + $0x38] sm:$0xff]
    %v2704 = vsel %vm645, %v2694, 0
    %2706 = vmatprep.subr.mxu0 0.0
    %2707 = vmatpush1.msra.mxu0 0.0
    %2708 = vmatprep.subr.mxu0 0.0
    %2709 = vmatpush1.msra.mxu0 0.0
    %2710 = vmatprep.subr.mxu0 0.0
    %2711 = vmatpush1.msra.mxu0 0.0
    %2712 = vmatprep.subr.mxu0 0.0
    %2713 = vmatpush1.msra.mxu0 0.0
    %2714 = vmatprep.subr.mxu0 0.0
    %2715 = vmatpush1.msra.mxu0 0.0
    %2716 = vmatprep.subr.mxu0 0.0
    %2717 = vmatpush1.msra.mxu0 0.0
    %2718 = vmatprep.subr.mxu0 0.0
    %2719 = vmatpush1.msra.mxu0 0.0
    %2720 = vmatprep.subr.mxu0 0.0
    %2721 = vmatpush1.msra.mxu0 0.0
    %2722 = vmatprep.subr.mxu0 0.0
    %2723 = vmatpush1.msra.mxu0 0.0
    %2724 = vmatprep.subr.mxu0 0.0
    %2725 = vmatpush1.msra.mxu0 0.0
    %2726 = vmatprep.subr.mxu0 0.0
    %2727 = vmatpush1.msra.mxu0 0.0
    %2728 = vmatprep.subr.mxu0 0.0
    %2729 = vmatpush1.msra.mxu0 0.0
    %2730 = vmatprep.subr.mxu0 0.0
    %2731 = vmatpush1.msra.mxu0 %v2702
    %2732 = vmatprep.subr.mxu0 0.0
    %2733 = vmatpush1.msra.mxu0 %v2701
    %2734 = vmatprep.subr.mxu0 0.0
    %2735 = vmatpush1.msra.mxu0 %v2700
    %2736 = vmatprep.subr.mxu0 0.0
    %2737 = vmatpush1.msra.mxu0 %v2699
    %2738 = vmatprep.subr.mxu0 0.0
    %2739 = vmatpush2.msra.mxu0 0.0
    %2740 = vmatprep.subr.mxu0 0.0
    %2741 = vmatpush2.msra.mxu0 0.0
    %2742 = vmatprep.subr.mxu0 0.0
    %2743 = vmatpush2.msra.mxu0 0.0
    %2744 = vmatprep.subr.mxu0 0.0
    %2745 = vmatpush2.msra.mxu0 0.0
    %2746 = vmatprep.subr.mxu0 0.0
    %2747 = vmatpush2.msra.mxu0 0.0
    %2748 = vmatprep.subr.mxu0 0.0
    %2749 = vmatpush2.msra.mxu0 0.0
    %2750 = vmatprep.subr.mxu0 0.0
    %2751 = vmatpush2.msra.mxu0 0.0
    %2752 = vmatprep.subr.mxu0 0.0
    %2753 = vmatpush2.msra.mxu0 0.0
    %2754 = vmatprep.subr.mxu0 0.0
    %2755 = vmatpush2.msra.mxu0 0.0
    %2756 = vmatprep.subr.mxu0 0.0
    %2757 = vmatpush2.msra.mxu0 0.0
    %2758 = vmatprep.subr.mxu0 0.0
    %2759 = vmatpush2.msra.mxu0 0.0
    %2760 = vmatprep.subr.mxu0 0.0
    %2761 = vmatpush2.msra.mxu0 0.0
    %2762 = vmatprep.subr.mxu0 0.0
    %2763 = vmatpush2.msra.mxu0 0.0
    %2764 = vmatprep.subr.mxu0 0.0
    %2765 = vmatpush2.msra.mxu0 0.0
    %2766 = vmatprep.subr.mxu0 0.0
    %2767 = vmatpush2.msra.mxu0 0.0
    %2768 = vmatprep.subr.mxu0 0.0
    %2769 = vmatpush2.msra.mxu0 0.0
    %2770 = vmatprep.mubr.f32.mxu0 0.0
    %2771 = vmatmul.mubr.f32.gmra.mxu0 %v2704
    %v2772 = vpop.f32.mrf.mxu0
    %v2773 = vadd.f32 0.0, %v2772
    %v2774 = vpop.f32.mrf.mxu0
    %2775 = vdwg.mxu0
    %v2777 = vrot.slane %v2606, 6
    %v2778 = vsel %vm645, %v2777, 0
    %2780 = vmatprep.subr.mxu0 0.0
    %2781 = vmatpush1.msra.mxu0 0.0
    %2782 = vmatprep.subr.mxu0 0.0
    %2783 = vmatpush1.msra.mxu0 0.0
    %2784 = vmatprep.subr.mxu0 0.0
    %2785 = vmatpush1.msra.mxu0 0.0
    %2786 = vmatprep.subr.mxu0 0.0
    %2787 = vmatpush1.msra.mxu0 0.0
    %2788 = vmatprep.subr.mxu0 0.0
    %2789 = vmatpush1.msra.mxu0 0.0
    %2790 = vmatprep.subr.mxu0 0.0
    %2791 = vmatpush1.msra.mxu0 0.0
    %2792 = vmatprep.subr.mxu0 0.0
    %2793 = vmatpush1.msra.mxu0 0.0
    %2794 = vmatprep.subr.mxu0 0.0
    %2795 = vmatpush1.msra.mxu0 0.0
    %2796 = vmatprep.subr.mxu0 0.0
    %2797 = vmatpush1.msra.mxu0 0.0
    %2798 = vmatprep.subr.mxu0 0.0
    %2799 = vmatpush1.msra.mxu0 0.0
    %2800 = vmatprep.subr.mxu0 0.0
    %2801 = vmatpush1.msra.mxu0 0.0
    %2802 = vmatprep.subr.mxu0 0.0
    %2803 = vmatpush1.msra.mxu0 0.0
    %2804 = vmatprep.subr.mxu0 0.0
    %2805 = vmatpush1.msra.mxu0 %v2698
    %2806 = vmatprep.subr.mxu0 0.0
    %2807 = vmatpush1.msra.mxu0 %v2697
    %2808 = vmatprep.subr.mxu0 0.0
    %2809 = vmatpush1.msra.mxu0 %v2696
    %2810 = vmatprep.subr.mxu0 0.0
    %2811 = vmatpush1.msra.mxu0 %v2695
    %2812 = vmatprep.subr.mxu0 0.0
    %2813 = vmatpush2.msra.mxu0 0.0
    %2814 = vmatprep.subr.mxu0 0.0
    %2815 = vmatpush2.msra.mxu0 0.0
    %2816 = vmatprep.subr.mxu0 0.0
    %2817 = vmatpush2.msra.mxu0 0.0
    %2818 = vmatprep.subr.mxu0 0.0
    %2819 = vmatpush2.msra.mxu0 0.0
    %2820 = vmatprep.subr.mxu0 0.0
    %2821 = vmatpush2.msra.mxu0 0.0
    %2822 = vmatprep.subr.mxu0 0.0
    %2823 = vmatpush2.msra.mxu0 0.0
    %2824 = vmatprep.subr.mxu0 0.0
    %2825 = vmatpush2.msra.mxu0 0.0
    %2826 = vmatprep.subr.mxu0 0.0
    %2827 = vmatpush2.msra.mxu0 0.0
    %2828 = vmatprep.subr.mxu0 0.0
    %2829 = vmatpush2.msra.mxu0 0.0
    %2830 = vmatprep.subr.mxu0 0.0
    %2831 = vmatpush2.msra.mxu0 0.0
    %2832 = vmatprep.subr.mxu0 0.0
    %2833 = vmatpush2.msra.mxu0 0.0
    %2834 = vmatprep.subr.mxu0 0.0
    %2835 = vmatpush2.msra.mxu0 0.0
    %2836 = vmatprep.subr.mxu0 0.0
    %2837 = vmatpush2.msra.mxu0 0.0
    %2838 = vmatprep.subr.mxu0 0.0
    %2839 = vmatpush2.msra.mxu0 0.0
    %2840 = vmatprep.subr.mxu0 0.0
    %2841 = vmatpush2.msra.mxu0 0.0
    %2842 = vmatprep.subr.mxu0 0.0
    %2843 = vmatpush2.msra.mxu0 0.0
    %2844 = vmatprep.mubr.f32.mxu0 0.0
    %2845 = vmatmul.mubr.f32.gmra.mxu0 %v2778
    %v2846 = vpop.f32.mrf.mxu0
    %v2847 = vadd.f32 %v2773, %v2846
    %v2848 = vpop.f32.mrf.mxu0
    %2849 = vdwg.mxu0
    %v2850 = vld [vmem:[%s10] sm:$0x1]
    %v2852 = vlaneseq
    %v2853 = vshrl.u32 %v2852, 7
    %v2854 = vsub.s32 0, %v2853
    %v2855 = vrot.slane %v2850, %v2854
    %v2857 = vadd.f32 %v2847, %v2855
    %v2858 = vtanh.pop %v2857
    %2859 = vst.msk [vmem:[#allocation12] sm:$0x3] %vm880, %v2858
    // Predicated region
    $region66: #{tpu_custom_call.1} parent=1 // pred_check
      _
    $region67: #{tpu_custom_call.1} parent=1 // pred_check_branch
      %2861 = sbr.rel (0) target = $region69
    $region68: #{tpu_custom_call.1} parent=1 // pred_region
      %s2863 = ssub.s32 256, 256
      %2864 = vsyncadd [#allocation4], %s2863
      %s2865 = sshll.u32 [#allocation11], 4
      %s2866 = int_to_ptr.vmem [resolvable:$true] %s2865
      %2871 = dma.vmem_to_hbm [thread:$0]  %s2866, 256, %s11, [#allocation4], 32, 32, 2
    $region69: #{tpu_custom_call.1} parent=1 // pred_fallthru
      _
    // Predicated region
    $region70: #{tpu_custom_call.1} parent=1 // pred_check
      _
    $region71: #{tpu_custom_call.1} parent=1 // pred_check_branch
      %2873 = sbr.rel (0) target = $region73
    $region72: #{tpu_custom_call.1} parent=1 // pred_region
      %s2875 = ssub.s32 32, 32
      %2876 = vsyncadd [#allocation13], %s2875
      %s2878 = sshll.u32 [#allocation12], 4
      %s2879 = int_to_ptr.vmem [resolvable:$true] %s2878
      %2881 = dma.vmem_to_hbm [thread:$0]  %s2879, 32, %s12, [#allocation13]
    $region73: #{tpu_custom_call.1} parent=1 // pred_fallthru
      _
    // Predicated region
    $region74: #{tpu_custom_call.1} parent=1 // pred_check
      _
    $region75: #{tpu_custom_call.1} parent=1 // pred_check_branch
      %2883 = sbr.rel (0) target = $region77
    $region76: #{tpu_custom_call.1} parent=1 // pred_region
      %2884 = dma.done [#allocation4], 256
    $region77: #{tpu_custom_call.1} parent=1 // pred_fallthru
      _
    // Predicated region
    $region78: #{tpu_custom_call.1} parent=1 // pred_check
      _
    $region79: #{tpu_custom_call.1} parent=1 // pred_check_branch
      %2886 = sbr.rel (0) target = $region81
    $region80: #{tpu_custom_call.1} parent=1 // pred_region
      %2887 = dma.done [#allocation13], 32
    $region81: #{tpu_custom_call.1} parent=1 // pred_fallthru
      _
    %2888 = vsyncpa [#allocation3], 1
    %2889 = vsyncpa [#allocation6], 1
    %2890 = vsyncpa [#allocation9], 1
    %2891 = vsyncpa [#allocation4], 1
    %2892 = vsyncpa [#allocation13], 1

</llo_original>
